<compile_context>
chip_gen: v7x
topology: tpu7x:2x2x1
jax: 0.10.0
libtpu: 0.0.40
codegen_flags: <defaults>
</compile_context>

<pallas_src>
import functools

import jax
import jax.numpy as jnp
from jax.experimental import pallas as pl
from jax.experimental.pallas import tpu as pltpu


# ----------------------------- spectral norm (glue) ----------------------------- #
def _l2_normalize(v, eps=1e-12):
    return v / jnp.maximum(jnp.sqrt(jnp.sum(v * v)), eps)


def spectral_normalize(weight, u):
    """One power-iteration step, matching torch.nn.utils.spectral_norm forward
    (training mode, n_power_iterations=1).  weight: (out, ...)."""
    w_mat = weight.reshape(weight.shape[0], -1)          # (out, rest)
    v = _l2_normalize(jnp.matmul(w_mat.T, u))            # (rest,)
    u_new = _l2_normalize(jnp.matmul(w_mat, v))          # (out,)
    sigma = jnp.dot(u_new, jnp.matmul(w_mat, v))
    return weight / sigma


# ------------------------------- Pallas kernel ---------------------------------- #
def resnet_block_kernel(x_ref, w1_ref, b1_ref, w2_ref, b2_ref, o_ref,
                        pad_ref, pat_ref, *, c, h, w):
    # x_ref  : (1, C, H*W)      one batch element, NCHW-flat (lane dim = H*W)
    # w*_ref : (9*C, C)         im2col conv weight, rows = (tap, cin), cols = cout
    # b*_ref : (1, C)           conv bias
    # o_ref  : (1, C, H*W)      output, NCHW-flat (lane-dense stores)
    # pad_ref: (H+2, W+2, C)    VMEM scratch: reflection-padded activation (HWC)
    # pat_ref: (H*W, 9*C)       VMEM scratch: im2col patch matrix
    hw = h * w
    x_chw = x_ref[0].astype(jnp.float32)      # (C, H*W)
    x_hwc = x_chw.T                           # (H*W, C)  in-VMEM relayout only

    def conv3x3_reflect(a_hwc, w_r, b_r):
        a = a_hwc.reshape(h, w, c)                        # free reshape (split major)
        # nn.ReflectionPad2d(1) into the VMEM scratch
        pad_ref[1:h + 1, 1:w + 1, :] = a                  # interior
        pad_ref[0:1, 1:w + 1, :] = a[1:2, :, :]           # top row reflect
        pad_ref[h + 1:h + 2, 1:w + 1, :] = a[h - 2:h - 1, :, :]   # bottom row
        pad_ref[:, 0:1, :] = pad_ref[:, 2:3, :]           # left col (+corners)
        pad_ref[:, w + 1:w + 2, :] = pad_ref[:, w - 1:w, :]       # right col
        # im2col: stack the 9 shifted taps along the contraction axis
        for i in range(3):
            for j in range(3):
                t = i * 3 + j
                pat_ref[:, t * c:(t + 1) * c] = (
                    pad_ref[i:i + h, j:j + w, :].reshape(hw, c))
        # one MXU matmul per conv: (H*W, 9C) x (9C, C), K = 9*Cin
        y = jnp.dot(pat_ref[...], w_r[...].astype(jnp.float32),
                    preferred_element_type=jnp.float32)   # (H*W, C)
        return y + b_r[...].astype(jnp.float32)           # bias (1, C) broadcast

    y = jnp.maximum(conv3x3_reflect(x_hwc, w1_ref, b1_ref), 0.0)   # conv1 + ReLU
    y = conv3x3_reflect(y, w2_ref, b2_ref)                         # conv2
    # residual add in CHW; lane-dense (C, H*W) output store
    o_ref[0] = (x_chw + y.T).astype(o_ref.dtype)


# --------------------------------- wrapper -------------------------------------- #
def resnet_block_sn(x, w1, b1, u1, w2, b2, u2):
    """x: (N, C, H, W).  w1/w2: (C, C, 3, 3) spectral-normalized convs."""
    N, C, H, W = x.shape
    HW = H * W

    # spectral norm (parameter glue, plain JAX)
    w1n = spectral_normalize(w1, u1)
    w2n = spectral_normalize(w2, u2)

    # im2col weight layout: row index = tap*C + cin, col = cout
    w1k = jnp.transpose(w1n, (2, 3, 1, 0)).reshape(9 * C, C)
    w2k = jnp.transpose(w2n, (2, 3, 1, 0)).reshape(9 * C, C)
    b1k = b1.reshape(1, C)
    b2k = b2.reshape(1, C)

    x_flat = x.reshape(N, C, HW)   # free reshape, no relayout / extra HBM pass

    kernel = functools.partial(resnet_block_kernel, c=C, h=H, w=W)

    out_flat = pl.pallas_call(
        kernel,
        out_shape=jax.ShapeDtypeStruct((N, C, HW), x.dtype),
        grid_spec=pltpu.PrefetchScalarGridSpec(
            num_scalar_prefetch=0,
            grid=(N,),
            in_specs=[
                pl.BlockSpec((1, C, HW), lambda n: (n, 0, 0)),
                pl.BlockSpec((9 * C, C), lambda n: (0, 0)),
                pl.BlockSpec((1, C), lambda n: (0, 0)),
                pl.BlockSpec((9 * C, C), lambda n: (0, 0)),
                pl.BlockSpec((1, C), lambda n: (0, 0)),
            ],
            out_specs=pl.BlockSpec((1, C, HW), lambda n: (n, 0, 0)),
            scratch_shapes=[
                pltpu.VMEM((H + 2, W + 2, C), jnp.float32),   # padded activation
                pltpu.VMEM((HW, 9 * C), jnp.float32),          # im2col patches
            ],
        ),
        compiler_params=pltpu.CompilerParams(
            dimension_semantics=("parallel",)),
    )(x_flat, w1k, b1k, w2k, b2k)

    return out_flat.reshape(N, C, H, W)   # free reshape back to NCHW


# --------------------------- plain-JAX reference --------------------------------- #
def reference(x, w1, b1, u1, w2, b2, u2):
    w1n = spectral_normalize(w1, u1)
    w2n = spectral_normalize(w2, u2)

    def conv(a, w, b):
        ap = jnp.pad(a, ((0, 0), (0, 0), (1, 1), (1, 1)), mode="reflect")
        y = jax.lax.conv_general_dilated(
            ap, w, window_strides=(1, 1), padding=[(0, 0), (0, 0)],
            dimension_numbers=("NCHW", "OIHW", "NCHW"),
            precision=jax.lax.Precision.HIGHEST)
        return y + b[None, :, None, None]

    y = conv(x, w1n, b1)
    y = jnp.maximum(y, 0.0)
    y = conv(y, w2n, b2)
    return x + y


# ----------------------------------- main ---------------------------------------- #
if __name__ == "__main__":
    key = jax.random.PRNGKey(0)
    k_x, k_w1, k_b1, k_u1, k_w2, k_b2, k_u2 = jax.random.split(key, 7)

    N, dim, H, W = 2, 4, 16, 16
    ksize = 3

    x = jax.random.normal(k_x, (N, dim, H, W), jnp.float32)

    # deterministic parameter init (synthetic; shapes match nn.Conv2d(dim, dim, 3))
    w1 = jax.random.normal(k_w1, (dim, dim, ksize, ksize), jnp.float32) * 0.2
    b1 = jax.random.normal(k_b1, (dim,), jnp.float32) * 0.1
    u1 = _l2_normalize(jax.random.normal(k_u1, (dim,), jnp.float32))

    w2 = jax.random.normal(k_w2, (dim, dim, ksize, ksize), jnp.float32) * 0.2
    b2 = jax.random.normal(k_b2, (dim,), jnp.float32) * 0.1
    u2 = _l2_normalize(jax.random.normal(k_u2, (dim,), jnp.float32))

    out = resnet_block_sn(x, w1, b1, u1, w2, b2, u2)
    out = jax.block_until_ready(out)

    ref = jax.block_until_ready(reference(x, w1, b1, u1, w2, b2, u2))

    assert out.shape == (N, dim, H, W), out.shape
    assert jnp.allclose(out, ref, rtol=1e-4, atol=1e-4), \
        float(jnp.max(jnp.abs(out - ref)))

    print("KERNEL_OK")
</pallas_src>

<mosaic_0001>
module attributes {stable_mosaic.version = 11 : i64} {
  func.func @resnet_block_kernel(%arg0: i32, %arg1: memref<1x4x256xf32, #tpu.memory_space<vmem>>, %arg2: memref<36x4xf32, #tpu.memory_space<vmem>>, %arg3: memref<1x4xf32, #tpu.memory_space<vmem>>, %arg4: memref<36x4xf32, #tpu.memory_space<vmem>>, %arg5: memref<1x4xf32, #tpu.memory_space<vmem>>, %arg6: memref<1x4x256xf32, #tpu.memory_space<vmem>>, %arg7: memref<18x18x4xf32, #tpu.memory_space<vmem>>, %arg8: memref<256x36xf32, #tpu.memory_space<vmem>>) attributes {dimension_semantics = [#tpu.dimension_semantics<parallel>], iteration_bounds = array<i64: 2>, scalar_prefetch = 0 : i64, scratch_operands = 2 : i64, tpu.core_type = #tpu.core_type<tc>, window_params = [{transform_indices = @transform_0, window_bounds = array<i64: 1, 4, 256>}, {pipeline_mode = #tpu.pipeline_mode<synchronous>, transform_indices = @transform_1, window_bounds = array<i64: 36, 4>}, {pipeline_mode = #tpu.pipeline_mode<synchronous>, transform_indices = @transform_2, window_bounds = array<i64: 1, 4>}, {pipeline_mode = #tpu.pipeline_mode<synchronous>, transform_indices = @transform_3, window_bounds = array<i64: 36, 4>}, {pipeline_mode = #tpu.pipeline_mode<synchronous>, transform_indices = @transform_4, window_bounds = array<i64: 1, 4>}, {transform_indices = @transform_5, window_bounds = array<i64: 1, 4, 256>}]} {
    %c0 = arith.constant 0 : index
    %c0_0 = arith.constant 0 : index
    %c0_1 = arith.constant 0 : index
    %0 = vector.load %arg1[%c0, %c0_0, %c0_1] : memref<1x4x256xf32, #tpu.memory_space<vmem>>, vector<1x4x256xf32>
    %1 = vector.shape_cast %0 : vector<1x4x256xf32> to vector<4x256xf32>
    %2 = tpu.transpose %1, [1, 0] : vector<4x256xf32> -> vector<256x4xf32>
    %3 = vector.shape_cast %2 : vector<256x4xf32> to vector<16x16x4xf32>
    %c1 = arith.constant 1 : index
    %c1_2 = arith.constant 1 : index
    %c0_3 = arith.constant 0 : index
    %4 = vector.load %arg7[%c1, %c1_2, %c0_3] : memref<18x18x4xf32, #tpu.memory_space<vmem>>, vector<16x16x4xf32>
    tpu.vector_store %arg7[%c1, %c1_2, %c0_3], %3 {strides = array<i32>} : memref<18x18x4xf32, #tpu.memory_space<vmem>>, vector<16x16x4xf32>,
    %5 = vector.extract_strided_slice %3 {offsets = [1, 0, 0], sizes = [1, 16, 4], strides = [1, 1, 1]} : vector<16x16x4xf32> to vector<1x16x4xf32>
    %c0_4 = arith.constant 0 : index
    %c1_5 = arith.constant 1 : index
    %c0_6 = arith.constant 0 : index
    %6 = vector.load %arg7[%c0_4, %c1_5, %c0_6] : memref<18x18x4xf32, #tpu.memory_space<vmem>>, vector<1x16x4xf32>
    tpu.vector_store %arg7[%c0_4, %c1_5, %c0_6], %5 {strides = array<i32>} : memref<18x18x4xf32, #tpu.memory_space<vmem>>, vector<1x16x4xf32>,
    %7 = vector.extract_strided_slice %3 {offsets = [14, 0, 0], sizes = [1, 16, 4], strides = [1, 1, 1]} : vector<16x16x4xf32> to vector<1x16x4xf32>
    %c17 = arith.constant 17 : index
    %c1_7 = arith.constant 1 : index
    %c0_8 = arith.constant 0 : index
    %8 = vector.load %arg7[%c17, %c1_7, %c0_8] : memref<18x18x4xf32, #tpu.memory_space<vmem>>, vector<1x16x4xf32>
    tpu.vector_store %arg7[%c17, %c1_7, %c0_8], %7 {strides = array<i32>} : memref<18x18x4xf32, #tpu.memory_space<vmem>>, vector<1x16x4xf32>,
    %c0_9 = arith.constant 0 : index
    %c2 = arith.constant 2 : index
    %c0_10 = arith.constant 0 : index
    %9 = vector.load %arg7[%c0_9, %c2, %c0_10] : memref<18x18x4xf32, #tpu.memory_space<vmem>>, vector<18x1x4xf32>
    %c0_11 = arith.constant 0 : index
    %c0_12 = arith.constant 0 : index
    %c0_13 = arith.constant 0 : index
    %10 = vector.load %arg7[%c0_11, %c0_12, %c0_13] : memref<18x18x4xf32, #tpu.memory_space<vmem>>, vector<18x1x4xf32>
    tpu.vector_store %arg7[%c0_11, %c0_12, %c0_13], %9 {strides = array<i32>} : memref<18x18x4xf32, #tpu.memory_space<vmem>>, vector<18x1x4xf32>,
    %c0_14 = arith.constant 0 : index
    %c15 = arith.constant 15 : index
    %c0_15 = arith.constant 0 : index
    %11 = vector.load %arg7[%c0_14, %c15, %c0_15] : memref<18x18x4xf32, #tpu.memory_space<vmem>>, vector<18x1x4xf32>
    %c0_16 = arith.constant 0 : index
    %c17_17 = arith.constant 17 : index
    %c0_18 = arith.constant 0 : index
    %12 = vector.load %arg7[%c0_16, %c17_17, %c0_18] : memref<18x18x4xf32, #tpu.memory_space<vmem>>, vector<18x1x4xf32>
    tpu.vector_store %arg7[%c0_16, %c17_17, %c0_18], %11 {strides = array<i32>} : memref<18x18x4xf32, #tpu.memory_space<vmem>>, vector<18x1x4xf32>,
    %c0_19 = arith.constant 0 : index
    %c0_20 = arith.constant 0 : index
    %c0_21 = arith.constant 0 : index
    %13 = vector.load %arg7[%c0_19, %c0_20, %c0_21] : memref<18x18x4xf32, #tpu.memory_space<vmem>>, vector<16x16x4xf32>
    %14 = vector.shape_cast %13 : vector<16x16x4xf32> to vector<256x4xf32>
    %c0_22 = arith.constant 0 : index
    %c0_23 = arith.constant 0 : index
    %15 = vector.load %arg8[%c0_22, %c0_23] : memref<256x36xf32, #tpu.memory_space<vmem>>, vector<256x4xf32>
    tpu.vector_store %arg8[%c0_22, %c0_23], %14 {strides = array<i32>} : memref<256x36xf32, #tpu.memory_space<vmem>>, vector<256x4xf32>,
    %c0_24 = arith.constant 0 : index
    %c1_25 = arith.constant 1 : index
    %c0_26 = arith.constant 0 : index
    %16 = vector.load %arg7[%c0_24, %c1_25, %c0_26] : memref<18x18x4xf32, #tpu.memory_space<vmem>>, vector<16x16x4xf32>
    %17 = vector.shape_cast %16 : vector<16x16x4xf32> to vector<256x4xf32>
    %c0_27 = arith.constant 0 : index
    %c4 = arith.constant 4 : index
    %18 = vector.load %arg8[%c0_27, %c4] : memref<256x36xf32, #tpu.memory_space<vmem>>, vector<256x4xf32>
    tpu.vector_store %arg8[%c0_27, %c4], %17 {strides = array<i32>} : memref<256x36xf32, #tpu.memory_space<vmem>>, vector<256x4xf32>,
    %c0_28 = arith.constant 0 : index
    %c2_29 = arith.constant 2 : index
    %c0_30 = arith.constant 0 : index
    %19 = vector.load %arg7[%c0_28, %c2_29, %c0_30] : memref<18x18x4xf32, #tpu.memory_space<vmem>>, vector<16x16x4xf32>
    %20 = vector.shape_cast %19 : vector<16x16x4xf32> to vector<256x4xf32>
    %c0_31 = arith.constant 0 : index
    %c8 = arith.constant 8 : index
    %21 = vector.load %arg8[%c0_31, %c8] : memref<256x36xf32, #tpu.memory_space<vmem>>, vector<256x4xf32>
    tpu.vector_store %arg8[%c0_31, %c8], %20 {strides = array<i32>} : memref<256x36xf32, #tpu.memory_space<vmem>>, vector<256x4xf32>,
    %c1_32 = arith.constant 1 : index
    %c0_33 = arith.constant 0 : index
    %c0_34 = arith.constant 0 : index
    %22 = vector.load %arg7[%c1_32, %c0_33, %c0_34] : memref<18x18x4xf32, #tpu.memory_space<vmem>>, vector<16x16x4xf32>
    %23 = vector.shape_cast %22 : vector<16x16x4xf32> to vector<256x4xf32>
    %c0_35 = arith.constant 0 : index
    %c12 = arith.constant 12 : index
    %24 = vector.load %arg8[%c0_35, %c12] : memref<256x36xf32, #tpu.memory_space<vmem>>, vector<256x4xf32>
    tpu.vector_store %arg8[%c0_35, %c12], %23 {strides = array<i32>} : memref<256x36xf32, #tpu.memory_space<vmem>>, vector<256x4xf32>,
    %c1_36 = arith.constant 1 : index
    %c1_37 = arith.constant 1 : index
    %c0_38 = arith.constant 0 : index
    %25 = vector.load %arg7[%c1_36, %c1_37, %c0_38] : memref<18x18x4xf32, #tpu.memory_space<vmem>>, vector<16x16x4xf32>
    %26 = vector.shape_cast %25 : vector<16x16x4xf32> to vector<256x4xf32>
    %c0_39 = arith.constant 0 : index
    %c16 = arith.constant 16 : index
    %27 = vector.load %arg8[%c0_39, %c16] : memref<256x36xf32, #tpu.memory_space<vmem>>, vector<256x4xf32>
    tpu.vector_store %arg8[%c0_39, %c16], %26 {strides = array<i32>} : memref<256x36xf32, #tpu.memory_space<vmem>>, vector<256x4xf32>,
    %c1_40 = arith.constant 1 : index
    %c2_41 = arith.constant 2 : index
    %c0_42 = arith.constant 0 : index
    %28 = vector.load %arg7[%c1_40, %c2_41, %c0_42] : memref<18x18x4xf32, #tpu.memory_space<vmem>>, vector<16x16x4xf32>
    %29 = vector.shape_cast %28 : vector<16x16x4xf32> to vector<256x4xf32>
    %c0_43 = arith.constant 0 : index
    %c20 = arith.constant 20 : index
    %30 = vector.load %arg8[%c0_43, %c20] : memref<256x36xf32, #tpu.memory_space<vmem>>, vector<256x4xf32>
    tpu.vector_store %arg8[%c0_43, %c20], %29 {strides = array<i32>} : memref<256x36xf32, #tpu.memory_space<vmem>>, vector<256x4xf32>,
    %c2_44 = arith.constant 2 : index
    %c0_45 = arith.constant 0 : index
    %c0_46 = arith.constant 0 : index
    %31 = vector.load %arg7[%c2_44, %c0_45, %c0_46] : memref<18x18x4xf32, #tpu.memory_space<vmem>>, vector<16x16x4xf32>
    %32 = vector.shape_cast %31 : vector<16x16x4xf32> to vector<256x4xf32>
    %c0_47 = arith.constant 0 : index
    %c24 = arith.constant 24 : index
    %33 = vector.load %arg8[%c0_47, %c24] : memref<256x36xf32, #tpu.memory_space<vmem>>, vector<256x4xf32>
    tpu.vector_store %arg8[%c0_47, %c24], %32 {strides = array<i32>} : memref<256x36xf32, #tpu.memory_space<vmem>>, vector<256x4xf32>,
    %c2_48 = arith.constant 2 : index
    %c1_49 = arith.constant 1 : index
    %c0_50 = arith.constant 0 : index
    %34 = vector.load %arg7[%c2_48, %c1_49, %c0_50] : memref<18x18x4xf32, #tpu.memory_space<vmem>>, vector<16x16x4xf32>
    %35 = vector.shape_cast %34 : vector<16x16x4xf32> to vector<256x4xf32>
    %c0_51 = arith.constant 0 : index
    %c28 = arith.constant 28 : index
    %36 = vector.load %arg8[%c0_51, %c28] : memref<256x36xf32, #tpu.memory_space<vmem>>, vector<256x4xf32>
    tpu.vector_store %arg8[%c0_51, %c28], %35 {strides = array<i32>} : memref<256x36xf32, #tpu.memory_space<vmem>>, vector<256x4xf32>,
    %c2_52 = arith.constant 2 : index
    %c2_53 = arith.constant 2 : index
    %c0_54 = arith.constant 0 : index
    %37 = vector.load %arg7[%c2_52, %c2_53, %c0_54] : memref<18x18x4xf32, #tpu.memory_space<vmem>>, vector<16x16x4xf32>
    %38 = vector.shape_cast %37 : vector<16x16x4xf32> to vector<256x4xf32>
    %c0_55 = arith.constant 0 : index
    %c32 = arith.constant 32 : index
    %39 = vector.load %arg8[%c0_55, %c32] : memref<256x36xf32, #tpu.memory_space<vmem>>, vector<256x4xf32>
    tpu.vector_store %arg8[%c0_55, %c32], %38 {strides = array<i32>} : memref<256x36xf32, #tpu.memory_space<vmem>>, vector<256x4xf32>,
    %c0_56 = arith.constant 0 : index
    %c0_57 = arith.constant 0 : index
    %40 = vector.load %arg8[%c0_56, %c0_57] : memref<256x36xf32, #tpu.memory_space<vmem>>, vector<256x36xf32>
    %c0_58 = arith.constant 0 : index
    %c0_59 = arith.constant 0 : index
    %41 = vector.load %arg2[%c0_58, %c0_59] : memref<36x4xf32, #tpu.memory_space<vmem>>, vector<36x4xf32>
    %cst = arith.constant dense<0.000000e+00> : vector<256x4xf32>
    %42 = tpu.matmul %40, %41, %cst {dimension_numbers = #tpu.dot_dimension_numbers<[1], [0], [0], [1], [0, 0, 1, 1], [], []>} : vector<256x36xf32>, vector<36x4xf32>, vector<256x4xf32> -> vector<256x4xf32>
    %c0_60 = arith.constant 0 : index
    %c0_61 = arith.constant 0 : index
    %43 = vector.load %arg3[%c0_60, %c0_61] : memref<1x4xf32, #tpu.memory_space<vmem>>, vector<1x4xf32>
    %44 = vector.broadcast %43 : vector<1x4xf32> to vector<256x4xf32>
    %45 = arith.addf %42, %44 : vector<256x4xf32>
    %cst_62 = arith.constant 0.000000e+00 : f32
    %46 = vector.broadcast %cst_62 : f32 to vector<256x4xf32>
    %47 = arith.maximumf %45, %46 : vector<256x4xf32>
    %48 = vector.shape_cast %47 : vector<256x4xf32> to vector<16x16x4xf32>
    %c1_63 = arith.constant 1 : index
    %c1_64 = arith.constant 1 : index
    %c0_65 = arith.constant 0 : index
    %49 = vector.load %arg7[%c1_63, %c1_64, %c0_65] : memref<18x18x4xf32, #tpu.memory_space<vmem>>, vector<16x16x4xf32>
    tpu.vector_store %arg7[%c1_63, %c1_64, %c0_65], %48 {strides = array<i32>} : memref<18x18x4xf32, #tpu.memory_space<vmem>>, vector<16x16x4xf32>,
    %50 = vector.extract_strided_slice %48 {offsets = [1, 0, 0], sizes = [1, 16, 4], strides = [1, 1, 1]} : vector<16x16x4xf32> to vector<1x16x4xf32>
    %c0_66 = arith.constant 0 : index
    %c1_67 = arith.constant 1 : index
    %c0_68 = arith.constant 0 : index
    %51 = vector.load %arg7[%c0_66, %c1_67, %c0_68] : memref<18x18x4xf32, #tpu.memory_space<vmem>>, vector<1x16x4xf32>
    tpu.vector_store %arg7[%c0_66, %c1_67, %c0_68], %50 {strides = array<i32>} : memref<18x18x4xf32, #tpu.memory_space<vmem>>, vector<1x16x4xf32>,
    %52 = vector.extract_strided_slice %48 {offsets = [14, 0, 0], sizes = [1, 16, 4], strides = [1, 1, 1]} : vector<16x16x4xf32> to vector<1x16x4xf32>
    %c17_69 = arith.constant 17 : index
    %c1_70 = arith.constant 1 : index
    %c0_71 = arith.constant 0 : index
    %53 = vector.load %arg7[%c17_69, %c1_70, %c0_71] : memref<18x18x4xf32, #tpu.memory_space<vmem>>, vector<1x16x4xf32>
    tpu.vector_store %arg7[%c17_69, %c1_70, %c0_71], %52 {strides = array<i32>} : memref<18x18x4xf32, #tpu.memory_space<vmem>>, vector<1x16x4xf32>,
    %c0_72 = arith.constant 0 : index
    %c2_73 = arith.constant 2 : index
    %c0_74 = arith.constant 0 : index
    %54 = vector.load %arg7[%c0_72, %c2_73, %c0_74] : memref<18x18x4xf32, #tpu.memory_space<vmem>>, vector<18x1x4xf32>
    %c0_75 = arith.constant 0 : index
    %c0_76 = arith.constant 0 : index
    %c0_77 = arith.constant 0 : index
    %55 = vector.load %arg7[%c0_75, %c0_76, %c0_77] : memref<18x18x4xf32, #tpu.memory_space<vmem>>, vector<18x1x4xf32>
    tpu.vector_store %arg7[%c0_75, %c0_76, %c0_77], %54 {strides = array<i32>} : memref<18x18x4xf32, #tpu.memory_space<vmem>>, vector<18x1x4xf32>,
    %c0_78 = arith.constant 0 : index
    %c15_79 = arith.constant 15 : index
    %c0_80 = arith.constant 0 : index
    %56 = vector.load %arg7[%c0_78, %c15_79, %c0_80] : memref<18x18x4xf32, #tpu.memory_space<vmem>>, vector<18x1x4xf32>
    %c0_81 = arith.constant 0 : index
    %c17_82 = arith.constant 17 : index
    %c0_83 = arith.constant 0 : index
    %57 = vector.load %arg7[%c0_81, %c17_82, %c0_83] : memref<18x18x4xf32, #tpu.memory_space<vmem>>, vector<18x1x4xf32>
    tpu.vector_store %arg7[%c0_81, %c17_82, %c0_83], %56 {strides = array<i32>} : memref<18x18x4xf32, #tpu.memory_space<vmem>>, vector<18x1x4xf32>,
    %c0_84 = arith.constant 0 : index
    %c0_85 = arith.constant 0 : index
    %c0_86 = arith.constant 0 : index
    %58 = vector.load %arg7[%c0_84, %c0_85, %c0_86] : memref<18x18x4xf32, #tpu.memory_space<vmem>>, vector<16x16x4xf32>
    %59 = vector.shape_cast %58 : vector<16x16x4xf32> to vector<256x4xf32>
    %c0_87 = arith.constant 0 : index
    %c0_88 = arith.constant 0 : index
    %60 = vector.load %arg8[%c0_87, %c0_88] : memref<256x36xf32, #tpu.memory_space<vmem>>, vector<256x4xf32>
    tpu.vector_store %arg8[%c0_87, %c0_88], %59 {strides = array<i32>} : memref<256x36xf32, #tpu.memory_space<vmem>>, vector<256x4xf32>,
    %c0_89 = arith.constant 0 : index
    %c1_90 = arith.constant 1 : index
    %c0_91 = arith.constant 0 : index
    %61 = vector.load %arg7[%c0_89, %c1_90, %c0_91] : memref<18x18x4xf32, #tpu.memory_space<vmem>>, vector<16x16x4xf32>
    %62 = vector.shape_cast %61 : vector<16x16x4xf32> to vector<256x4xf32>
    %c0_92 = arith.constant 0 : index
    %c4_93 = arith.constant 4 : index
    %63 = vector.load %arg8[%c0_92, %c4_93] : memref<256x36xf32, #tpu.memory_space<vmem>>, vector<256x4xf32>
    tpu.vector_store %arg8[%c0_92, %c4_93], %62 {strides = array<i32>} : memref<256x36xf32, #tpu.memory_space<vmem>>, vector<256x4xf32>,
    %c0_94 = arith.constant 0 : index
    %c2_95 = arith.constant 2 : index
    %c0_96 = arith.constant 0 : index
    %64 = vector.load %arg7[%c0_94, %c2_95, %c0_96] : memref<18x18x4xf32, #tpu.memory_space<vmem>>, vector<16x16x4xf32>
    %65 = vector.shape_cast %64 : vector<16x16x4xf32> to vector<256x4xf32>
    %c0_97 = arith.constant 0 : index
    %c8_98 = arith.constant 8 : index
    %66 = vector.load %arg8[%c0_97, %c8_98] : memref<256x36xf32, #tpu.memory_space<vmem>>, vector<256x4xf32>
    tpu.vector_store %arg8[%c0_97, %c8_98], %65 {strides = array<i32>} : memref<256x36xf32, #tpu.memory_space<vmem>>, vector<256x4xf32>,
    %c1_99 = arith.constant 1 : index
    %c0_100 = arith.constant 0 : index
    %c0_101 = arith.constant 0 : index
    %67 = vector.load %arg7[%c1_99, %c0_100, %c0_101] : memref<18x18x4xf32, #tpu.memory_space<vmem>>, vector<16x16x4xf32>
    %68 = vector.shape_cast %67 : vector<16x16x4xf32> to vector<256x4xf32>
    %c0_102 = arith.constant 0 : index
    %c12_103 = arith.constant 12 : index
    %69 = vector.load %arg8[%c0_102, %c12_103] : memref<256x36xf32, #tpu.memory_space<vmem>>, vector<256x4xf32>
    tpu.vector_store %arg8[%c0_102, %c12_103], %68 {strides = array<i32>} : memref<256x36xf32, #tpu.memory_space<vmem>>, vector<256x4xf32>,
    %c1_104 = arith.constant 1 : index
    %c1_105 = arith.constant 1 : index
    %c0_106 = arith.constant 0 : index
    %70 = vector.load %arg7[%c1_104, %c1_105, %c0_106] : memref<18x18x4xf32, #tpu.memory_space<vmem>>, vector<16x16x4xf32>
    %71 = vector.shape_cast %70 : vector<16x16x4xf32> to vector<256x4xf32>
    %c0_107 = arith.constant 0 : index
    %c16_108 = arith.constant 16 : index
    %72 = vector.load %arg8[%c0_107, %c16_108] : memref<256x36xf32, #tpu.memory_space<vmem>>, vector<256x4xf32>
    tpu.vector_store %arg8[%c0_107, %c16_108], %71 {strides = array<i32>} : memref<256x36xf32, #tpu.memory_space<vmem>>, vector<256x4xf32>,
    %c1_109 = arith.constant 1 : index
    %c2_110 = arith.constant 2 : index
    %c0_111 = arith.constant 0 : index
    %73 = vector.load %arg7[%c1_109, %c2_110, %c0_111] : memref<18x18x4xf32, #tpu.memory_space<vmem>>, vector<16x16x4xf32>
    %74 = vector.shape_cast %73 : vector<16x16x4xf32> to vector<256x4xf32>
    %c0_112 = arith.constant 0 : index
    %c20_113 = arith.constant 20 : index
    %75 = vector.load %arg8[%c0_112, %c20_113] : memref<256x36xf32, #tpu.memory_space<vmem>>, vector<256x4xf32>
    tpu.vector_store %arg8[%c0_112, %c20_113], %74 {strides = array<i32>} : memref<256x36xf32, #tpu.memory_space<vmem>>, vector<256x4xf32>,
    %c2_114 = arith.constant 2 : index
    %c0_115 = arith.constant 0 : index
    %c0_116 = arith.constant 0 : index
    %76 = vector.load %arg7[%c2_114, %c0_115, %c0_116] : memref<18x18x4xf32, #tpu.memory_space<vmem>>, vector<16x16x4xf32>
    %77 = vector.shape_cast %76 : vector<16x16x4xf32> to vector<256x4xf32>
    %c0_117 = arith.constant 0 : index
    %c24_118 = arith.constant 24 : index
    %78 = vector.load %arg8[%c0_117, %c24_118] : memref<256x36xf32, #tpu.memory_space<vmem>>, vector<256x4xf32>
    tpu.vector_store %arg8[%c0_117, %c24_118], %77 {strides = array<i32>} : memref<256x36xf32, #tpu.memory_space<vmem>>, vector<256x4xf32>,
    %c2_119 = arith.constant 2 : index
    %c1_120 = arith.constant 1 : index
    %c0_121 = arith.constant 0 : index
    %79 = vector.load %arg7[%c2_119, %c1_120, %c0_121] : memref<18x18x4xf32, #tpu.memory_space<vmem>>, vector<16x16x4xf32>
    %80 = vector.shape_cast %79 : vector<16x16x4xf32> to vector<256x4xf32>
    %c0_122 = arith.constant 0 : index
    %c28_123 = arith.constant 28 : index
    %81 = vector.load %arg8[%c0_122, %c28_123] : memref<256x36xf32, #tpu.memory_space<vmem>>, vector<256x4xf32>
    tpu.vector_store %arg8[%c0_122, %c28_123], %80 {strides = array<i32>} : memref<256x36xf32, #tpu.memory_space<vmem>>, vector<256x4xf32>,
    %c2_124 = arith.constant 2 : index
    %c2_125 = arith.constant 2 : index
    %c0_126 = arith.constant 0 : index
    %82 = vector.load %arg7[%c2_124, %c2_125, %c0_126] : memref<18x18x4xf32, #tpu.memory_space<vmem>>, vector<16x16x4xf32>
    %83 = vector.shape_cast %82 : vector<16x16x4xf32> to vector<256x4xf32>
    %c0_127 = arith.constant 0 : index
    %c32_128 = arith.constant 32 : index
    %84 = vector.load %arg8[%c0_127, %c32_128] : memref<256x36xf32, #tpu.memory_space<vmem>>, vector<256x4xf32>
    tpu.vector_store %arg8[%c0_127, %c32_128], %83 {strides = array<i32>} : memref<256x36xf32, #tpu.memory_space<vmem>>, vector<256x4xf32>,
    %c0_129 = arith.constant 0 : index
    %c0_130 = arith.constant 0 : index
    %85 = vector.load %arg8[%c0_129, %c0_130] : memref<256x36xf32, #tpu.memory_space<vmem>>, vector<256x36xf32>
    %c0_131 = arith.constant 0 : index
    %c0_132 = arith.constant 0 : index
    %86 = vector.load %arg4[%c0_131, %c0_132] : memref<36x4xf32, #tpu.memory_space<vmem>>, vector<36x4xf32>
    %cst_133 = arith.constant dense<0.000000e+00> : vector<256x4xf32>
    %87 = tpu.matmul %85, %86, %cst_133 {dimension_numbers = #tpu.dot_dimension_numbers<[1], [0], [0], [1], [0, 0, 1, 1], [], []>} : vector<256x36xf32>, vector<36x4xf32>, vector<256x4xf32> -> vector<256x4xf32>
    %c0_134 = arith.constant 0 : index
    %c0_135 = arith.constant 0 : index
    %88 = vector.load %arg5[%c0_134, %c0_135] : memref<1x4xf32, #tpu.memory_space<vmem>>, vector<1x4xf32>
    %89 = vector.broadcast %88 : vector<1x4xf32> to vector<256x4xf32>
    %90 = arith.addf %87, %89 : vector<256x4xf32>
    %91 = tpu.transpose %90, [1, 0] : vector<256x4xf32> -> vector<4x256xf32>
    %92 = arith.addf %1, %91 : vector<4x256xf32>
    %c0_136 = arith.constant 0 : index
    %c0_137 = arith.constant 0 : index
    %c0_138 = arith.constant 0 : index
    %93 = vector.load %arg6[%c0_136, %c0_137, %c0_138] : memref<1x4x256xf32, #tpu.memory_space<vmem>>, vector<1x4x256xf32>
    %94 = vector.shape_cast %93 : vector<1x4x256xf32> to vector<4x256xf32>
    %95 = vector.shape_cast %92 : vector<4x256xf32> to vector<1x4x256xf32>
    tpu.vector_store %arg6[%c0_136, %c0_137, %c0_138], %95 {strides = array<i32>} : memref<1x4x256xf32, #tpu.memory_space<vmem>>, vector<1x4x256xf32>,
    return
  }
  func.func @transform_0(%arg0: i32) -> (i32, i32, i32) {
    %c0_i32 = arith.constant 0 : i32
    %c0_i32_0 = arith.constant 0 : i32
    %c0_i32_1 = arith.constant 0 : i32
    return %arg0, %c0_i32, %c0_i32_0 : i32, i32, i32
  }
  func.func @transform_1(%arg0: i32) -> (i32, i32) {
    %c0_i32 = arith.constant 0 : i32
    %c0_i32_0 = arith.constant 0 : i32
    %c0_i32_1 = arith.constant 0 : i32
    return %c0_i32, %c0_i32_0 : i32, i32
  }
  func.func @transform_2(%arg0: i32) -> (i32, i32) {
    %c0_i32 = arith.constant 0 : i32
    %c0_i32_0 = arith.constant 0 : i32
    %c0_i32_1 = arith.constant 0 : i32
    return %c0_i32, %c0_i32_0 : i32, i32
  }
  func.func @transform_3(%arg0: i32) -> (i32, i32) {
    %c0_i32 = arith.constant 0 : i32
    %c0_i32_0 = arith.constant 0 : i32
    %c0_i32_1 = arith.constant 0 : i32
    return %c0_i32, %c0_i32_0 : i32, i32
  }
  func.func @transform_4(%arg0: i32) -> (i32, i32) {
    %c0_i32 = arith.constant 0 : i32
    %c0_i32_0 = arith.constant 0 : i32
    %c0_i32_1 = arith.constant 0 : i32
    return %c0_i32, %c0_i32_0 : i32, i32
  }
  func.func @transform_5(%arg0: i32) -> (i32, i32, i32) {
    %c0_i32 = arith.constant 0 : i32
    %c0_i32_0 = arith.constant 0 : i32
    %c0_i32_1 = arith.constant 0 : i32
    return %arg0, %c0_i32, %c0_i32_0 : i32, i32, i32
  }
}

</mosaic_0001>

<llo_original>
// kernel: tpu_custom_call.1
$region0: #{tpu_custom_call.1}
  #allocation0 [shape = 'u32[]', space=smem, size = 0x4, offset = 0x4, fixed_abs, tag = 'smem constant byte address 0x4 - core index']
  #allocation1 [shape = 'u32[144,128]{1,0:T(1,128)}', space=vmem, size = 0x12000, scoped, tag = 'internal scratch']
  #allocation2 [shape = 'f32[18,18,4]{2,1,0:T(8,128)}', space=vmem, size = 0x36000, scoped, tag = 'scratch operand']
  #allocation3 [shape = 'f32[256,36]{1,0:T(8,128)}', space=vmem, size = 0x20000, scoped, tag = 'scratch operand']
  %s0 = inlined_call_operand.vmem [shape: f32[2,4,256], index: 0, kind: input, shape index: {}]
  %s1 = inlined_call_operand.vmem [shape: f32[36,4], index: 1, kind: input, shape index: {}]
  %s2 = inlined_call_operand.vmem [shape: f32[1,4], index: 2, kind: input, shape index: {}]
  %s3 = inlined_call_operand.vmem [shape: f32[36,4], index: 3, kind: input, shape index: {}]
  %s4 = inlined_call_operand.vmem [shape: f32[1,4], index: 4, kind: input, shape index: {}]
  %s5 = inlined_call_operand.hbm [shape: f32[2,4,256], index: 5, kind: output, shape index: {}]
  %s6 = sld [smem:[#allocation0]]
  $region53: #{tpu_custom_call.1} parent=0
    _
  %s8 = ssub.s32 1, %s6
  %s9 = scalar_select 0, %s8, %s6
  $region1: #{tpu_custom_call.1} parent=0
    #allocation4 [shape = 'u8[8192]{0}', space=vmem, size = 0x2000, scoped, tag = 'output window, operand 0']
    #allocation5 [shape = 's32[2]{0}', space=sflag, size = 0x8, scoped, tag = 'scoped memory for tpu_custom_call.1']
    %10 = vsyncpa [#allocation5], 0
    %s11 = scalar_lea.sflag [#allocation5], 1
    %12 = vsyncpa %s11, 0
    loop: start=0, step=1, limit=4
    $region2: #{tpu_custom_call.1} parent=1 // loop_pre_header
      _
    $region3: #{tpu_custom_call.1} parent=1 // loop_header
      %s14 = sphi 0, %s18
      %p15 = scmp.ge.s32.totalorder %s14, 4
      %s24 = sphi 0, %s26
      %s27 = sphi 0, %s24
      %s28 = sphi 0, %s27
      %s44 = sphi 0, %s28
      %s48 = sphi 0, %s48
      %s50 = sphi 0, %s48
      %s51 = sphi 0, %s50
      %s65 = sphi 0, %s51
      %s69 = sphi 0, %s69
      %s71 = sphi 0, %s69
      %s72 = sphi 0, %s71
      %s86 = sphi 0, %s72
      %s90 = sphi 0, %s90
      %s92 = sphi 0, %s90
      %s93 = sphi 0, %s92
      %s107 = sphi 0, %s93
      %s111 = sphi 0, %s111
      %s113 = sphi 0, %s111
      %s114 = sphi 0, %s113
      %s128 = sphi 0, %s114
      %s134 = sphi 0, %s136
      %s137 = sphi 0, %s134
      %s138 = sphi 0, %s137
      %s154 = sphi 0, %s138
    $region4: #{tpu_custom_call.1} parent=1 // loop_header_branch
      %17 = sbr.rel (%p15) target = $region8
    $region5: #{tpu_custom_call.1} parent=1 // loop_body
      %s19 = ssub.s32 %s14, 1
      %s20 = ssub.s32 %s14, 2
      %s21 = sadd.s32 %s14, 1
      %s22 = ssub.s32 %s14, %s21
      %p23 = scmp.eq.s32.totalorder %s22, 0
      %s25 = sadd.s32 %s24, 1
      %s26 = scalar_select %p23, %s24, %s25
      %p29 = pneg %p23
      %p30 = scmp.eq.s32.totalorder %s14, 1
      %p31 = por %p29, %p30
      %p32 = scmp.ne.s32.totalorder %s24, %s27
      %p33 = scmp.eq.s32.totalorder %s14, 0
      %p34 = por %p32, %p33
      %p35 = scmp.ne.s32.totalorder %s24, %s27
      %p36 = scmp.eq.s32.totalorder %s19, 1
      %p37 = por %p35, %p36
      %p38 = scmp.ne.s32.totalorder %s27, %s28
      %p39 = scmp.eq.s32.totalorder %s19, 0
      %p40 = por %p38, %p39
      %p41 = scmp.ne.s32.totalorder %s27, %s28
      %p42 = scmp.eq.s32.totalorder %s20, 1
      %p43 = por %p41, %p42
      %p45 = scmp.ne.s32.totalorder %s28, %s44
      %p46 = scmp.eq.s32.totalorder %s20, 0
      %p47 = por %p45, %p46
      %s49 = sadd.s32 %s48, 1
      %p52 = scmp.eq.s32.totalorder %s14, 1
      %p53 = scmp.ne.s32.totalorder %s48, %s50
      %p54 = scmp.eq.s32.totalorder %s14, 0
      %p55 = por %p53, %p54
      %p56 = scmp.ne.s32.totalorder %s48, %s50
      %p57 = scmp.eq.s32.totalorder %s19, 1
      %p58 = por %p56, %p57
      %p59 = scmp.ne.s32.totalorder %s50, %s51
      %p60 = scmp.eq.s32.totalorder %s19, 0
      %p61 = por %p59, %p60
      %p62 = scmp.ne.s32.totalorder %s50, %s51
      %p63 = scmp.eq.s32.totalorder %s20, 1
      %p64 = por %p62, %p63
      %p66 = scmp.ne.s32.totalorder %s51, %s65
      %p67 = scmp.eq.s32.totalorder %s20, 0
      %p68 = por %p66, %p67
      %s70 = sadd.s32 %s69, 1
      %p73 = scmp.eq.s32.totalorder %s14, 1
      %p74 = scmp.ne.s32.totalorder %s69, %s71
      %p75 = scmp.eq.s32.totalorder %s14, 0
      %p76 = por %p74, %p75
      %p77 = scmp.ne.s32.totalorder %s69, %s71
      %p78 = scmp.eq.s32.totalorder %s19, 1
      %p79 = por %p77, %p78
      %p80 = scmp.ne.s32.totalorder %s71, %s72
      %p81 = scmp.eq.s32.totalorder %s19, 0
      %p82 = por %p80, %p81
      %p83 = scmp.ne.s32.totalorder %s71, %s72
      %p84 = scmp.eq.s32.totalorder %s20, 1
      %p85 = por %p83, %p84
      %p87 = scmp.ne.s32.totalorder %s72, %s86
      %p88 = scmp.eq.s32.totalorder %s20, 0
      %p89 = por %p87, %p88
      %s91 = sadd.s32 %s90, 1
      %p94 = scmp.eq.s32.totalorder %s14, 1
      %p95 = scmp.ne.s32.totalorder %s90, %s92
      %p96 = scmp.eq.s32.totalorder %s14, 0
      %p97 = por %p95, %p96
      %p98 = scmp.ne.s32.totalorder %s90, %s92
      %p99 = scmp.eq.s32.totalorder %s19, 1
      %p100 = por %p98, %p99
      %p101 = scmp.ne.s32.totalorder %s92, %s93
      %p102 = scmp.eq.s32.totalorder %s19, 0
      %p103 = por %p101, %p102
      %p104 = scmp.ne.s32.totalorder %s92, %s93
      %p105 = scmp.eq.s32.totalorder %s20, 1
      %p106 = por %p104, %p105
      %p108 = scmp.ne.s32.totalorder %s93, %s107
      %p109 = scmp.eq.s32.totalorder %s20, 0
      %p110 = por %p108, %p109
      %s112 = sadd.s32 %s111, 1
      %p115 = scmp.eq.s32.totalorder %s14, 1
      %p116 = scmp.ne.s32.totalorder %s111, %s113
      %p117 = scmp.eq.s32.totalorder %s14, 0
      %p118 = por %p116, %p117
      %p119 = scmp.ne.s32.totalorder %s111, %s113
      %p120 = scmp.eq.s32.totalorder %s19, 1
      %p121 = por %p119, %p120
      %p122 = scmp.ne.s32.totalorder %s113, %s114
      %p123 = scmp.eq.s32.totalorder %s19, 0
      %p124 = por %p122, %p123
      %p125 = scmp.ne.s32.totalorder %s113, %s114
      %p126 = scmp.eq.s32.totalorder %s20, 1
      %p127 = por %p125, %p126
      %p129 = scmp.ne.s32.totalorder %s114, %s128
      %p130 = scmp.eq.s32.totalorder %s20, 0
      %p131 = por %p129, %p130
      %s132 = ssub.s32 %s14, %s21
      %p133 = scmp.eq.s32.totalorder %s132, 0
      %s135 = sadd.s32 %s134, 1
      %s136 = scalar_select %p133, %s134, %s135
      %p139 = pneg %p133
      %p140 = scmp.eq.s32.totalorder %s14, 1
      %p141 = por %p139, %p140
      %p142 = scmp.ne.s32.totalorder %s134, %s137
      %p143 = scmp.eq.s32.totalorder %s14, 0
      %p144 = por %p142, %p143
      %p145 = scmp.ne.s32.totalorder %s134, %s137
      %p146 = scmp.eq.s32.totalorder %s19, 1
      %p147 = por %p145, %p146
      %p148 = scmp.ne.s32.totalorder %s137, %s138
      %p149 = scmp.eq.s32.totalorder %s19, 0
      %p150 = por %p148, %p149
      %p151 = scmp.ne.s32.totalorder %s137, %s138
      %p152 = scmp.eq.s32.totalorder %s20, 1
      %p153 = por %p151, %p152
      %p155 = scmp.ne.s32.totalorder %s138, %s154
      %p156 = scmp.eq.s32.totalorder %s20, 0
      %p157 = por %p155, %p156
      %p158 = scmp.le.s32.totalorder 1, %s14
      %p159 = scmp.lt.s32.totalorder %s14, 3
      %p160 = pnand %p158, %p159
      %p161 = pneg %p160
      // Predicated region
      $region9: #{tpu_custom_call.1} parent=5 // pred_check
        _
      $region10: #{tpu_custom_call.1} parent=5 // pred_check_branch
        %163 = sbr.rel (%p160) target = $region12
      $region11: #{tpu_custom_call.1} parent=5 // pred_region
        %s164 = ssub.s32 %s14, 1
        // Predicated region
        $region13: #{tpu_custom_call.1} parent=11 // pred_check
          %p165 = pneg %p61
        $region14: #{tpu_custom_call.1} parent=11 // pred_check_branch
          %167 = sbr.rel (%p165) target = $region16
        $region15: #{tpu_custom_call.1} parent=11 // pred_region
          _
        $region16: #{tpu_custom_call.1} parent=11 // pred_fallthru
          _
        // Predicated region
        $region17: #{tpu_custom_call.1} parent=11 // pred_check
          %p168 = pneg %p82
        $region18: #{tpu_custom_call.1} parent=11 // pred_check_branch
          %170 = sbr.rel (%p168) target = $region20
        $region19: #{tpu_custom_call.1} parent=11 // pred_region
          _
        $region20: #{tpu_custom_call.1} parent=11 // pred_fallthru
          _
        // Predicated region
        $region21: #{tpu_custom_call.1} parent=11 // pred_check
          %p171 = pneg %p103
        $region22: #{tpu_custom_call.1} parent=11 // pred_check_branch
          %173 = sbr.rel (%p171) target = $region24
        $region23: #{tpu_custom_call.1} parent=11 // pred_region
          _
        $region24: #{tpu_custom_call.1} parent=11 // pred_fallthru
          _
        // Predicated region
        $region25: #{tpu_custom_call.1} parent=11 // pred_check
          %p174 = pneg %p124
        $region26: #{tpu_custom_call.1} parent=11 // pred_check_branch
          %176 = sbr.rel (%p174) target = $region28
        $region27: #{tpu_custom_call.1} parent=11 // pred_region
          _
        $region28: #{tpu_custom_call.1} parent=11 // pred_fallthru
          _
      $region12: #{tpu_custom_call.1} parent=5 // pred_fallthru
        _
      %p177 = scmp.lt.s32.totalorder %s14, 2
      // Predicated region
      $region29: #{tpu_custom_call.1} parent=5 // pred_check
        %p178 = pneg %p177
      $region30: #{tpu_custom_call.1} parent=5 // pred_check_branch
        %180 = sbr.rel (%p178) target = $region32
      $region31: #{tpu_custom_call.1} parent=5 // pred_region
        // Predicated region
        $region33: #{tpu_custom_call.1} parent=31 // pred_check
          %p181 = pneg %p34
        $region34: #{tpu_custom_call.1} parent=31 // pred_check_branch
          %183 = sbr.rel (%p181) target = $region36
        $region35: #{tpu_custom_call.1} parent=31 // pred_region
          %p184 = scmp.lt.s32.totalorder %s14, 1
          %s185 = scalar_select %p184, %s14, 1
          %s186 = smul.addr %s185, 2
          %s187 = smul.addr %s186, 4
          %s188 = scalar_lea.vmem %s0, %s187
        $region36: #{tpu_custom_call.1} parent=31 // pred_fallthru
          _
      $region32: #{tpu_custom_call.1} parent=5 // pred_fallthru
        _
      %p189 = scmp.le.s32.totalorder 1, %s14
      %p190 = scmp.lt.s32.totalorder %s14, 3
      %p191 = pnand %p189, %p190
      %p192 = pneg %p191
      // Predicated region
      $region37: #{tpu_custom_call.1} parent=5 // pred_check
        _
      $region38: #{tpu_custom_call.1} parent=5 // pred_check_branch
        %194 = sbr.rel (%p191) target = $region40
      $region39: #{tpu_custom_call.1} parent=5 // pred_region
        %s195 = ssub.s32 %s14, 1
        %p196 = scmp.lt.s32.totalorder %s19, 1
        %s197 = scalar_select %p196, %s19, 1
        %s198 = smul.addr %s197, 2
        %s199 = smul.addr %s198, 4
        %s200 = scalar_lea.vmem %s0, %s199
        %p201 = pneg %p40
        %p202 = pneg %p37
        %p203 = pneg %p61
        %p204 = pneg %p58
        %p205 = pneg %p82
        %p206 = pneg %p79
        %p207 = pneg %p103
        %p208 = pneg %p100
        %p209 = pneg %p124
        %p210 = pneg %p121
        %p211 = pneg %p150
        %p212 = pneg %p147
        %s213 = sand.u32 %s137, 1
        %s214 = scalar_lea.sflag [#allocation5], %s213
        %s215 = sand.u32 %s137, 1
        %s216 = smul.addr %s215, 8
        %s217 = scalar_lea.vmem [#allocation4], %s216
        %p218 = scmp.lt.s32.totalorder %s19, 1
        %s219 = scalar_select %p218, %s19, 1
        %s220 = smul.addr %s219, 2
        %s221 = smul.addr %s220, 4
        %s222 = scalar_lea.vmem %s0, %s221
        %v223 = vld [vmem:[%s222] sm:$0xff]
        %v225 = vcombine.high %v223, %v223
        %227 = vxpose.xlu0.b32.start [1/16] %v223, 128
        %228 = vxpose.xlu0.b32.cont [2/16] 0.0, 128
        %229 = vxpose.xlu0.b32.cont [3/16] 0.0, 128
        %230 = vxpose.xlu0.b32.cont [4/16] 0.0, 128
        %231 = vxpose.xlu0.b32.cont [5/16] 0.0, 128
        %232 = vxpose.xlu0.b32.cont [6/16] 0.0, 128
        %233 = vxpose.xlu0.b32.cont [7/16] 0.0, 128
        %234 = vxpose.xlu0.b32.cont [8/16] 0.0, 128
        %235 = vxpose.xlu0.b32.cont [9/16] 0.0, 128
        %236 = vxpose.xlu0.b32.cont [10/16] 0.0, 128
        %237 = vxpose.xlu0.b32.cont [11/16] 0.0, 128
        %238 = vxpose.xlu0.b32.cont [12/16] 0.0, 128
        %239 = vxpose.xlu0.b32.cont [13/16] 0.0, 128
        %240 = vxpose.xlu0.b32.cont [14/16] 0.0, 128
        %241 = vxpose.xlu0.b32.cont [15/16] 0.0, 128
        %242 = vxpose.xlu0.b32.end [16/16] 0.0, 128
        %v243 = vpop.trf.xlu0
        %v244 = vpop.trf.xlu0
        %v245 = vpop.trf.xlu0
        %v246 = vpop.trf.xlu0
        %v247 = vpop.trf.xlu0
        %v248 = vpop.trf.xlu0
        %v249 = vpop.trf.xlu0
        %v250 = vpop.trf.xlu0
        %v251 = vpop.trf.xlu0
        %v252 = vpop.trf.xlu0
        %v253 = vpop.trf.xlu0
        %v254 = vpop.trf.xlu0
        %v255 = vpop.trf.xlu0
        %v256 = vpop.trf.xlu0
        %v257 = vpop.trf.xlu0
        %v258 = vpop.trf.xlu0
        %259 = vxpose.xlu0.b32.start [1/16] %v225, 128
        %260 = vxpose.xlu0.b32.cont [2/16] 0.0, 128
        %261 = vxpose.xlu0.b32.cont [3/16] 0.0, 128
        %262 = vxpose.xlu0.b32.cont [4/16] 0.0, 128
        %263 = vxpose.xlu0.b32.cont [5/16] 0.0, 128
        %264 = vxpose.xlu0.b32.cont [6/16] 0.0, 128
        %265 = vxpose.xlu0.b32.cont [7/16] 0.0, 128
        %266 = vxpose.xlu0.b32.cont [8/16] 0.0, 128
        %267 = vxpose.xlu0.b32.cont [9/16] 0.0, 128
        %268 = vxpose.xlu0.b32.cont [10/16] 0.0, 128
        %269 = vxpose.xlu0.b32.cont [11/16] 0.0, 128
        %270 = vxpose.xlu0.b32.cont [12/16] 0.0, 128
        %271 = vxpose.xlu0.b32.cont [13/16] 0.0, 128
        %272 = vxpose.xlu0.b32.cont [14/16] 0.0, 128
        %273 = vxpose.xlu0.b32.cont [15/16] 0.0, 128
        %274 = vxpose.xlu0.b32.end [16/16] 0.0, 128
        %v275 = vpop.trf.xlu0
        %v276 = vpop.trf.xlu0
        %v277 = vpop.trf.xlu0
        %v278 = vpop.trf.xlu0
        %v279 = vpop.trf.xlu0
        %v280 = vpop.trf.xlu0
        %v281 = vpop.trf.xlu0
        %v282 = vpop.trf.xlu0
        %v283 = vpop.trf.xlu0
        %v284 = vpop.trf.xlu0
        %v285 = vpop.trf.xlu0
        %v286 = vpop.trf.xlu0
        %v287 = vpop.trf.xlu0
        %v288 = vpop.trf.xlu0
        %v289 = vpop.trf.xlu0
        %v290 = vpop.trf.xlu0
        %s291 = scalar_lea.vmem [#allocation2], 24
        %vm292 = vcmask 31744
        %293 = vst.msk [vmem:[%s291 + $0x1] sm:$0xff] %vm292, %v243
        %294 = vst.msk [vmem:[%s291 + $0x9] sm:$0xff] %vm292, %v244
        %295 = vst.msk [vmem:[%s291 + $0x19] sm:$0xff] %vm292, %v245
        %296 = vst.msk [vmem:[%s291 + $0x21] sm:$0xff] %vm292, %v246
        %297 = vst.msk [vmem:[%s291 + $0x31] sm:$0xff] %vm292, %v247
        %298 = vst.msk [vmem:[%s291 + $0x39] sm:$0xff] %vm292, %v248
        %299 = vst.msk [vmem:[%s291 + $0x49] sm:$0xff] %vm292, %v249
        %300 = vst.msk [vmem:[%s291 + $0x51] sm:$0xff] %vm292, %v250
        %301 = vst.msk [vmem:[%s291 + $0x61] sm:$0xff] %vm292, %v251
        %302 = vst.msk [vmem:[%s291 + $0x69] sm:$0xff] %vm292, %v252
        %303 = vst.msk [vmem:[%s291 + $0x79] sm:$0xff] %vm292, %v253
        %304 = vst.msk [vmem:[%s291 + $0x81] sm:$0xff] %vm292, %v254
        %305 = vst.msk [vmem:[%s291 + $0x91] sm:$0xff] %vm292, %v255
        %306 = vst.msk [vmem:[%s291 + $0x99] sm:$0xff] %vm292, %v256
        %307 = vst.msk [vmem:[%s291 + $0xa9] sm:$0xff] %vm292, %v257
        %308 = vst.msk [vmem:[%s291 + $0xb1] sm:$0xff] %vm292, %v258
        %309 = vst.msk [vmem:[%s291 + $0xc1] sm:$0xff] %vm292, %v275
        %310 = vst.msk [vmem:[%s291 + $0xc9] sm:$0xff] %vm292, %v276
        %311 = vst.msk [vmem:[%s291 + $0xd9] sm:$0xff] %vm292, %v277
        %312 = vst.msk [vmem:[%s291 + $0xe1] sm:$0xff] %vm292, %v278
        %313 = vst.msk [vmem:[%s291 + $0xf1] sm:$0xff] %vm292, %v279
        %314 = vst.msk [vmem:[%s291 + $0xf9] sm:$0xff] %vm292, %v280
        %315 = vst.msk [vmem:[%s291 + $0x109] sm:$0xff] %vm292, %v281
        %316 = vst.msk [vmem:[%s291 + $0x111] sm:$0xff] %vm292, %v282
        %317 = vst.msk [vmem:[%s291 + $0x121] sm:$0xff] %vm292, %v283
        %318 = vst.msk [vmem:[%s291 + $0x129] sm:$0xff] %vm292, %v284
        %319 = vst.msk [vmem:[%s291 + $0x139] sm:$0xff] %vm292, %v285
        %320 = vst.msk [vmem:[%s291 + $0x141] sm:$0xff] %vm292, %v286
        %321 = vst.msk [vmem:[%s291 + $0x151] sm:$0xff] %vm292, %v287
        %322 = vst.msk [vmem:[%s291 + $0x159] sm:$0xff] %vm292, %v288
        %323 = vst.msk [vmem:[%s291 + $0x169] sm:$0xff] %vm292, %v289
        %324 = vst.msk [vmem:[%s291 + $0x171] sm:$0xff] %vm292, %v290
        %325 = vst.msk [vmem:[#allocation2 + $0x1] sm:$0xff] %vm292, %v245
        %326 = vst.msk [vmem:[#allocation2 + $0x9] sm:$0xff] %vm292, %v246
        %s327 = scalar_lea.vmem [#allocation2], 408
        %328 = vst.msk [vmem:[%s327 + $0x1] sm:$0xff] %vm292, %v287
        %329 = vst.msk [vmem:[%s327 + $0x9] sm:$0xff] %vm292, %v288
        %v330 = vld [vmem:[#allocation2 + $0x2] sm:$0x1]
        %v331 = vld [vmem:[#allocation2 + $0x1a] sm:$0x1]
        %v332 = vld [vmem:[#allocation2 + $0x32] sm:$0x1]
        %v333 = vld [vmem:[#allocation2 + $0x4a] sm:$0x1]
        %v334 = vld [vmem:[#allocation2 + $0x62] sm:$0x1]
        %v335 = vld [vmem:[#allocation2 + $0x7a] sm:$0x1]
        %v336 = vld [vmem:[#allocation2 + $0x92] sm:$0x1]
        %v337 = vld [vmem:[#allocation2 + $0xaa] sm:$0x1]
        %v338 = vld [vmem:[#allocation2 + $0xc2] sm:$0x1]
        %v339 = vld [vmem:[#allocation2 + $0xda] sm:$0x1]
        %v340 = vld [vmem:[#allocation2 + $0xf2] sm:$0x1]
        %v341 = vld [vmem:[#allocation2 + $0x10a] sm:$0x1]
        %v342 = vld [vmem:[#allocation2 + $0x122] sm:$0x1]
        %v343 = vld [vmem:[#allocation2 + $0x13a] sm:$0x1]
        %v344 = vld [vmem:[#allocation2 + $0x152] sm:$0x1]
        %v345 = vld [vmem:[#allocation2 + $0x16a] sm:$0x1]
        %v346 = vld [vmem:[#allocation2 + $0x182] sm:$0x1]
        %v347 = vld [vmem:[#allocation2 + $0x19a] sm:$0x1]
        %vm348 = vcmask 24576
        %349 = vst.msk [vmem:[#allocation2] sm:$0x1] %vm348, %v330
        %350 = vst.msk [vmem:[#allocation2 + $0x18] sm:$0x1] %vm348, %v331
        %351 = vst.msk [vmem:[#allocation2 + $0x30] sm:$0x1] %vm348, %v332
        %352 = vst.msk [vmem:[#allocation2 + $0x48] sm:$0x1] %vm348, %v333
        %353 = vst.msk [vmem:[#allocation2 + $0x60] sm:$0x1] %vm348, %v334
        %354 = vst.msk [vmem:[#allocation2 + $0x78] sm:$0x1] %vm348, %v335
        %355 = vst.msk [vmem:[#allocation2 + $0x90] sm:$0x1] %vm348, %v336
        %356 = vst.msk [vmem:[#allocation2 + $0xa8] sm:$0x1] %vm348, %v337
        %357 = vst.msk [vmem:[#allocation2 + $0xc0] sm:$0x1] %vm348, %v338
        %358 = vst.msk [vmem:[#allocation2 + $0xd8] sm:$0x1] %vm348, %v339
        %359 = vst.msk [vmem:[#allocation2 + $0xf0] sm:$0x1] %vm348, %v340
        %360 = vst.msk [vmem:[#allocation2 + $0x108] sm:$0x1] %vm348, %v341
        %361 = vst.msk [vmem:[#allocation2 + $0x120] sm:$0x1] %vm348, %v342
        %362 = vst.msk [vmem:[#allocation2 + $0x138] sm:$0x1] %vm348, %v343
        %363 = vst.msk [vmem:[#allocation2 + $0x150] sm:$0x1] %vm348, %v344
        %364 = vst.msk [vmem:[#allocation2 + $0x168] sm:$0x1] %vm348, %v345
        %365 = vst.msk [vmem:[#allocation2 + $0x180] sm:$0x1] %vm348, %v346
        %366 = vst.msk [vmem:[#allocation2 + $0x198] sm:$0x1] %vm348, %v347
        %v367 = vld [vmem:[#allocation2 + $0xf] sm:$0x1]
        %v368 = vld [vmem:[#allocation2 + $0x27] sm:$0x1]
        %v369 = vld [vmem:[#allocation2 + $0x3f] sm:$0x1]
        %v370 = vld [vmem:[#allocation2 + $0x57] sm:$0x1]
        %v371 = vld [vmem:[#allocation2 + $0x6f] sm:$0x1]
        %v372 = vld [vmem:[#allocation2 + $0x87] sm:$0x1]
        %v373 = vld [vmem:[#allocation2 + $0x9f] sm:$0x1]
        %v374 = vld [vmem:[#allocation2 + $0xb7] sm:$0x1]
        %v375 = vld [vmem:[#allocation2 + $0xcf] sm:$0x1]
        %v376 = vld [vmem:[#allocation2 + $0xe7] sm:$0x1]
        %v377 = vld [vmem:[#allocation2 + $0xff] sm:$0x1]
        %v378 = vld [vmem:[#allocation2 + $0x117] sm:$0x1]
        %v379 = vld [vmem:[#allocation2 + $0x12f] sm:$0x1]
        %v380 = vld [vmem:[#allocation2 + $0x147] sm:$0x1]
        %v381 = vld [vmem:[#allocation2 + $0x15f] sm:$0x1]
        %v382 = vld [vmem:[#allocation2 + $0x177] sm:$0x1]
        %v383 = vld [vmem:[#allocation2 + $0x18f] sm:$0x1]
        %v384 = vld [vmem:[#allocation2 + $0x1a7] sm:$0x1]
        %385 = vst.msk [vmem:[#allocation2 + $0x11] sm:$0x1] %vm348, %v367
        %386 = vst.msk [vmem:[#allocation2 + $0x29] sm:$0x1] %vm348, %v368
        %387 = vst.msk [vmem:[#allocation2 + $0x41] sm:$0x1] %vm348, %v369
        %388 = vst.msk [vmem:[#allocation2 + $0x59] sm:$0x1] %vm348, %v370
        %389 = vst.msk [vmem:[#allocation2 + $0x71] sm:$0x1] %vm348, %v371
        %390 = vst.msk [vmem:[#allocation2 + $0x89] sm:$0x1] %vm348, %v372
        %391 = vst.msk [vmem:[#allocation2 + $0xa1] sm:$0x1] %vm348, %v373
        %392 = vst.msk [vmem:[#allocation2 + $0xb9] sm:$0x1] %vm348, %v374
        %393 = vst.msk [vmem:[#allocation2 + $0xd1] sm:$0x1] %vm348, %v375
        %394 = vst.msk [vmem:[#allocation2 + $0xe9] sm:$0x1] %vm348, %v376
        %395 = vst.msk [vmem:[#allocation2 + $0x101] sm:$0x1] %vm348, %v377
        %396 = vst.msk [vmem:[#allocation2 + $0x119] sm:$0x1] %vm348, %v378
        %397 = vst.msk [vmem:[#allocation2 + $0x131] sm:$0x1] %vm348, %v379
        %398 = vst.msk [vmem:[#allocation2 + $0x149] sm:$0x1] %vm348, %v380
        %399 = vst.msk [vmem:[#allocation2 + $0x161] sm:$0x1] %vm348, %v381
        %400 = vst.msk [vmem:[#allocation2 + $0x179] sm:$0x1] %vm348, %v382
        %401 = vst.msk [vmem:[#allocation2 + $0x191] sm:$0x1] %vm348, %v383
        %402 = vst.msk [vmem:[#allocation2 + $0x1a9] sm:$0x1] %vm348, %v384
        %v403 = vld [vmem:[#allocation2] sm:$0xff]
        %v404 = vld [vmem:[#allocation2 + $0x8] sm:$0xff]
        %v405 = vld [vmem:[#allocation2 + $0x18] sm:$0xff]
        %v406 = vld [vmem:[#allocation2 + $0x20] sm:$0xff]
        %v407 = vld [vmem:[#allocation2 + $0x30] sm:$0xff]
        %v408 = vld [vmem:[#allocation2 + $0x38] sm:$0xff]
        %v409 = vld [vmem:[#allocation2 + $0x48] sm:$0xff]
        %v410 = vld [vmem:[#allocation2 + $0x50] sm:$0xff]
        %v411 = vld [vmem:[#allocation2 + $0x60] sm:$0xff]
        %v412 = vld [vmem:[#allocation2 + $0x68] sm:$0xff]
        %v413 = vld [vmem:[#allocation2 + $0x78] sm:$0xff]
        %v414 = vld [vmem:[#allocation2 + $0x80] sm:$0xff]
        %v415 = vld [vmem:[#allocation2 + $0x90] sm:$0xff]
        %v416 = vld [vmem:[#allocation2 + $0x98] sm:$0xff]
        %v417 = vld [vmem:[#allocation2 + $0xa8] sm:$0xff]
        %v418 = vld [vmem:[#allocation2 + $0xb0] sm:$0xff]
        %v419 = vld [vmem:[#allocation2 + $0xc0] sm:$0xff]
        %v420 = vld [vmem:[#allocation2 + $0xc8] sm:$0xff]
        %v421 = vld [vmem:[#allocation2 + $0xd8] sm:$0xff]
        %v422 = vld [vmem:[#allocation2 + $0xe0] sm:$0xff]
        %v423 = vld [vmem:[#allocation2 + $0xf0] sm:$0xff]
        %v424 = vld [vmem:[#allocation2 + $0xf8] sm:$0xff]
        %v425 = vld [vmem:[#allocation2 + $0x108] sm:$0xff]
        %v426 = vld [vmem:[#allocation2 + $0x110] sm:$0xff]
        %v427 = vld [vmem:[#allocation2 + $0x120] sm:$0xff]
        %v428 = vld [vmem:[#allocation2 + $0x128] sm:$0xff]
        %v429 = vld [vmem:[#allocation2 + $0x138] sm:$0xff]
        %v430 = vld [vmem:[#allocation2 + $0x140] sm:$0xff]
        %v431 = vld [vmem:[#allocation2 + $0x150] sm:$0xff]
        %v432 = vld [vmem:[#allocation2 + $0x158] sm:$0xff]
        %v433 = vld [vmem:[#allocation2 + $0x168] sm:$0xff]
        %v434 = vld [vmem:[#allocation2 + $0x170] sm:$0xff]
        %435 = vst.msk [vmem:[#allocation3] sm:$0xff] %vm292, %v403
        %436 = vst.msk [vmem:[#allocation3 + $0x8] sm:$0xff] %vm292, %v404
        %437 = vst.msk [vmem:[#allocation3 + $0x10] sm:$0xff] %vm292, %v405
        %438 = vst.msk [vmem:[#allocation3 + $0x18] sm:$0xff] %vm292, %v406
        %439 = vst.msk [vmem:[#allocation3 + $0x20] sm:$0xff] %vm292, %v407
        %440 = vst.msk [vmem:[#allocation3 + $0x28] sm:$0xff] %vm292, %v408
        %441 = vst.msk [vmem:[#allocation3 + $0x30] sm:$0xff] %vm292, %v409
        %442 = vst.msk [vmem:[#allocation3 + $0x38] sm:$0xff] %vm292, %v410
        %443 = vst.msk [vmem:[#allocation3 + $0x40] sm:$0xff] %vm292, %v411
        %444 = vst.msk [vmem:[#allocation3 + $0x48] sm:$0xff] %vm292, %v412
        %445 = vst.msk [vmem:[#allocation3 + $0x50] sm:$0xff] %vm292, %v413
        %446 = vst.msk [vmem:[#allocation3 + $0x58] sm:$0xff] %vm292, %v414
        %447 = vst.msk [vmem:[#allocation3 + $0x60] sm:$0xff] %vm292, %v415
        %448 = vst.msk [vmem:[#allocation3 + $0x68] sm:$0xff] %vm292, %v416
        %449 = vst.msk [vmem:[#allocation3 + $0x70] sm:$0xff] %vm292, %v417
        %450 = vst.msk [vmem:[#allocation3 + $0x78] sm:$0xff] %vm292, %v418
        %451 = vst.msk [vmem:[#allocation3 + $0x80] sm:$0xff] %vm292, %v419
        %452 = vst.msk [vmem:[#allocation3 + $0x88] sm:$0xff] %vm292, %v420
        %453 = vst.msk [vmem:[#allocation3 + $0x90] sm:$0xff] %vm292, %v421
        %454 = vst.msk [vmem:[#allocation3 + $0x98] sm:$0xff] %vm292, %v422
        %455 = vst.msk [vmem:[#allocation3 + $0xa0] sm:$0xff] %vm292, %v423
        %456 = vst.msk [vmem:[#allocation3 + $0xa8] sm:$0xff] %vm292, %v424
        %457 = vst.msk [vmem:[#allocation3 + $0xb0] sm:$0xff] %vm292, %v425
        %458 = vst.msk [vmem:[#allocation3 + $0xb8] sm:$0xff] %vm292, %v426
        %459 = vst.msk [vmem:[#allocation3 + $0xc0] sm:$0xff] %vm292, %v427
        %460 = vst.msk [vmem:[#allocation3 + $0xc8] sm:$0xff] %vm292, %v428
        %461 = vst.msk [vmem:[#allocation3 + $0xd0] sm:$0xff] %vm292, %v429
        %462 = vst.msk [vmem:[#allocation3 + $0xd8] sm:$0xff] %vm292, %v430
        %463 = vst.msk [vmem:[#allocation3 + $0xe0] sm:$0xff] %vm292, %v431
        %464 = vst.msk [vmem:[#allocation3 + $0xe8] sm:$0xff] %vm292, %v432
        %465 = vst.msk [vmem:[#allocation3 + $0xf0] sm:$0xff] %vm292, %v433
        %466 = vst.msk [vmem:[#allocation3 + $0xf8] sm:$0xff] %vm292, %v434
        %v467 = vld [vmem:[#allocation2 + $0x1] sm:$0xff]
        %v468 = vld [vmem:[#allocation2 + $0x9] sm:$0xff]
        %v469 = vld [vmem:[#allocation2 + $0x19] sm:$0xff]
        %v470 = vld [vmem:[#allocation2 + $0x21] sm:$0xff]
        %v471 = vld [vmem:[#allocation2 + $0x31] sm:$0xff]
        %v472 = vld [vmem:[#allocation2 + $0x39] sm:$0xff]
        %v473 = vld [vmem:[#allocation2 + $0x49] sm:$0xff]
        %v474 = vld [vmem:[#allocation2 + $0x51] sm:$0xff]
        %v475 = vld [vmem:[#allocation2 + $0x61] sm:$0xff]
        %v476 = vld [vmem:[#allocation2 + $0x69] sm:$0xff]
        %v477 = vld [vmem:[#allocation2 + $0x79] sm:$0xff]
        %v478 = vld [vmem:[#allocation2 + $0x81] sm:$0xff]
        %v479 = vld [vmem:[#allocation2 + $0x91] sm:$0xff]
        %v480 = vld [vmem:[#allocation2 + $0x99] sm:$0xff]
        %v481 = vld [vmem:[#allocation2 + $0xa9] sm:$0xff]
        %v482 = vld [vmem:[#allocation2 + $0xb1] sm:$0xff]
        %v483 = vld [vmem:[#allocation2 + $0xc1] sm:$0xff]
        %v484 = vld [vmem:[#allocation2 + $0xc9] sm:$0xff]
        %v485 = vld [vmem:[#allocation2 + $0xd9] sm:$0xff]
        %v486 = vld [vmem:[#allocation2 + $0xe1] sm:$0xff]
        %v487 = vld [vmem:[#allocation2 + $0xf1] sm:$0xff]
        %v488 = vld [vmem:[#allocation2 + $0xf9] sm:$0xff]
        %v489 = vld [vmem:[#allocation2 + $0x109] sm:$0xff]
        %v490 = vld [vmem:[#allocation2 + $0x111] sm:$0xff]
        %v491 = vld [vmem:[#allocation2 + $0x121] sm:$0xff]
        %v492 = vld [vmem:[#allocation2 + $0x129] sm:$0xff]
        %v493 = vld [vmem:[#allocation2 + $0x139] sm:$0xff]
        %v494 = vld [vmem:[#allocation2 + $0x141] sm:$0xff]
        %v495 = vld [vmem:[#allocation2 + $0x151] sm:$0xff]
        %v496 = vld [vmem:[#allocation2 + $0x159] sm:$0xff]
        %v497 = vld [vmem:[#allocation2 + $0x169] sm:$0xff]
        %v498 = vld [vmem:[#allocation2 + $0x171] sm:$0xff]
        %531 = vrot.lane.b32.xlu0 %v467, 4
        %v532 = vpop.permute.xlu0 %531
        %533 = vrot.lane.b32.xlu0 %v468, 4
        %v534 = vpop.permute.xlu0 %533
        %535 = vrot.lane.b32.xlu0 %v469, 4
        %v536 = vpop.permute.xlu0 %535
        %537 = vrot.lane.b32.xlu0 %v470, 4
        %v538 = vpop.permute.xlu0 %537
        %539 = vrot.lane.b32.xlu0 %v471, 4
        %v540 = vpop.permute.xlu0 %539
        %541 = vrot.lane.b32.xlu0 %v472, 4
        %v542 = vpop.permute.xlu0 %541
        %543 = vrot.lane.b32.xlu0 %v473, 4
        %v544 = vpop.permute.xlu0 %543
        %545 = vrot.lane.b32.xlu0 %v474, 4
        %v546 = vpop.permute.xlu0 %545
        %547 = vrot.lane.b32.xlu0 %v475, 4
        %v548 = vpop.permute.xlu0 %547
        %549 = vrot.lane.b32.xlu0 %v476, 4
        %v550 = vpop.permute.xlu0 %549
        %551 = vrot.lane.b32.xlu0 %v477, 4
        %v552 = vpop.permute.xlu0 %551
        %553 = vrot.lane.b32.xlu0 %v478, 4
        %v554 = vpop.permute.xlu0 %553
        %555 = vrot.lane.b32.xlu0 %v479, 4
        %v556 = vpop.permute.xlu0 %555
        %557 = vrot.lane.b32.xlu0 %v480, 4
        %v558 = vpop.permute.xlu0 %557
        %559 = vrot.lane.b32.xlu0 %v481, 4
        %v560 = vpop.permute.xlu0 %559
        %561 = vrot.lane.b32.xlu0 %v482, 4
        %v562 = vpop.permute.xlu0 %561
        %563 = vrot.lane.b32.xlu0 %v483, 4
        %v564 = vpop.permute.xlu0 %563
        %565 = vrot.lane.b32.xlu0 %v484, 4
        %v566 = vpop.permute.xlu0 %565
        %567 = vrot.lane.b32.xlu0 %v485, 4
        %v568 = vpop.permute.xlu0 %567
        %569 = vrot.lane.b32.xlu0 %v486, 4
        %v570 = vpop.permute.xlu0 %569
        %571 = vrot.lane.b32.xlu0 %v487, 4
        %v572 = vpop.permute.xlu0 %571
        %573 = vrot.lane.b32.xlu0 %v488, 4
        %v574 = vpop.permute.xlu0 %573
        %575 = vrot.lane.b32.xlu0 %v489, 4
        %v576 = vpop.permute.xlu0 %575
        %577 = vrot.lane.b32.xlu0 %v490, 4
        %v578 = vpop.permute.xlu0 %577
        %579 = vrot.lane.b32.xlu0 %v491, 4
        %v580 = vpop.permute.xlu0 %579
        %581 = vrot.lane.b32.xlu0 %v492, 4
        %v582 = vpop.permute.xlu0 %581
        %583 = vrot.lane.b32.xlu0 %v493, 4
        %v584 = vpop.permute.xlu0 %583
        %585 = vrot.lane.b32.xlu0 %v494, 4
        %v586 = vpop.permute.xlu0 %585
        %587 = vrot.lane.b32.xlu0 %v495, 4
        %v588 = vpop.permute.xlu0 %587
        %589 = vrot.lane.b32.xlu0 %v496, 4
        %v590 = vpop.permute.xlu0 %589
        %591 = vrot.lane.b32.xlu0 %v497, 4
        %v592 = vpop.permute.xlu0 %591
        %593 = vrot.lane.b32.xlu0 %v498, 4
        %v594 = vpop.permute.xlu0 %593
        %vm627 = vcmask 64544
        %628 = vst.msk [vmem:[#allocation3] sm:$0xff] %vm627, %v532
        %629 = vst.msk [vmem:[#allocation3 + $0x8] sm:$0xff] %vm627, %v534
        %630 = vst.msk [vmem:[#allocation3 + $0x10] sm:$0xff] %vm627, %v536
        %631 = vst.msk [vmem:[#allocation3 + $0x18] sm:$0xff] %vm627, %v538
        %632 = vst.msk [vmem:[#allocation3 + $0x20] sm:$0xff] %vm627, %v540
        %633 = vst.msk [vmem:[#allocation3 + $0x28] sm:$0xff] %vm627, %v542
        %634 = vst.msk [vmem:[#allocation3 + $0x30] sm:$0xff] %vm627, %v544
        %635 = vst.msk [vmem:[#allocation3 + $0x38] sm:$0xff] %vm627, %v546
        %636 = vst.msk [vmem:[#allocation3 + $0x40] sm:$0xff] %vm627, %v548
        %637 = vst.msk [vmem:[#allocation3 + $0x48] sm:$0xff] %vm627, %v550
        %638 = vst.msk [vmem:[#allocation3 + $0x50] sm:$0xff] %vm627, %v552
        %639 = vst.msk [vmem:[#allocation3 + $0x58] sm:$0xff] %vm627, %v554
        %640 = vst.msk [vmem:[#allocation3 + $0x60] sm:$0xff] %vm627, %v556
        %641 = vst.msk [vmem:[#allocation3 + $0x68] sm:$0xff] %vm627, %v558
        %642 = vst.msk [vmem:[#allocation3 + $0x70] sm:$0xff] %vm627, %v560
        %643 = vst.msk [vmem:[#allocation3 + $0x78] sm:$0xff] %vm627, %v562
        %644 = vst.msk [vmem:[#allocation3 + $0x80] sm:$0xff] %vm627, %v564
        %645 = vst.msk [vmem:[#allocation3 + $0x88] sm:$0xff] %vm627, %v566
        %646 = vst.msk [vmem:[#allocation3 + $0x90] sm:$0xff] %vm627, %v568
        %647 = vst.msk [vmem:[#allocation3 + $0x98] sm:$0xff] %vm627, %v570
        %648 = vst.msk [vmem:[#allocation3 + $0xa0] sm:$0xff] %vm627, %v572
        %649 = vst.msk [vmem:[#allocation3 + $0xa8] sm:$0xff] %vm627, %v574
        %650 = vst.msk [vmem:[#allocation3 + $0xb0] sm:$0xff] %vm627, %v576
        %651 = vst.msk [vmem:[#allocation3 + $0xb8] sm:$0xff] %vm627, %v578
        %652 = vst.msk [vmem:[#allocation3 + $0xc0] sm:$0xff] %vm627, %v580
        %653 = vst.msk [vmem:[#allocation3 + $0xc8] sm:$0xff] %vm627, %v582
        %654 = vst.msk [vmem:[#allocation3 + $0xd0] sm:$0xff] %vm627, %v584
        %655 = vst.msk [vmem:[#allocation3 + $0xd8] sm:$0xff] %vm627, %v586
        %656 = vst.msk [vmem:[#allocation3 + $0xe0] sm:$0xff] %vm627, %v588
        %657 = vst.msk [vmem:[#allocation3 + $0xe8] sm:$0xff] %vm627, %v590
        %658 = vst.msk [vmem:[#allocation3 + $0xf0] sm:$0xff] %vm627, %v592
        %659 = vst.msk [vmem:[#allocation3 + $0xf8] sm:$0xff] %vm627, %v594
        %v660 = vld [vmem:[#allocation2 + $0x2] sm:$0xff]
        %v661 = vld [vmem:[#allocation2 + $0xa] sm:$0xff]
        %v662 = vld [vmem:[#allocation2 + $0x1a] sm:$0xff]
        %v663 = vld [vmem:[#allocation2 + $0x22] sm:$0xff]
        %v664 = vld [vmem:[#allocation2 + $0x32] sm:$0xff]
        %v665 = vld [vmem:[#allocation2 + $0x3a] sm:$0xff]
        %v666 = vld [vmem:[#allocation2 + $0x4a] sm:$0xff]
        %v667 = vld [vmem:[#allocation2 + $0x52] sm:$0xff]
        %v668 = vld [vmem:[#allocation2 + $0x62] sm:$0xff]
        %v669 = vld [vmem:[#allocation2 + $0x6a] sm:$0xff]
        %v670 = vld [vmem:[#allocation2 + $0x7a] sm:$0xff]
        %v671 = vld [vmem:[#allocation2 + $0x82] sm:$0xff]
        %v672 = vld [vmem:[#allocation2 + $0x92] sm:$0xff]
        %v673 = vld [vmem:[#allocation2 + $0x9a] sm:$0xff]
        %v674 = vld [vmem:[#allocation2 + $0xaa] sm:$0xff]
        %v675 = vld [vmem:[#allocation2 + $0xb2] sm:$0xff]
        %v676 = vld [vmem:[#allocation2 + $0xc2] sm:$0xff]
        %v677 = vld [vmem:[#allocation2 + $0xca] sm:$0xff]
        %v678 = vld [vmem:[#allocation2 + $0xda] sm:$0xff]
        %v679 = vld [vmem:[#allocation2 + $0xe2] sm:$0xff]
        %v680 = vld [vmem:[#allocation2 + $0xf2] sm:$0xff]
        %v681 = vld [vmem:[#allocation2 + $0xfa] sm:$0xff]
        %v682 = vld [vmem:[#allocation2 + $0x10a] sm:$0xff]
        %v683 = vld [vmem:[#allocation2 + $0x112] sm:$0xff]
        %v684 = vld [vmem:[#allocation2 + $0x122] sm:$0xff]
        %v685 = vld [vmem:[#allocation2 + $0x12a] sm:$0xff]
        %v686 = vld [vmem:[#allocation2 + $0x13a] sm:$0xff]
        %v687 = vld [vmem:[#allocation2 + $0x142] sm:$0xff]
        %v688 = vld [vmem:[#allocation2 + $0x152] sm:$0xff]
        %v689 = vld [vmem:[#allocation2 + $0x15a] sm:$0xff]
        %v690 = vld [vmem:[#allocation2 + $0x16a] sm:$0xff]
        %v691 = vld [vmem:[#allocation2 + $0x172] sm:$0xff]
        %724 = vrot.lane.b32.xlu0 %v660, 8
        %v725 = vpop.permute.xlu0 %724
        %726 = vrot.lane.b32.xlu0 %v661, 8
        %v727 = vpop.permute.xlu0 %726
        %728 = vrot.lane.b32.xlu0 %v662, 8
        %v729 = vpop.permute.xlu0 %728
        %730 = vrot.lane.b32.xlu0 %v663, 8
        %v731 = vpop.permute.xlu0 %730
        %732 = vrot.lane.b32.xlu0 %v664, 8
        %v733 = vpop.permute.xlu0 %732
        %734 = vrot.lane.b32.xlu0 %v665, 8
        %v735 = vpop.permute.xlu0 %734
        %736 = vrot.lane.b32.xlu0 %v666, 8
        %v737 = vpop.permute.xlu0 %736
        %738 = vrot.lane.b32.xlu0 %v667, 8
        %v739 = vpop.permute.xlu0 %738
        %740 = vrot.lane.b32.xlu0 %v668, 8
        %v741 = vpop.permute.xlu0 %740
        %742 = vrot.lane.b32.xlu0 %v669, 8
        %v743 = vpop.permute.xlu0 %742
        %744 = vrot.lane.b32.xlu0 %v670, 8
        %v745 = vpop.permute.xlu0 %744
        %746 = vrot.lane.b32.xlu0 %v671, 8
        %v747 = vpop.permute.xlu0 %746
        %748 = vrot.lane.b32.xlu0 %v672, 8
        %v749 = vpop.permute.xlu0 %748
        %750 = vrot.lane.b32.xlu0 %v673, 8
        %v751 = vpop.permute.xlu0 %750
        %752 = vrot.lane.b32.xlu0 %v674, 8
        %v753 = vpop.permute.xlu0 %752
        %754 = vrot.lane.b32.xlu0 %v675, 8
        %v755 = vpop.permute.xlu0 %754
        %756 = vrot.lane.b32.xlu0 %v676, 8
        %v757 = vpop.permute.xlu0 %756
        %758 = vrot.lane.b32.xlu0 %v677, 8
        %v759 = vpop.permute.xlu0 %758
        %760 = vrot.lane.b32.xlu0 %v678, 8
        %v761 = vpop.permute.xlu0 %760
        %762 = vrot.lane.b32.xlu0 %v679, 8
        %v763 = vpop.permute.xlu0 %762
        %764 = vrot.lane.b32.xlu0 %v680, 8
        %v765 = vpop.permute.xlu0 %764
        %766 = vrot.lane.b32.xlu0 %v681, 8
        %v767 = vpop.permute.xlu0 %766
        %768 = vrot.lane.b32.xlu0 %v682, 8
        %v769 = vpop.permute.xlu0 %768
        %770 = vrot.lane.b32.xlu0 %v683, 8
        %v771 = vpop.permute.xlu0 %770
        %772 = vrot.lane.b32.xlu0 %v684, 8
        %v773 = vpop.permute.xlu0 %772
        %774 = vrot.lane.b32.xlu0 %v685, 8
        %v775 = vpop.permute.xlu0 %774
        %776 = vrot.lane.b32.xlu0 %v686, 8
        %v777 = vpop.permute.xlu0 %776
        %778 = vrot.lane.b32.xlu0 %v687, 8
        %v779 = vpop.permute.xlu0 %778
        %780 = vrot.lane.b32.xlu0 %v688, 8
        %v781 = vpop.permute.xlu0 %780
        %782 = vrot.lane.b32.xlu0 %v689, 8
        %v783 = vpop.permute.xlu0 %782
        %784 = vrot.lane.b32.xlu0 %v690, 8
        %v785 = vpop.permute.xlu0 %784
        %786 = vrot.lane.b32.xlu0 %v691, 8
        %v787 = vpop.permute.xlu0 %786
        %vm820 = vcmask 97344
        %821 = vst.msk [vmem:[#allocation3] sm:$0xff] %vm820, %v725
        %822 = vst.msk [vmem:[#allocation3 + $0x8] sm:$0xff] %vm820, %v727
        %823 = vst.msk [vmem:[#allocation3 + $0x10] sm:$0xff] %vm820, %v729
        %824 = vst.msk [vmem:[#allocation3 + $0x18] sm:$0xff] %vm820, %v731
        %825 = vst.msk [vmem:[#allocation3 + $0x20] sm:$0xff] %vm820, %v733
        %826 = vst.msk [vmem:[#allocation3 + $0x28] sm:$0xff] %vm820, %v735
        %827 = vst.msk [vmem:[#allocation3 + $0x30] sm:$0xff] %vm820, %v737
        %828 = vst.msk [vmem:[#allocation3 + $0x38] sm:$0xff] %vm820, %v739
        %829 = vst.msk [vmem:[#allocation3 + $0x40] sm:$0xff] %vm820, %v741
        %830 = vst.msk [vmem:[#allocation3 + $0x48] sm:$0xff] %vm820, %v743
        %831 = vst.msk [vmem:[#allocation3 + $0x50] sm:$0xff] %vm820, %v745
        %832 = vst.msk [vmem:[#allocation3 + $0x58] sm:$0xff] %vm820, %v747
        %833 = vst.msk [vmem:[#allocation3 + $0x60] sm:$0xff] %vm820, %v749
        %834 = vst.msk [vmem:[#allocation3 + $0x68] sm:$0xff] %vm820, %v751
        %835 = vst.msk [vmem:[#allocation3 + $0x70] sm:$0xff] %vm820, %v753
        %836 = vst.msk [vmem:[#allocation3 + $0x78] sm:$0xff] %vm820, %v755
        %837 = vst.msk [vmem:[#allocation3 + $0x80] sm:$0xff] %vm820, %v757
        %838 = vst.msk [vmem:[#allocation3 + $0x88] sm:$0xff] %vm820, %v759
        %839 = vst.msk [vmem:[#allocation3 + $0x90] sm:$0xff] %vm820, %v761
        %840 = vst.msk [vmem:[#allocation3 + $0x98] sm:$0xff] %vm820, %v763
        %841 = vst.msk [vmem:[#allocation3 + $0xa0] sm:$0xff] %vm820, %v765
        %842 = vst.msk [vmem:[#allocation3 + $0xa8] sm:$0xff] %vm820, %v767
        %843 = vst.msk [vmem:[#allocation3 + $0xb0] sm:$0xff] %vm820, %v769
        %844 = vst.msk [vmem:[#allocation3 + $0xb8] sm:$0xff] %vm820, %v771
        %845 = vst.msk [vmem:[#allocation3 + $0xc0] sm:$0xff] %vm820, %v773
        %846 = vst.msk [vmem:[#allocation3 + $0xc8] sm:$0xff] %vm820, %v775
        %847 = vst.msk [vmem:[#allocation3 + $0xd0] sm:$0xff] %vm820, %v777
        %848 = vst.msk [vmem:[#allocation3 + $0xd8] sm:$0xff] %vm820, %v779
        %849 = vst.msk [vmem:[#allocation3 + $0xe0] sm:$0xff] %vm820, %v781
        %850 = vst.msk [vmem:[#allocation3 + $0xe8] sm:$0xff] %vm820, %v783
        %851 = vst.msk [vmem:[#allocation3 + $0xf0] sm:$0xff] %vm820, %v785
        %852 = vst.msk [vmem:[#allocation3 + $0xf8] sm:$0xff] %vm820, %v787
        %v853 = vld [vmem:[%s291] sm:$0xff]
        %v854 = vld [vmem:[%s291 + $0x8] sm:$0xff]
        %v855 = vld [vmem:[%s291 + $0x18] sm:$0xff]
        %v856 = vld [vmem:[%s291 + $0x20] sm:$0xff]
        %v857 = vld [vmem:[%s291 + $0x30] sm:$0xff]
        %v858 = vld [vmem:[%s291 + $0x38] sm:$0xff]
        %v859 = vld [vmem:[%s291 + $0x48] sm:$0xff]
        %v860 = vld [vmem:[%s291 + $0x50] sm:$0xff]
        %v861 = vld [vmem:[%s291 + $0x60] sm:$0xff]
        %v862 = vld [vmem:[%s291 + $0x68] sm:$0xff]
        %v863 = vld [vmem:[%s291 + $0x78] sm:$0xff]
        %v864 = vld [vmem:[%s291 + $0x80] sm:$0xff]
        %v865 = vld [vmem:[%s291 + $0x90] sm:$0xff]
        %v866 = vld [vmem:[%s291 + $0x98] sm:$0xff]
        %v867 = vld [vmem:[%s291 + $0xa8] sm:$0xff]
        %v868 = vld [vmem:[%s291 + $0xb0] sm:$0xff]
        %v869 = vld [vmem:[%s291 + $0xc0] sm:$0xff]
        %v870 = vld [vmem:[%s291 + $0xc8] sm:$0xff]
        %v871 = vld [vmem:[%s291 + $0xd8] sm:$0xff]
        %v872 = vld [vmem:[%s291 + $0xe0] sm:$0xff]
        %v873 = vld [vmem:[%s291 + $0xf0] sm:$0xff]
        %v874 = vld [vmem:[%s291 + $0xf8] sm:$0xff]
        %v875 = vld [vmem:[%s291 + $0x108] sm:$0xff]
        %v876 = vld [vmem:[%s291 + $0x110] sm:$0xff]
        %v877 = vld [vmem:[%s291 + $0x120] sm:$0xff]
        %v878 = vld [vmem:[%s291 + $0x128] sm:$0xff]
        %v879 = vld [vmem:[%s291 + $0x138] sm:$0xff]
        %v880 = vld [vmem:[%s291 + $0x140] sm:$0xff]
        %v881 = vld [vmem:[%s291 + $0x150] sm:$0xff]
        %v882 = vld [vmem:[%s291 + $0x158] sm:$0xff]
        %v883 = vld [vmem:[%s291 + $0x168] sm:$0xff]
        %v884 = vld [vmem:[%s291 + $0x170] sm:$0xff]
        %917 = vrot.lane.b32.xlu0 %v853, 12
        %v918 = vpop.permute.xlu0 %917
        %919 = vrot.lane.b32.xlu0 %v854, 12
        %v920 = vpop.permute.xlu0 %919
        %921 = vrot.lane.b32.xlu0 %v855, 12
        %v922 = vpop.permute.xlu0 %921
        %923 = vrot.lane.b32.xlu0 %v856, 12
        %v924 = vpop.permute.xlu0 %923
        %925 = vrot.lane.b32.xlu0 %v857, 12
        %v926 = vpop.permute.xlu0 %925
        %927 = vrot.lane.b32.xlu0 %v858, 12
        %v928 = vpop.permute.xlu0 %927
        %929 = vrot.lane.b32.xlu0 %v859, 12
        %v930 = vpop.permute.xlu0 %929
        %931 = vrot.lane.b32.xlu0 %v860, 12
        %v932 = vpop.permute.xlu0 %931
        %933 = vrot.lane.b32.xlu0 %v861, 12
        %v934 = vpop.permute.xlu0 %933
        %935 = vrot.lane.b32.xlu0 %v862, 12
        %v936 = vpop.permute.xlu0 %935
        %937 = vrot.lane.b32.xlu0 %v863, 12
        %v938 = vpop.permute.xlu0 %937
        %939 = vrot.lane.b32.xlu0 %v864, 12
        %v940 = vpop.permute.xlu0 %939
        %941 = vrot.lane.b32.xlu0 %v865, 12
        %v942 = vpop.permute.xlu0 %941
        %943 = vrot.lane.b32.xlu0 %v866, 12
        %v944 = vpop.permute.xlu0 %943
        %945 = vrot.lane.b32.xlu0 %v867, 12
        %v946 = vpop.permute.xlu0 %945
        %947 = vrot.lane.b32.xlu0 %v868, 12
        %v948 = vpop.permute.xlu0 %947
        %949 = vrot.lane.b32.xlu0 %v869, 12
        %v950 = vpop.permute.xlu0 %949
        %951 = vrot.lane.b32.xlu0 %v870, 12
        %v952 = vpop.permute.xlu0 %951
        %953 = vrot.lane.b32.xlu0 %v871, 12
        %v954 = vpop.permute.xlu0 %953
        %955 = vrot.lane.b32.xlu0 %v872, 12
        %v956 = vpop.permute.xlu0 %955
        %957 = vrot.lane.b32.xlu0 %v873, 12
        %v958 = vpop.permute.xlu0 %957
        %959 = vrot.lane.b32.xlu0 %v874, 12
        %v960 = vpop.permute.xlu0 %959
        %961 = vrot.lane.b32.xlu0 %v875, 12
        %v962 = vpop.permute.xlu0 %961
        %963 = vrot.lane.b32.xlu0 %v876, 12
        %v964 = vpop.permute.xlu0 %963
        %965 = vrot.lane.b32.xlu0 %v877, 12
        %v966 = vpop.permute.xlu0 %965
        %967 = vrot.lane.b32.xlu0 %v878, 12
        %v968 = vpop.permute.xlu0 %967
        %969 = vrot.lane.b32.xlu0 %v879, 12
        %v970 = vpop.permute.xlu0 %969
        %971 = vrot.lane.b32.xlu0 %v880, 12
        %v972 = vpop.permute.xlu0 %971
        %973 = vrot.lane.b32.xlu0 %v881, 12
        %v974 = vpop.permute.xlu0 %973
        %975 = vrot.lane.b32.xlu0 %v882, 12
        %v976 = vpop.permute.xlu0 %975
        %977 = vrot.lane.b32.xlu0 %v883, 12
        %v978 = vpop.permute.xlu0 %977
        %979 = vrot.lane.b32.xlu0 %v884, 12
        %v980 = vpop.permute.xlu0 %979
        %vm1013 = vcmask 130144
        %1014 = vst.msk [vmem:[#allocation3] sm:$0xff] %vm1013, %v918
        %1015 = vst.msk [vmem:[#allocation3 + $0x8] sm:$0xff] %vm1013, %v920
        %1016 = vst.msk [vmem:[#allocation3 + $0x10] sm:$0xff] %vm1013, %v922
        %1017 = vst.msk [vmem:[#allocation3 + $0x18] sm:$0xff] %vm1013, %v924
        %1018 = vst.msk [vmem:[#allocation3 + $0x20] sm:$0xff] %vm1013, %v926
        %1019 = vst.msk [vmem:[#allocation3 + $0x28] sm:$0xff] %vm1013, %v928
        %1020 = vst.msk [vmem:[#allocation3 + $0x30] sm:$0xff] %vm1013, %v930
        %1021 = vst.msk [vmem:[#allocation3 + $0x38] sm:$0xff] %vm1013, %v932
        %1022 = vst.msk [vmem:[#allocation3 + $0x40] sm:$0xff] %vm1013, %v934
        %1023 = vst.msk [vmem:[#allocation3 + $0x48] sm:$0xff] %vm1013, %v936
        %1024 = vst.msk [vmem:[#allocation3 + $0x50] sm:$0xff] %vm1013, %v938
        %1025 = vst.msk [vmem:[#allocation3 + $0x58] sm:$0xff] %vm1013, %v940
        %1026 = vst.msk [vmem:[#allocation3 + $0x60] sm:$0xff] %vm1013, %v942
        %1027 = vst.msk [vmem:[#allocation3 + $0x68] sm:$0xff] %vm1013, %v944
        %1028 = vst.msk [vmem:[#allocation3 + $0x70] sm:$0xff] %vm1013, %v946
        %1029 = vst.msk [vmem:[#allocation3 + $0x78] sm:$0xff] %vm1013, %v948
        %1030 = vst.msk [vmem:[#allocation3 + $0x80] sm:$0xff] %vm1013, %v950
        %1031 = vst.msk [vmem:[#allocation3 + $0x88] sm:$0xff] %vm1013, %v952
        %1032 = vst.msk [vmem:[#allocation3 + $0x90] sm:$0xff] %vm1013, %v954
        %1033 = vst.msk [vmem:[#allocation3 + $0x98] sm:$0xff] %vm1013, %v956
        %1034 = vst.msk [vmem:[#allocation3 + $0xa0] sm:$0xff] %vm1013, %v958
        %1035 = vst.msk [vmem:[#allocation3 + $0xa8] sm:$0xff] %vm1013, %v960
        %1036 = vst.msk [vmem:[#allocation3 + $0xb0] sm:$0xff] %vm1013, %v962
        %1037 = vst.msk [vmem:[#allocation3 + $0xb8] sm:$0xff] %vm1013, %v964
        %1038 = vst.msk [vmem:[#allocation3 + $0xc0] sm:$0xff] %vm1013, %v966
        %1039 = vst.msk [vmem:[#allocation3 + $0xc8] sm:$0xff] %vm1013, %v968
        %1040 = vst.msk [vmem:[#allocation3 + $0xd0] sm:$0xff] %vm1013, %v970
        %1041 = vst.msk [vmem:[#allocation3 + $0xd8] sm:$0xff] %vm1013, %v972
        %1042 = vst.msk [vmem:[#allocation3 + $0xe0] sm:$0xff] %vm1013, %v974
        %1043 = vst.msk [vmem:[#allocation3 + $0xe8] sm:$0xff] %vm1013, %v976
        %1044 = vst.msk [vmem:[#allocation3 + $0xf0] sm:$0xff] %vm1013, %v978
        %1045 = vst.msk [vmem:[#allocation3 + $0xf8] sm:$0xff] %vm1013, %v980
        %v1046 = vld [vmem:[%s291 + $0x1] sm:$0xff]
        %v1047 = vld [vmem:[%s291 + $0x9] sm:$0xff]
        %v1048 = vld [vmem:[%s291 + $0x19] sm:$0xff]
        %v1049 = vld [vmem:[%s291 + $0x21] sm:$0xff]
        %v1050 = vld [vmem:[%s291 + $0x31] sm:$0xff]
        %v1051 = vld [vmem:[%s291 + $0x39] sm:$0xff]
        %v1052 = vld [vmem:[%s291 + $0x49] sm:$0xff]
        %v1053 = vld [vmem:[%s291 + $0x51] sm:$0xff]
        %v1054 = vld [vmem:[%s291 + $0x61] sm:$0xff]
        %v1055 = vld [vmem:[%s291 + $0x69] sm:$0xff]
        %v1056 = vld [vmem:[%s291 + $0x79] sm:$0xff]
        %v1057 = vld [vmem:[%s291 + $0x81] sm:$0xff]
        %v1058 = vld [vmem:[%s291 + $0x91] sm:$0xff]
        %v1059 = vld [vmem:[%s291 + $0x99] sm:$0xff]
        %v1060 = vld [vmem:[%s291 + $0xa9] sm:$0xff]
        %v1061 = vld [vmem:[%s291 + $0xb1] sm:$0xff]
        %v1062 = vld [vmem:[%s291 + $0xc1] sm:$0xff]
        %v1063 = vld [vmem:[%s291 + $0xc9] sm:$0xff]
        %v1064 = vld [vmem:[%s291 + $0xd9] sm:$0xff]
        %v1065 = vld [vmem:[%s291 + $0xe1] sm:$0xff]
        %v1066 = vld [vmem:[%s291 + $0xf1] sm:$0xff]
        %v1067 = vld [vmem:[%s291 + $0xf9] sm:$0xff]
        %v1068 = vld [vmem:[%s291 + $0x109] sm:$0xff]
        %v1069 = vld [vmem:[%s291 + $0x111] sm:$0xff]
        %v1070 = vld [vmem:[%s291 + $0x121] sm:$0xff]
        %v1071 = vld [vmem:[%s291 + $0x129] sm:$0xff]
        %v1072 = vld [vmem:[%s291 + $0x139] sm:$0xff]
        %v1073 = vld [vmem:[%s291 + $0x141] sm:$0xff]
        %v1074 = vld [vmem:[%s291 + $0x151] sm:$0xff]
        %v1075 = vld [vmem:[%s291 + $0x159] sm:$0xff]
        %v1076 = vld [vmem:[%s291 + $0x169] sm:$0xff]
        %v1077 = vld [vmem:[%s291 + $0x171] sm:$0xff]
        %1110 = vrot.lane.b32.xlu0 %v1046, 16
        %v1111 = vpop.permute.xlu0 %1110
        %1112 = vrot.lane.b32.xlu0 %v1047, 16
        %v1113 = vpop.permute.xlu0 %1112
        %1114 = vrot.lane.b32.xlu0 %v1048, 16
        %v1115 = vpop.permute.xlu0 %1114
        %1116 = vrot.lane.b32.xlu0 %v1049, 16
        %v1117 = vpop.permute.xlu0 %1116
        %1118 = vrot.lane.b32.xlu0 %v1050, 16
        %v1119 = vpop.permute.xlu0 %1118
        %1120 = vrot.lane.b32.xlu0 %v1051, 16
        %v1121 = vpop.permute.xlu0 %1120
        %1122 = vrot.lane.b32.xlu0 %v1052, 16
        %v1123 = vpop.permute.xlu0 %1122
        %1124 = vrot.lane.b32.xlu0 %v1053, 16
        %v1125 = vpop.permute.xlu0 %1124
        %1126 = vrot.lane.b32.xlu0 %v1054, 16
        %v1127 = vpop.permute.xlu0 %1126
        %1128 = vrot.lane.b32.xlu0 %v1055, 16
        %v1129 = vpop.permute.xlu0 %1128
        %1130 = vrot.lane.b32.xlu0 %v1056, 16
        %v1131 = vpop.permute.xlu0 %1130
        %1132 = vrot.lane.b32.xlu0 %v1057, 16
        %v1133 = vpop.permute.xlu0 %1132
        %1134 = vrot.lane.b32.xlu0 %v1058, 16
        %v1135 = vpop.permute.xlu0 %1134
        %1136 = vrot.lane.b32.xlu0 %v1059, 16
        %v1137 = vpop.permute.xlu0 %1136
        %1138 = vrot.lane.b32.xlu0 %v1060, 16
        %v1139 = vpop.permute.xlu0 %1138
        %1140 = vrot.lane.b32.xlu0 %v1061, 16
        %v1141 = vpop.permute.xlu0 %1140
        %1142 = vrot.lane.b32.xlu0 %v1062, 16
        %v1143 = vpop.permute.xlu0 %1142
        %1144 = vrot.lane.b32.xlu0 %v1063, 16
        %v1145 = vpop.permute.xlu0 %1144
        %1146 = vrot.lane.b32.xlu0 %v1064, 16
        %v1147 = vpop.permute.xlu0 %1146
        %1148 = vrot.lane.b32.xlu0 %v1065, 16
        %v1149 = vpop.permute.xlu0 %1148
        %1150 = vrot.lane.b32.xlu0 %v1066, 16
        %v1151 = vpop.permute.xlu0 %1150
        %1152 = vrot.lane.b32.xlu0 %v1067, 16
        %v1153 = vpop.permute.xlu0 %1152
        %1154 = vrot.lane.b32.xlu0 %v1068, 16
        %v1155 = vpop.permute.xlu0 %1154
        %1156 = vrot.lane.b32.xlu0 %v1069, 16
        %v1157 = vpop.permute.xlu0 %1156
        %1158 = vrot.lane.b32.xlu0 %v1070, 16
        %v1159 = vpop.permute.xlu0 %1158
        %1160 = vrot.lane.b32.xlu0 %v1071, 16
        %v1161 = vpop.permute.xlu0 %1160
        %1162 = vrot.lane.b32.xlu0 %v1072, 16
        %v1163 = vpop.permute.xlu0 %1162
        %1164 = vrot.lane.b32.xlu0 %v1073, 16
        %v1165 = vpop.permute.xlu0 %1164
        %1166 = vrot.lane.b32.xlu0 %v1074, 16
        %v1167 = vpop.permute.xlu0 %1166
        %1168 = vrot.lane.b32.xlu0 %v1075, 16
        %v1169 = vpop.permute.xlu0 %1168
        %1170 = vrot.lane.b32.xlu0 %v1076, 16
        %v1171 = vpop.permute.xlu0 %1170
        %1172 = vrot.lane.b32.xlu0 %v1077, 16
        %v1173 = vpop.permute.xlu0 %1172
        %vm1206 = vcmask 162944
        %1207 = vst.msk [vmem:[#allocation3] sm:$0xff] %vm1206, %v1111
        %1208 = vst.msk [vmem:[#allocation3 + $0x8] sm:$0xff] %vm1206, %v1113
        %1209 = vst.msk [vmem:[#allocation3 + $0x10] sm:$0xff] %vm1206, %v1115
        %1210 = vst.msk [vmem:[#allocation3 + $0x18] sm:$0xff] %vm1206, %v1117
        %1211 = vst.msk [vmem:[#allocation3 + $0x20] sm:$0xff] %vm1206, %v1119
        %1212 = vst.msk [vmem:[#allocation3 + $0x28] sm:$0xff] %vm1206, %v1121
        %1213 = vst.msk [vmem:[#allocation3 + $0x30] sm:$0xff] %vm1206, %v1123
        %1214 = vst.msk [vmem:[#allocation3 + $0x38] sm:$0xff] %vm1206, %v1125
        %1215 = vst.msk [vmem:[#allocation3 + $0x40] sm:$0xff] %vm1206, %v1127
        %1216 = vst.msk [vmem:[#allocation3 + $0x48] sm:$0xff] %vm1206, %v1129
        %1217 = vst.msk [vmem:[#allocation3 + $0x50] sm:$0xff] %vm1206, %v1131
        %1218 = vst.msk [vmem:[#allocation3 + $0x58] sm:$0xff] %vm1206, %v1133
        %1219 = vst.msk [vmem:[#allocation3 + $0x60] sm:$0xff] %vm1206, %v1135
        %1220 = vst.msk [vmem:[#allocation3 + $0x68] sm:$0xff] %vm1206, %v1137
        %1221 = vst.msk [vmem:[#allocation3 + $0x70] sm:$0xff] %vm1206, %v1139
        %1222 = vst.msk [vmem:[#allocation3 + $0x78] sm:$0xff] %vm1206, %v1141
        %1223 = vst.msk [vmem:[#allocation3 + $0x80] sm:$0xff] %vm1206, %v1143
        %1224 = vst.msk [vmem:[#allocation3 + $0x88] sm:$0xff] %vm1206, %v1145
        %1225 = vst.msk [vmem:[#allocation3 + $0x90] sm:$0xff] %vm1206, %v1147
        %1226 = vst.msk [vmem:[#allocation3 + $0x98] sm:$0xff] %vm1206, %v1149
        %1227 = vst.msk [vmem:[#allocation3 + $0xa0] sm:$0xff] %vm1206, %v1151
        %1228 = vst.msk [vmem:[#allocation3 + $0xa8] sm:$0xff] %vm1206, %v1153
        %1229 = vst.msk [vmem:[#allocation3 + $0xb0] sm:$0xff] %vm1206, %v1155
        %1230 = vst.msk [vmem:[#allocation3 + $0xb8] sm:$0xff] %vm1206, %v1157
        %1231 = vst.msk [vmem:[#allocation3 + $0xc0] sm:$0xff] %vm1206, %v1159
        %1232 = vst.msk [vmem:[#allocation3 + $0xc8] sm:$0xff] %vm1206, %v1161
        %1233 = vst.msk [vmem:[#allocation3 + $0xd0] sm:$0xff] %vm1206, %v1163
        %1234 = vst.msk [vmem:[#allocation3 + $0xd8] sm:$0xff] %vm1206, %v1165
        %1235 = vst.msk [vmem:[#allocation3 + $0xe0] sm:$0xff] %vm1206, %v1167
        %1236 = vst.msk [vmem:[#allocation3 + $0xe8] sm:$0xff] %vm1206, %v1169
        %1237 = vst.msk [vmem:[#allocation3 + $0xf0] sm:$0xff] %vm1206, %v1171
        %1238 = vst.msk [vmem:[#allocation3 + $0xf8] sm:$0xff] %vm1206, %v1173
        %v1239 = vld [vmem:[%s291 + $0x2] sm:$0xff]
        %v1240 = vld [vmem:[%s291 + $0xa] sm:$0xff]
        %v1241 = vld [vmem:[%s291 + $0x1a] sm:$0xff]
        %v1242 = vld [vmem:[%s291 + $0x22] sm:$0xff]
        %v1243 = vld [vmem:[%s291 + $0x32] sm:$0xff]
        %v1244 = vld [vmem:[%s291 + $0x3a] sm:$0xff]
        %v1245 = vld [vmem:[%s291 + $0x4a] sm:$0xff]
        %v1246 = vld [vmem:[%s291 + $0x52] sm:$0xff]
        %v1247 = vld [vmem:[%s291 + $0x62] sm:$0xff]
        %v1248 = vld [vmem:[%s291 + $0x6a] sm:$0xff]
        %v1249 = vld [vmem:[%s291 + $0x7a] sm:$0xff]
        %v1250 = vld [vmem:[%s291 + $0x82] sm:$0xff]
        %v1251 = vld [vmem:[%s291 + $0x92] sm:$0xff]
        %v1252 = vld [vmem:[%s291 + $0x9a] sm:$0xff]
        %v1253 = vld [vmem:[%s291 + $0xaa] sm:$0xff]
        %v1254 = vld [vmem:[%s291 + $0xb2] sm:$0xff]
        %v1255 = vld [vmem:[%s291 + $0xc2] sm:$0xff]
        %v1256 = vld [vmem:[%s291 + $0xca] sm:$0xff]
        %v1257 = vld [vmem:[%s291 + $0xda] sm:$0xff]
        %v1258 = vld [vmem:[%s291 + $0xe2] sm:$0xff]
        %v1259 = vld [vmem:[%s291 + $0xf2] sm:$0xff]
        %v1260 = vld [vmem:[%s291 + $0xfa] sm:$0xff]
        %v1261 = vld [vmem:[%s291 + $0x10a] sm:$0xff]
        %v1262 = vld [vmem:[%s291 + $0x112] sm:$0xff]
        %v1263 = vld [vmem:[%s291 + $0x122] sm:$0xff]
        %v1264 = vld [vmem:[%s291 + $0x12a] sm:$0xff]
        %v1265 = vld [vmem:[%s291 + $0x13a] sm:$0xff]
        %v1266 = vld [vmem:[%s291 + $0x142] sm:$0xff]
        %v1267 = vld [vmem:[%s291 + $0x152] sm:$0xff]
        %v1268 = vld [vmem:[%s291 + $0x15a] sm:$0xff]
        %v1269 = vld [vmem:[%s291 + $0x16a] sm:$0xff]
        %v1270 = vld [vmem:[%s291 + $0x172] sm:$0xff]
        %1303 = vrot.lane.b32.xlu0 %v1239, 20
        %v1304 = vpop.permute.xlu0 %1303
        %1305 = vrot.lane.b32.xlu0 %v1240, 20
        %v1306 = vpop.permute.xlu0 %1305
        %1307 = vrot.lane.b32.xlu0 %v1241, 20
        %v1308 = vpop.permute.xlu0 %1307
        %1309 = vrot.lane.b32.xlu0 %v1242, 20
        %v1310 = vpop.permute.xlu0 %1309
        %1311 = vrot.lane.b32.xlu0 %v1243, 20
        %v1312 = vpop.permute.xlu0 %1311
        %1313 = vrot.lane.b32.xlu0 %v1244, 20
        %v1314 = vpop.permute.xlu0 %1313
        %1315 = vrot.lane.b32.xlu0 %v1245, 20
        %v1316 = vpop.permute.xlu0 %1315
        %1317 = vrot.lane.b32.xlu0 %v1246, 20
        %v1318 = vpop.permute.xlu0 %1317
        %1319 = vrot.lane.b32.xlu0 %v1247, 20
        %v1320 = vpop.permute.xlu0 %1319
        %1321 = vrot.lane.b32.xlu0 %v1248, 20
        %v1322 = vpop.permute.xlu0 %1321
        %1323 = vrot.lane.b32.xlu0 %v1249, 20
        %v1324 = vpop.permute.xlu0 %1323
        %1325 = vrot.lane.b32.xlu0 %v1250, 20
        %v1326 = vpop.permute.xlu0 %1325
        %1327 = vrot.lane.b32.xlu0 %v1251, 20
        %v1328 = vpop.permute.xlu0 %1327
        %1329 = vrot.lane.b32.xlu0 %v1252, 20
        %v1330 = vpop.permute.xlu0 %1329
        %1331 = vrot.lane.b32.xlu0 %v1253, 20
        %v1332 = vpop.permute.xlu0 %1331
        %1333 = vrot.lane.b32.xlu0 %v1254, 20
        %v1334 = vpop.permute.xlu0 %1333
        %1335 = vrot.lane.b32.xlu0 %v1255, 20
        %v1336 = vpop.permute.xlu0 %1335
        %1337 = vrot.lane.b32.xlu0 %v1256, 20
        %v1338 = vpop.permute.xlu0 %1337
        %1339 = vrot.lane.b32.xlu0 %v1257, 20
        %v1340 = vpop.permute.xlu0 %1339
        %1341 = vrot.lane.b32.xlu0 %v1258, 20
        %v1342 = vpop.permute.xlu0 %1341
        %1343 = vrot.lane.b32.xlu0 %v1259, 20
        %v1344 = vpop.permute.xlu0 %1343
        %1345 = vrot.lane.b32.xlu0 %v1260, 20
        %v1346 = vpop.permute.xlu0 %1345
        %1347 = vrot.lane.b32.xlu0 %v1261, 20
        %v1348 = vpop.permute.xlu0 %1347
        %1349 = vrot.lane.b32.xlu0 %v1262, 20
        %v1350 = vpop.permute.xlu0 %1349
        %1351 = vrot.lane.b32.xlu0 %v1263, 20
        %v1352 = vpop.permute.xlu0 %1351
        %1353 = vrot.lane.b32.xlu0 %v1264, 20
        %v1354 = vpop.permute.xlu0 %1353
        %1355 = vrot.lane.b32.xlu0 %v1265, 20
        %v1356 = vpop.permute.xlu0 %1355
        %1357 = vrot.lane.b32.xlu0 %v1266, 20
        %v1358 = vpop.permute.xlu0 %1357
        %1359 = vrot.lane.b32.xlu0 %v1267, 20
        %v1360 = vpop.permute.xlu0 %1359
        %1361 = vrot.lane.b32.xlu0 %v1268, 20
        %v1362 = vpop.permute.xlu0 %1361
        %1363 = vrot.lane.b32.xlu0 %v1269, 20
        %v1364 = vpop.permute.xlu0 %1363
        %1365 = vrot.lane.b32.xlu0 %v1270, 20
        %v1366 = vpop.permute.xlu0 %1365
        %vm1399 = vcmask 195744
        %1400 = vst.msk [vmem:[#allocation3] sm:$0xff] %vm1399, %v1304
        %1401 = vst.msk [vmem:[#allocation3 + $0x8] sm:$0xff] %vm1399, %v1306
        %1402 = vst.msk [vmem:[#allocation3 + $0x10] sm:$0xff] %vm1399, %v1308
        %1403 = vst.msk [vmem:[#allocation3 + $0x18] sm:$0xff] %vm1399, %v1310
        %1404 = vst.msk [vmem:[#allocation3 + $0x20] sm:$0xff] %vm1399, %v1312
        %1405 = vst.msk [vmem:[#allocation3 + $0x28] sm:$0xff] %vm1399, %v1314
        %1406 = vst.msk [vmem:[#allocation3 + $0x30] sm:$0xff] %vm1399, %v1316
        %1407 = vst.msk [vmem:[#allocation3 + $0x38] sm:$0xff] %vm1399, %v1318
        %1408 = vst.msk [vmem:[#allocation3 + $0x40] sm:$0xff] %vm1399, %v1320
        %1409 = vst.msk [vmem:[#allocation3 + $0x48] sm:$0xff] %vm1399, %v1322
        %1410 = vst.msk [vmem:[#allocation3 + $0x50] sm:$0xff] %vm1399, %v1324
        %1411 = vst.msk [vmem:[#allocation3 + $0x58] sm:$0xff] %vm1399, %v1326
        %1412 = vst.msk [vmem:[#allocation3 + $0x60] sm:$0xff] %vm1399, %v1328
        %1413 = vst.msk [vmem:[#allocation3 + $0x68] sm:$0xff] %vm1399, %v1330
        %1414 = vst.msk [vmem:[#allocation3 + $0x70] sm:$0xff] %vm1399, %v1332
        %1415 = vst.msk [vmem:[#allocation3 + $0x78] sm:$0xff] %vm1399, %v1334
        %1416 = vst.msk [vmem:[#allocation3 + $0x80] sm:$0xff] %vm1399, %v1336
        %1417 = vst.msk [vmem:[#allocation3 + $0x88] sm:$0xff] %vm1399, %v1338
        %1418 = vst.msk [vmem:[#allocation3 + $0x90] sm:$0xff] %vm1399, %v1340
        %1419 = vst.msk [vmem:[#allocation3 + $0x98] sm:$0xff] %vm1399, %v1342
        %1420 = vst.msk [vmem:[#allocation3 + $0xa0] sm:$0xff] %vm1399, %v1344
        %1421 = vst.msk [vmem:[#allocation3 + $0xa8] sm:$0xff] %vm1399, %v1346
        %1422 = vst.msk [vmem:[#allocation3 + $0xb0] sm:$0xff] %vm1399, %v1348
        %1423 = vst.msk [vmem:[#allocation3 + $0xb8] sm:$0xff] %vm1399, %v1350
        %1424 = vst.msk [vmem:[#allocation3 + $0xc0] sm:$0xff] %vm1399, %v1352
        %1425 = vst.msk [vmem:[#allocation3 + $0xc8] sm:$0xff] %vm1399, %v1354
        %1426 = vst.msk [vmem:[#allocation3 + $0xd0] sm:$0xff] %vm1399, %v1356
        %1427 = vst.msk [vmem:[#allocation3 + $0xd8] sm:$0xff] %vm1399, %v1358
        %1428 = vst.msk [vmem:[#allocation3 + $0xe0] sm:$0xff] %vm1399, %v1360
        %1429 = vst.msk [vmem:[#allocation3 + $0xe8] sm:$0xff] %vm1399, %v1362
        %1430 = vst.msk [vmem:[#allocation3 + $0xf0] sm:$0xff] %vm1399, %v1364
        %1431 = vst.msk [vmem:[#allocation3 + $0xf8] sm:$0xff] %vm1399, %v1366
        %s1432 = scalar_lea.vmem [#allocation2], 48
        %v1433 = vld [vmem:[%s1432] sm:$0xff]
        %v1434 = vld [vmem:[%s1432 + $0x8] sm:$0xff]
        %v1435 = vld [vmem:[%s1432 + $0x18] sm:$0xff]
        %v1436 = vld [vmem:[%s1432 + $0x20] sm:$0xff]
        %v1437 = vld [vmem:[%s1432 + $0x30] sm:$0xff]
        %v1438 = vld [vmem:[%s1432 + $0x38] sm:$0xff]
        %v1439 = vld [vmem:[%s1432 + $0x48] sm:$0xff]
        %v1440 = vld [vmem:[%s1432 + $0x50] sm:$0xff]
        %v1441 = vld [vmem:[%s1432 + $0x60] sm:$0xff]
        %v1442 = vld [vmem:[%s1432 + $0x68] sm:$0xff]
        %v1443 = vld [vmem:[%s1432 + $0x78] sm:$0xff]
        %v1444 = vld [vmem:[%s1432 + $0x80] sm:$0xff]
        %v1445 = vld [vmem:[%s1432 + $0x90] sm:$0xff]
        %v1446 = vld [vmem:[%s1432 + $0x98] sm:$0xff]
        %v1447 = vld [vmem:[%s1432 + $0xa8] sm:$0xff]
        %v1448 = vld [vmem:[%s1432 + $0xb0] sm:$0xff]
        %v1449 = vld [vmem:[%s1432 + $0xc0] sm:$0xff]
        %v1450 = vld [vmem:[%s1432 + $0xc8] sm:$0xff]
        %v1451 = vld [vmem:[%s1432 + $0xd8] sm:$0xff]
        %v1452 = vld [vmem:[%s1432 + $0xe0] sm:$0xff]
        %v1453 = vld [vmem:[%s1432 + $0xf0] sm:$0xff]
        %v1454 = vld [vmem:[%s1432 + $0xf8] sm:$0xff]
        %v1455 = vld [vmem:[%s1432 + $0x108] sm:$0xff]
        %v1456 = vld [vmem:[%s1432 + $0x110] sm:$0xff]
        %v1457 = vld [vmem:[%s1432 + $0x120] sm:$0xff]
        %v1458 = vld [vmem:[%s1432 + $0x128] sm:$0xff]
        %v1459 = vld [vmem:[%s1432 + $0x138] sm:$0xff]
        %v1460 = vld [vmem:[%s1432 + $0x140] sm:$0xff]
        %v1461 = vld [vmem:[%s1432 + $0x150] sm:$0xff]
        %v1462 = vld [vmem:[%s1432 + $0x158] sm:$0xff]
        %v1463 = vld [vmem:[%s1432 + $0x168] sm:$0xff]
        %v1464 = vld [vmem:[%s1432 + $0x170] sm:$0xff]
        %1497 = vrot.lane.b32.xlu0 %v1433, 24
        %v1498 = vpop.permute.xlu0 %1497
        %1499 = vrot.lane.b32.xlu0 %v1434, 24
        %v1500 = vpop.permute.xlu0 %1499
        %1501 = vrot.lane.b32.xlu0 %v1435, 24
        %v1502 = vpop.permute.xlu0 %1501
        %1503 = vrot.lane.b32.xlu0 %v1436, 24
        %v1504 = vpop.permute.xlu0 %1503
        %1505 = vrot.lane.b32.xlu0 %v1437, 24
        %v1506 = vpop.permute.xlu0 %1505
        %1507 = vrot.lane.b32.xlu0 %v1438, 24
        %v1508 = vpop.permute.xlu0 %1507
        %1509 = vrot.lane.b32.xlu0 %v1439, 24
        %v1510 = vpop.permute.xlu0 %1509
        %1511 = vrot.lane.b32.xlu0 %v1440, 24
        %v1512 = vpop.permute.xlu0 %1511
        %1513 = vrot.lane.b32.xlu0 %v1441, 24
        %v1514 = vpop.permute.xlu0 %1513
        %1515 = vrot.lane.b32.xlu0 %v1442, 24
        %v1516 = vpop.permute.xlu0 %1515
        %1517 = vrot.lane.b32.xlu0 %v1443, 24
        %v1518 = vpop.permute.xlu0 %1517
        %1519 = vrot.lane.b32.xlu0 %v1444, 24
        %v1520 = vpop.permute.xlu0 %1519
        %1521 = vrot.lane.b32.xlu0 %v1445, 24
        %v1522 = vpop.permute.xlu0 %1521
        %1523 = vrot.lane.b32.xlu0 %v1446, 24
        %v1524 = vpop.permute.xlu0 %1523
        %1525 = vrot.lane.b32.xlu0 %v1447, 24
        %v1526 = vpop.permute.xlu0 %1525
        %1527 = vrot.lane.b32.xlu0 %v1448, 24
        %v1528 = vpop.permute.xlu0 %1527
        %1529 = vrot.lane.b32.xlu0 %v1449, 24
        %v1530 = vpop.permute.xlu0 %1529
        %1531 = vrot.lane.b32.xlu0 %v1450, 24
        %v1532 = vpop.permute.xlu0 %1531
        %1533 = vrot.lane.b32.xlu0 %v1451, 24
        %v1534 = vpop.permute.xlu0 %1533
        %1535 = vrot.lane.b32.xlu0 %v1452, 24
        %v1536 = vpop.permute.xlu0 %1535
        %1537 = vrot.lane.b32.xlu0 %v1453, 24
        %v1538 = vpop.permute.xlu0 %1537
        %1539 = vrot.lane.b32.xlu0 %v1454, 24
        %v1540 = vpop.permute.xlu0 %1539
        %1541 = vrot.lane.b32.xlu0 %v1455, 24
        %v1542 = vpop.permute.xlu0 %1541
        %1543 = vrot.lane.b32.xlu0 %v1456, 24
        %v1544 = vpop.permute.xlu0 %1543
        %1545 = vrot.lane.b32.xlu0 %v1457, 24
        %v1546 = vpop.permute.xlu0 %1545
        %1547 = vrot.lane.b32.xlu0 %v1458, 24
        %v1548 = vpop.permute.xlu0 %1547
        %1549 = vrot.lane.b32.xlu0 %v1459, 24
        %v1550 = vpop.permute.xlu0 %1549
        %1551 = vrot.lane.b32.xlu0 %v1460, 24
        %v1552 = vpop.permute.xlu0 %1551
        %1553 = vrot.lane.b32.xlu0 %v1461, 24
        %v1554 = vpop.permute.xlu0 %1553
        %1555 = vrot.lane.b32.xlu0 %v1462, 24
        %v1556 = vpop.permute.xlu0 %1555
        %1557 = vrot.lane.b32.xlu0 %v1463, 24
        %v1558 = vpop.permute.xlu0 %1557
        %1559 = vrot.lane.b32.xlu0 %v1464, 24
        %v1560 = vpop.permute.xlu0 %1559
        %vm1593 = vcmask 228544
        %1594 = vst.msk [vmem:[#allocation3] sm:$0xff] %vm1593, %v1498
        %1595 = vst.msk [vmem:[#allocation3 + $0x8] sm:$0xff] %vm1593, %v1500
        %1596 = vst.msk [vmem:[#allocation3 + $0x10] sm:$0xff] %vm1593, %v1502
        %1597 = vst.msk [vmem:[#allocation3 + $0x18] sm:$0xff] %vm1593, %v1504
        %1598 = vst.msk [vmem:[#allocation3 + $0x20] sm:$0xff] %vm1593, %v1506
        %1599 = vst.msk [vmem:[#allocation3 + $0x28] sm:$0xff] %vm1593, %v1508
        %1600 = vst.msk [vmem:[#allocation3 + $0x30] sm:$0xff] %vm1593, %v1510
        %1601 = vst.msk [vmem:[#allocation3 + $0x38] sm:$0xff] %vm1593, %v1512
        %1602 = vst.msk [vmem:[#allocation3 + $0x40] sm:$0xff] %vm1593, %v1514
        %1603 = vst.msk [vmem:[#allocation3 + $0x48] sm:$0xff] %vm1593, %v1516
        %1604 = vst.msk [vmem:[#allocation3 + $0x50] sm:$0xff] %vm1593, %v1518
        %1605 = vst.msk [vmem:[#allocation3 + $0x58] sm:$0xff] %vm1593, %v1520
        %1606 = vst.msk [vmem:[#allocation3 + $0x60] sm:$0xff] %vm1593, %v1522
        %1607 = vst.msk [vmem:[#allocation3 + $0x68] sm:$0xff] %vm1593, %v1524
        %1608 = vst.msk [vmem:[#allocation3 + $0x70] sm:$0xff] %vm1593, %v1526
        %1609 = vst.msk [vmem:[#allocation3 + $0x78] sm:$0xff] %vm1593, %v1528
        %1610 = vst.msk [vmem:[#allocation3 + $0x80] sm:$0xff] %vm1593, %v1530
        %1611 = vst.msk [vmem:[#allocation3 + $0x88] sm:$0xff] %vm1593, %v1532
        %1612 = vst.msk [vmem:[#allocation3 + $0x90] sm:$0xff] %vm1593, %v1534
        %1613 = vst.msk [vmem:[#allocation3 + $0x98] sm:$0xff] %vm1593, %v1536
        %1614 = vst.msk [vmem:[#allocation3 + $0xa0] sm:$0xff] %vm1593, %v1538
        %1615 = vst.msk [vmem:[#allocation3 + $0xa8] sm:$0xff] %vm1593, %v1540
        %1616 = vst.msk [vmem:[#allocation3 + $0xb0] sm:$0xff] %vm1593, %v1542
        %1617 = vst.msk [vmem:[#allocation3 + $0xb8] sm:$0xff] %vm1593, %v1544
        %1618 = vst.msk [vmem:[#allocation3 + $0xc0] sm:$0xff] %vm1593, %v1546
        %1619 = vst.msk [vmem:[#allocation3 + $0xc8] sm:$0xff] %vm1593, %v1548
        %1620 = vst.msk [vmem:[#allocation3 + $0xd0] sm:$0xff] %vm1593, %v1550
        %1621 = vst.msk [vmem:[#allocation3 + $0xd8] sm:$0xff] %vm1593, %v1552
        %1622 = vst.msk [vmem:[#allocation3 + $0xe0] sm:$0xff] %vm1593, %v1554
        %1623 = vst.msk [vmem:[#allocation3 + $0xe8] sm:$0xff] %vm1593, %v1556
        %1624 = vst.msk [vmem:[#allocation3 + $0xf0] sm:$0xff] %vm1593, %v1558
        %1625 = vst.msk [vmem:[#allocation3 + $0xf8] sm:$0xff] %vm1593, %v1560
        %v1626 = vld [vmem:[%s1432 + $0x1] sm:$0xff]
        %v1627 = vld [vmem:[%s1432 + $0x9] sm:$0xff]
        %v1628 = vld [vmem:[%s1432 + $0x19] sm:$0xff]
        %v1629 = vld [vmem:[%s1432 + $0x21] sm:$0xff]
        %v1630 = vld [vmem:[%s1432 + $0x31] sm:$0xff]
        %v1631 = vld [vmem:[%s1432 + $0x39] sm:$0xff]
        %v1632 = vld [vmem:[%s1432 + $0x49] sm:$0xff]
        %v1633 = vld [vmem:[%s1432 + $0x51] sm:$0xff]
        %v1634 = vld [vmem:[%s1432 + $0x61] sm:$0xff]
        %v1635 = vld [vmem:[%s1432 + $0x69] sm:$0xff]
        %v1636 = vld [vmem:[%s1432 + $0x79] sm:$0xff]
        %v1637 = vld [vmem:[%s1432 + $0x81] sm:$0xff]
        %v1638 = vld [vmem:[%s1432 + $0x91] sm:$0xff]
        %v1639 = vld [vmem:[%s1432 + $0x99] sm:$0xff]
        %v1640 = vld [vmem:[%s1432 + $0xa9] sm:$0xff]
        %v1641 = vld [vmem:[%s1432 + $0xb1] sm:$0xff]
        %v1642 = vld [vmem:[%s1432 + $0xc1] sm:$0xff]
        %v1643 = vld [vmem:[%s1432 + $0xc9] sm:$0xff]
        %v1644 = vld [vmem:[%s1432 + $0xd9] sm:$0xff]
        %v1645 = vld [vmem:[%s1432 + $0xe1] sm:$0xff]
        %v1646 = vld [vmem:[%s1432 + $0xf1] sm:$0xff]
        %v1647 = vld [vmem:[%s1432 + $0xf9] sm:$0xff]
        %v1648 = vld [vmem:[%s1432 + $0x109] sm:$0xff]
        %v1649 = vld [vmem:[%s1432 + $0x111] sm:$0xff]
        %v1650 = vld [vmem:[%s1432 + $0x121] sm:$0xff]
        %v1651 = vld [vmem:[%s1432 + $0x129] sm:$0xff]
        %v1652 = vld [vmem:[%s1432 + $0x139] sm:$0xff]
        %v1653 = vld [vmem:[%s1432 + $0x141] sm:$0xff]
        %v1654 = vld [vmem:[%s1432 + $0x151] sm:$0xff]
        %v1655 = vld [vmem:[%s1432 + $0x159] sm:$0xff]
        %v1656 = vld [vmem:[%s1432 + $0x169] sm:$0xff]
        %v1657 = vld [vmem:[%s1432 + $0x171] sm:$0xff]
        %1690 = vrot.lane.b32.xlu0 %v1626, 28
        %v1691 = vpop.permute.xlu0 %1690
        %1692 = vrot.lane.b32.xlu0 %v1627, 28
        %v1693 = vpop.permute.xlu0 %1692
        %1694 = vrot.lane.b32.xlu0 %v1628, 28
        %v1695 = vpop.permute.xlu0 %1694
        %1696 = vrot.lane.b32.xlu0 %v1629, 28
        %v1697 = vpop.permute.xlu0 %1696
        %1698 = vrot.lane.b32.xlu0 %v1630, 28
        %v1699 = vpop.permute.xlu0 %1698
        %1700 = vrot.lane.b32.xlu0 %v1631, 28
        %v1701 = vpop.permute.xlu0 %1700
        %1702 = vrot.lane.b32.xlu0 %v1632, 28
        %v1703 = vpop.permute.xlu0 %1702
        %1704 = vrot.lane.b32.xlu0 %v1633, 28
        %v1705 = vpop.permute.xlu0 %1704
        %1706 = vrot.lane.b32.xlu0 %v1634, 28
        %v1707 = vpop.permute.xlu0 %1706
        %1708 = vrot.lane.b32.xlu0 %v1635, 28
        %v1709 = vpop.permute.xlu0 %1708
        %1710 = vrot.lane.b32.xlu0 %v1636, 28
        %v1711 = vpop.permute.xlu0 %1710
        %1712 = vrot.lane.b32.xlu0 %v1637, 28
        %v1713 = vpop.permute.xlu0 %1712
        %1714 = vrot.lane.b32.xlu0 %v1638, 28
        %v1715 = vpop.permute.xlu0 %1714
        %1716 = vrot.lane.b32.xlu0 %v1639, 28
        %v1717 = vpop.permute.xlu0 %1716
        %1718 = vrot.lane.b32.xlu0 %v1640, 28
        %v1719 = vpop.permute.xlu0 %1718
        %1720 = vrot.lane.b32.xlu0 %v1641, 28
        %v1721 = vpop.permute.xlu0 %1720
        %1722 = vrot.lane.b32.xlu0 %v1642, 28
        %v1723 = vpop.permute.xlu0 %1722
        %1724 = vrot.lane.b32.xlu0 %v1643, 28
        %v1725 = vpop.permute.xlu0 %1724
        %1726 = vrot.lane.b32.xlu0 %v1644, 28
        %v1727 = vpop.permute.xlu0 %1726
        %1728 = vrot.lane.b32.xlu0 %v1645, 28
        %v1729 = vpop.permute.xlu0 %1728
        %1730 = vrot.lane.b32.xlu0 %v1646, 28
        %v1731 = vpop.permute.xlu0 %1730
        %1732 = vrot.lane.b32.xlu0 %v1647, 28
        %v1733 = vpop.permute.xlu0 %1732
        %1734 = vrot.lane.b32.xlu0 %v1648, 28
        %v1735 = vpop.permute.xlu0 %1734
        %1736 = vrot.lane.b32.xlu0 %v1649, 28
        %v1737 = vpop.permute.xlu0 %1736
        %1738 = vrot.lane.b32.xlu0 %v1650, 28
        %v1739 = vpop.permute.xlu0 %1738
        %1740 = vrot.lane.b32.xlu0 %v1651, 28
        %v1741 = vpop.permute.xlu0 %1740
        %1742 = vrot.lane.b32.xlu0 %v1652, 28
        %v1743 = vpop.permute.xlu0 %1742
        %1744 = vrot.lane.b32.xlu0 %v1653, 28
        %v1745 = vpop.permute.xlu0 %1744
        %1746 = vrot.lane.b32.xlu0 %v1654, 28
        %v1747 = vpop.permute.xlu0 %1746
        %1748 = vrot.lane.b32.xlu0 %v1655, 28
        %v1749 = vpop.permute.xlu0 %1748
        %1750 = vrot.lane.b32.xlu0 %v1656, 28
        %v1751 = vpop.permute.xlu0 %1750
        %1752 = vrot.lane.b32.xlu0 %v1657, 28
        %v1753 = vpop.permute.xlu0 %1752
        %vm1786 = vcmask 261344
        %1787 = vst.msk [vmem:[#allocation3] sm:$0xff] %vm1786, %v1691
        %1788 = vst.msk [vmem:[#allocation3 + $0x8] sm:$0xff] %vm1786, %v1693
        %1789 = vst.msk [vmem:[#allocation3 + $0x10] sm:$0xff] %vm1786, %v1695
        %1790 = vst.msk [vmem:[#allocation3 + $0x18] sm:$0xff] %vm1786, %v1697
        %1791 = vst.msk [vmem:[#allocation3 + $0x20] sm:$0xff] %vm1786, %v1699
        %1792 = vst.msk [vmem:[#allocation3 + $0x28] sm:$0xff] %vm1786, %v1701
        %1793 = vst.msk [vmem:[#allocation3 + $0x30] sm:$0xff] %vm1786, %v1703
        %1794 = vst.msk [vmem:[#allocation3 + $0x38] sm:$0xff] %vm1786, %v1705
        %1795 = vst.msk [vmem:[#allocation3 + $0x40] sm:$0xff] %vm1786, %v1707
        %1796 = vst.msk [vmem:[#allocation3 + $0x48] sm:$0xff] %vm1786, %v1709
        %1797 = vst.msk [vmem:[#allocation3 + $0x50] sm:$0xff] %vm1786, %v1711
        %1798 = vst.msk [vmem:[#allocation3 + $0x58] sm:$0xff] %vm1786, %v1713
        %1799 = vst.msk [vmem:[#allocation3 + $0x60] sm:$0xff] %vm1786, %v1715
        %1800 = vst.msk [vmem:[#allocation3 + $0x68] sm:$0xff] %vm1786, %v1717
        %1801 = vst.msk [vmem:[#allocation3 + $0x70] sm:$0xff] %vm1786, %v1719
        %1802 = vst.msk [vmem:[#allocation3 + $0x78] sm:$0xff] %vm1786, %v1721
        %1803 = vst.msk [vmem:[#allocation3 + $0x80] sm:$0xff] %vm1786, %v1723
        %1804 = vst.msk [vmem:[#allocation3 + $0x88] sm:$0xff] %vm1786, %v1725
        %1805 = vst.msk [vmem:[#allocation3 + $0x90] sm:$0xff] %vm1786, %v1727
        %1806 = vst.msk [vmem:[#allocation3 + $0x98] sm:$0xff] %vm1786, %v1729
        %1807 = vst.msk [vmem:[#allocation3 + $0xa0] sm:$0xff] %vm1786, %v1731
        %1808 = vst.msk [vmem:[#allocation3 + $0xa8] sm:$0xff] %vm1786, %v1733
        %1809 = vst.msk [vmem:[#allocation3 + $0xb0] sm:$0xff] %vm1786, %v1735
        %1810 = vst.msk [vmem:[#allocation3 + $0xb8] sm:$0xff] %vm1786, %v1737
        %1811 = vst.msk [vmem:[#allocation3 + $0xc0] sm:$0xff] %vm1786, %v1739
        %1812 = vst.msk [vmem:[#allocation3 + $0xc8] sm:$0xff] %vm1786, %v1741
        %1813 = vst.msk [vmem:[#allocation3 + $0xd0] sm:$0xff] %vm1786, %v1743
        %1814 = vst.msk [vmem:[#allocation3 + $0xd8] sm:$0xff] %vm1786, %v1745
        %1815 = vst.msk [vmem:[#allocation3 + $0xe0] sm:$0xff] %vm1786, %v1747
        %1816 = vst.msk [vmem:[#allocation3 + $0xe8] sm:$0xff] %vm1786, %v1749
        %1817 = vst.msk [vmem:[#allocation3 + $0xf0] sm:$0xff] %vm1786, %v1751
        %1818 = vst.msk [vmem:[#allocation3 + $0xf8] sm:$0xff] %vm1786, %v1753
        %v1819 = vld [vmem:[%s1432 + $0x2] sm:$0xff]
        %v1820 = vld [vmem:[%s1432 + $0xa] sm:$0xff]
        %v1821 = vld [vmem:[%s1432 + $0x1a] sm:$0xff]
        %v1822 = vld [vmem:[%s1432 + $0x22] sm:$0xff]
        %v1823 = vld [vmem:[%s1432 + $0x32] sm:$0xff]
        %v1824 = vld [vmem:[%s1432 + $0x3a] sm:$0xff]
        %v1825 = vld [vmem:[%s1432 + $0x4a] sm:$0xff]
        %v1826 = vld [vmem:[%s1432 + $0x52] sm:$0xff]
        %v1827 = vld [vmem:[%s1432 + $0x62] sm:$0xff]
        %v1828 = vld [vmem:[%s1432 + $0x6a] sm:$0xff]
        %v1829 = vld [vmem:[%s1432 + $0x7a] sm:$0xff]
        %v1830 = vld [vmem:[%s1432 + $0x82] sm:$0xff]
        %v1831 = vld [vmem:[%s1432 + $0x92] sm:$0xff]
        %v1832 = vld [vmem:[%s1432 + $0x9a] sm:$0xff]
        %v1833 = vld [vmem:[%s1432 + $0xaa] sm:$0xff]
        %v1834 = vld [vmem:[%s1432 + $0xb2] sm:$0xff]
        %v1835 = vld [vmem:[%s1432 + $0xc2] sm:$0xff]
        %v1836 = vld [vmem:[%s1432 + $0xca] sm:$0xff]
        %v1837 = vld [vmem:[%s1432 + $0xda] sm:$0xff]
        %v1838 = vld [vmem:[%s1432 + $0xe2] sm:$0xff]
        %v1839 = vld [vmem:[%s1432 + $0xf2] sm:$0xff]
        %v1840 = vld [vmem:[%s1432 + $0xfa] sm:$0xff]
        %v1841 = vld [vmem:[%s1432 + $0x10a] sm:$0xff]
        %v1842 = vld [vmem:[%s1432 + $0x112] sm:$0xff]
        %v1843 = vld [vmem:[%s1432 + $0x122] sm:$0xff]
        %v1844 = vld [vmem:[%s1432 + $0x12a] sm:$0xff]
        %v1845 = vld [vmem:[%s1432 + $0x13a] sm:$0xff]
        %v1846 = vld [vmem:[%s1432 + $0x142] sm:$0xff]
        %v1847 = vld [vmem:[%s1432 + $0x152] sm:$0xff]
        %v1848 = vld [vmem:[%s1432 + $0x15a] sm:$0xff]
        %v1849 = vld [vmem:[%s1432 + $0x16a] sm:$0xff]
        %v1850 = vld [vmem:[%s1432 + $0x172] sm:$0xff]
        %1883 = vrot.lane.b32.xlu0 %v1819, 32
        %v1884 = vpop.permute.xlu0 %1883
        %1885 = vrot.lane.b32.xlu0 %v1820, 32
        %v1886 = vpop.permute.xlu0 %1885
        %1887 = vrot.lane.b32.xlu0 %v1821, 32
        %v1888 = vpop.permute.xlu0 %1887
        %1889 = vrot.lane.b32.xlu0 %v1822, 32
        %v1890 = vpop.permute.xlu0 %1889
        %1891 = vrot.lane.b32.xlu0 %v1823, 32
        %v1892 = vpop.permute.xlu0 %1891
        %1893 = vrot.lane.b32.xlu0 %v1824, 32
        %v1894 = vpop.permute.xlu0 %1893
        %1895 = vrot.lane.b32.xlu0 %v1825, 32
        %v1896 = vpop.permute.xlu0 %1895
        %1897 = vrot.lane.b32.xlu0 %v1826, 32
        %v1898 = vpop.permute.xlu0 %1897
        %1899 = vrot.lane.b32.xlu0 %v1827, 32
        %v1900 = vpop.permute.xlu0 %1899
        %1901 = vrot.lane.b32.xlu0 %v1828, 32
        %v1902 = vpop.permute.xlu0 %1901
        %1903 = vrot.lane.b32.xlu0 %v1829, 32
        %v1904 = vpop.permute.xlu0 %1903
        %1905 = vrot.lane.b32.xlu0 %v1830, 32
        %v1906 = vpop.permute.xlu0 %1905
        %1907 = vrot.lane.b32.xlu0 %v1831, 32
        %v1908 = vpop.permute.xlu0 %1907
        %1909 = vrot.lane.b32.xlu0 %v1832, 32
        %v1910 = vpop.permute.xlu0 %1909
        %1911 = vrot.lane.b32.xlu0 %v1833, 32
        %v1912 = vpop.permute.xlu0 %1911
        %1913 = vrot.lane.b32.xlu0 %v1834, 32
        %v1914 = vpop.permute.xlu0 %1913
        %1915 = vrot.lane.b32.xlu0 %v1835, 32
        %v1916 = vpop.permute.xlu0 %1915
        %1917 = vrot.lane.b32.xlu0 %v1836, 32
        %v1918 = vpop.permute.xlu0 %1917
        %1919 = vrot.lane.b32.xlu0 %v1837, 32
        %v1920 = vpop.permute.xlu0 %1919
        %1921 = vrot.lane.b32.xlu0 %v1838, 32
        %v1922 = vpop.permute.xlu0 %1921
        %1923 = vrot.lane.b32.xlu0 %v1839, 32
        %v1924 = vpop.permute.xlu0 %1923
        %1925 = vrot.lane.b32.xlu0 %v1840, 32
        %v1926 = vpop.permute.xlu0 %1925
        %1927 = vrot.lane.b32.xlu0 %v1841, 32
        %v1928 = vpop.permute.xlu0 %1927
        %1929 = vrot.lane.b32.xlu0 %v1842, 32
        %v1930 = vpop.permute.xlu0 %1929
        %1931 = vrot.lane.b32.xlu0 %v1843, 32
        %v1932 = vpop.permute.xlu0 %1931
        %1933 = vrot.lane.b32.xlu0 %v1844, 32
        %v1934 = vpop.permute.xlu0 %1933
        %1935 = vrot.lane.b32.xlu0 %v1845, 32
        %v1936 = vpop.permute.xlu0 %1935
        %1937 = vrot.lane.b32.xlu0 %v1846, 32
        %v1938 = vpop.permute.xlu0 %1937
        %1939 = vrot.lane.b32.xlu0 %v1847, 32
        %v1940 = vpop.permute.xlu0 %1939
        %1941 = vrot.lane.b32.xlu0 %v1848, 32
        %v1942 = vpop.permute.xlu0 %1941
        %1943 = vrot.lane.b32.xlu0 %v1849, 32
        %v1944 = vpop.permute.xlu0 %1943
        %1945 = vrot.lane.b32.xlu0 %v1850, 32
        %v1946 = vpop.permute.xlu0 %1945
        %vm1979 = vcmask 294144
        %1980 = vst.msk [vmem:[#allocation3] sm:$0xff] %vm1979, %v1884
        %1981 = vst.msk [vmem:[#allocation3 + $0x8] sm:$0xff] %vm1979, %v1886
        %1982 = vst.msk [vmem:[#allocation3 + $0x10] sm:$0xff] %vm1979, %v1888
        %1983 = vst.msk [vmem:[#allocation3 + $0x18] sm:$0xff] %vm1979, %v1890
        %1984 = vst.msk [vmem:[#allocation3 + $0x20] sm:$0xff] %vm1979, %v1892
        %1985 = vst.msk [vmem:[#allocation3 + $0x28] sm:$0xff] %vm1979, %v1894
        %1986 = vst.msk [vmem:[#allocation3 + $0x30] sm:$0xff] %vm1979, %v1896
        %1987 = vst.msk [vmem:[#allocation3 + $0x38] sm:$0xff] %vm1979, %v1898
        %1988 = vst.msk [vmem:[#allocation3 + $0x40] sm:$0xff] %vm1979, %v1900
        %1989 = vst.msk [vmem:[#allocation3 + $0x48] sm:$0xff] %vm1979, %v1902
        %1990 = vst.msk [vmem:[#allocation3 + $0x50] sm:$0xff] %vm1979, %v1904
        %1991 = vst.msk [vmem:[#allocation3 + $0x58] sm:$0xff] %vm1979, %v1906
        %1992 = vst.msk [vmem:[#allocation3 + $0x60] sm:$0xff] %vm1979, %v1908
        %1993 = vst.msk [vmem:[#allocation3 + $0x68] sm:$0xff] %vm1979, %v1910
        %1994 = vst.msk [vmem:[#allocation3 + $0x70] sm:$0xff] %vm1979, %v1912
        %1995 = vst.msk [vmem:[#allocation3 + $0x78] sm:$0xff] %vm1979, %v1914
        %1996 = vst.msk [vmem:[#allocation3 + $0x80] sm:$0xff] %vm1979, %v1916
        %1997 = vst.msk [vmem:[#allocation3 + $0x88] sm:$0xff] %vm1979, %v1918
        %1998 = vst.msk [vmem:[#allocation3 + $0x90] sm:$0xff] %vm1979, %v1920
        %1999 = vst.msk [vmem:[#allocation3 + $0x98] sm:$0xff] %vm1979, %v1922
        %2000 = vst.msk [vmem:[#allocation3 + $0xa0] sm:$0xff] %vm1979, %v1924
        %2001 = vst.msk [vmem:[#allocation3 + $0xa8] sm:$0xff] %vm1979, %v1926
        %2002 = vst.msk [vmem:[#allocation3 + $0xb0] sm:$0xff] %vm1979, %v1928
        %2003 = vst.msk [vmem:[#allocation3 + $0xb8] sm:$0xff] %vm1979, %v1930
        %2004 = vst.msk [vmem:[#allocation3 + $0xc0] sm:$0xff] %vm1979, %v1932
        %2005 = vst.msk [vmem:[#allocation3 + $0xc8] sm:$0xff] %vm1979, %v1934
        %2006 = vst.msk [vmem:[#allocation3 + $0xd0] sm:$0xff] %vm1979, %v1936
        %2007 = vst.msk [vmem:[#allocation3 + $0xd8] sm:$0xff] %vm1979, %v1938
        %2008 = vst.msk [vmem:[#allocation3 + $0xe0] sm:$0xff] %vm1979, %v1940
        %2009 = vst.msk [vmem:[#allocation3 + $0xe8] sm:$0xff] %vm1979, %v1942
        %2010 = vst.msk [vmem:[#allocation3 + $0xf0] sm:$0xff] %vm1979, %v1944
        %2011 = vst.msk [vmem:[#allocation3 + $0xf8] sm:$0xff] %vm1979, %v1946
        %v2012 = vld [vmem:[#allocation3] sm:$0xff]
        %v2013 = vld [vmem:[#allocation3 + $0x8] sm:$0xff]
        %v2014 = vld [vmem:[#allocation3 + $0x10] sm:$0xff]
        %v2015 = vld [vmem:[#allocation3 + $0x18] sm:$0xff]
        %v2016 = vld [vmem:[#allocation3 + $0x20] sm:$0xff]
        %v2017 = vld [vmem:[#allocation3 + $0x28] sm:$0xff]
        %v2018 = vld [vmem:[#allocation3 + $0x30] sm:$0xff]
        %v2019 = vld [vmem:[#allocation3 + $0x38] sm:$0xff]
        %v2020 = vld [vmem:[#allocation3 + $0x40] sm:$0xff]
        %v2021 = vld [vmem:[#allocation3 + $0x48] sm:$0xff]
        %v2022 = vld [vmem:[#allocation3 + $0x50] sm:$0xff]
        %v2023 = vld [vmem:[#allocation3 + $0x58] sm:$0xff]
        %v2024 = vld [vmem:[#allocation3 + $0x60] sm:$0xff]
        %v2025 = vld [vmem:[#allocation3 + $0x68] sm:$0xff]
        %v2026 = vld [vmem:[#allocation3 + $0x70] sm:$0xff]
        %v2027 = vld [vmem:[#allocation3 + $0x78] sm:$0xff]
        %v2028 = vld [vmem:[#allocation3 + $0x80] sm:$0xff]
        %v2029 = vld [vmem:[#allocation3 + $0x88] sm:$0xff]
        %v2030 = vld [vmem:[#allocation3 + $0x90] sm:$0xff]
        %v2031 = vld [vmem:[#allocation3 + $0x98] sm:$0xff]
        %v2032 = vld [vmem:[#allocation3 + $0xa0] sm:$0xff]
        %v2033 = vld [vmem:[#allocation3 + $0xa8] sm:$0xff]
        %v2034 = vld [vmem:[#allocation3 + $0xb0] sm:$0xff]
        %v2035 = vld [vmem:[#allocation3 + $0xb8] sm:$0xff]
        %v2036 = vld [vmem:[#allocation3 + $0xc0] sm:$0xff]
        %v2037 = vld [vmem:[#allocation3 + $0xc8] sm:$0xff]
        %v2038 = vld [vmem:[#allocation3 + $0xd0] sm:$0xff]
        %v2039 = vld [vmem:[#allocation3 + $0xd8] sm:$0xff]
        %v2040 = vld [vmem:[#allocation3 + $0xe0] sm:$0xff]
        %v2041 = vld [vmem:[#allocation3 + $0xe8] sm:$0xff]
        %v2042 = vld [vmem:[#allocation3 + $0xf0] sm:$0xff]
        %v2043 = vld [vmem:[#allocation3 + $0xf8] sm:$0xff]
        %v2044 = vld [vmem:[%s1] sm:$0xff]
        %v2045 = vld [vmem:[%s1 + $0x8] sm:$0xff]
        %v2046 = vld [vmem:[%s1 + $0x10] sm:$0xff]
        %v2047 = vld [vmem:[%s1 + $0x18] sm:$0xff]
        %v2048 = vld [vmem:[%s1 + $0x20] sm:$0xf]
        %v2049 = vld [vmem:[%s2] sm:$0x1]
        %v2051 = vlaneseq
        %v2052 = vshrl.u32 %v2051, 7
        %v2053 = vsub.s32 0, %v2052
        %v2054 = vrot.slane %v2049, %v2053
        %vm2056 = vcmask 293888
        %v2058 = vsel %vm2056, %v2012, 0
        %v2061 = vsel %vm2056, %v2013, 0
        %v2064 = vsel %vm2056, %v2014, 0
        %v2067 = vsel %vm2056, %v2015, 0
        %v2070 = vsel %vm2056, %v2016, 0
        %v2073 = vsel %vm2056, %v2017, 0
        %v2076 = vsel %vm2056, %v2018, 0
        %v2079 = vsel %vm2056, %v2019, 0
        %v2082 = vsel %vm2056, %v2020, 0
        %v2085 = vsel %vm2056, %v2021, 0
        %v2088 = vsel %vm2056, %v2022, 0
        %v2091 = vsel %vm2056, %v2023, 0
        %v2094 = vsel %vm2056, %v2024, 0
        %v2097 = vsel %vm2056, %v2025, 0
        %v2100 = vsel %vm2056, %v2026, 0
        %v2103 = vsel %vm2056, %v2027, 0
        %v2106 = vsel %vm2056, %v2028, 0
        %v2109 = vsel %vm2056, %v2029, 0
        %v2112 = vsel %vm2056, %v2030, 0
        %v2115 = vsel %vm2056, %v2031, 0
        %v2118 = vsel %vm2056, %v2032, 0
        %v2121 = vsel %vm2056, %v2033, 0
        %v2124 = vsel %vm2056, %v2034, 0
        %v2127 = vsel %vm2056, %v2035, 0
        %v2130 = vsel %vm2056, %v2036, 0
        %v2133 = vsel %vm2056, %v2037, 0
        %v2136 = vsel %vm2056, %v2038, 0
        %v2139 = vsel %vm2056, %v2039, 0
        %v2142 = vsel %vm2056, %v2040, 0
        %v2145 = vsel %vm2056, %v2041, 0
        %v2148 = vsel %vm2056, %v2042, 0
        %v2151 = vsel %vm2056, %v2043, 0
        %vm2153 = vcmask 1043456
        %v2155 = vsel %vm2153, %v2048, 0
        %2157 = vmatprep.subr.mxu0 0.0
        %2158 = vmatpush1.msra.mxu0 %v2044
        %2159 = vmatprep.subr.mxu0 0.0
        %2160 = vmatpush1.msra.mxu0 %v2045
        %2161 = vmatprep.subr.mxu0 0.0
        %2162 = vmatpush1.msra.mxu0 %v2046
        %2163 = vmatprep.subr.mxu0 0.0
        %2164 = vmatpush1.msra.mxu0 %v2047
        %2165 = vmatprep.subr.mxu0 0.0
        %2166 = vmatpush1.msra.mxu0 %v2155
        %2167 = vmatprep.subr.mxu0 0.0
        %2168 = vmatpush1.msra.mxu0 0.0
        %2169 = vmatprep.subr.mxu0 0.0
        %2170 = vmatpush1.msra.mxu0 0.0
        %2171 = vmatprep.subr.mxu0 0.0
        %2172 = vmatpush1.msra.mxu0 0.0
        %2173 = vmatprep.subr.mxu0 0.0
        %2174 = vmatpush1.msra.mxu0 0.0
        %2175 = vmatprep.subr.mxu0 0.0
        %2176 = vmatpush1.msra.mxu0 0.0
        %2177 = vmatprep.subr.mxu0 0.0
        %2178 = vmatpush1.msra.mxu0 0.0
        %2179 = vmatprep.subr.mxu0 0.0
        %2180 = vmatpush1.msra.mxu0 0.0
        %2181 = vmatprep.subr.mxu0 0.0
        %2182 = vmatpush1.msra.mxu0 0.0
        %2183 = vmatprep.subr.mxu0 0.0
        %2184 = vmatpush1.msra.mxu0 0.0
        %2185 = vmatprep.subr.mxu0 0.0
        %2186 = vmatpush1.msra.mxu0 0.0
        %2187 = vmatprep.subr.mxu0 0.0
        %2188 = vmatpush1.msra.mxu0 0.0
        %2189 = vmatprep.subr.mxu0 0.0
        %2190 = vmatpush1.msra.mxu0 0.0
        %2191 = vmatprep.subr.mxu0 0.0
        %2192 = vmatpush1.msra.mxu0 0.0
        %2193 = vmatprep.subr.mxu0 0.0
        %2194 = vmatpush1.msra.mxu0 0.0
        %2195 = vmatprep.subr.mxu0 0.0
        %2196 = vmatpush1.msra.mxu0 0.0
        %2197 = vmatprep.subr.mxu0 0.0
        %2198 = vmatpush1.msra.mxu0 0.0
        %2199 = vmatprep.subr.mxu0 0.0
        %2200 = vmatpush1.msra.mxu0 0.0
        %2201 = vmatprep.subr.mxu0 0.0
        %2202 = vmatpush1.msra.mxu0 0.0
        %2203 = vmatprep.subr.mxu0 0.0
        %2204 = vmatpush1.msra.mxu0 0.0
        %2205 = vmatprep.subr.mxu0 0.0
        %2206 = vmatpush1.msra.mxu0 0.0
        %2207 = vmatprep.subr.mxu0 0.0
        %2208 = vmatpush1.msra.mxu0 0.0
        %2209 = vmatprep.subr.mxu0 0.0
        %2210 = vmatpush1.msra.mxu0 0.0
        %2211 = vmatprep.subr.mxu0 0.0
        %2212 = vmatpush1.msra.mxu0 0.0
        %2213 = vmatprep.subr.mxu0 0.0
        %2214 = vmatpush1.msra.mxu0 0.0
        %2215 = vmatprep.subr.mxu0 0.0
        %2216 = vmatpush1.msra.mxu0 0.0
        %2217 = vmatprep.subr.mxu0 0.0
        %2218 = vmatpush1.msra.mxu0 0.0
        %2219 = vmatprep.subr.mxu0 0.0
        %2220 = vmatpush1.msra.mxu0 0.0
        %2221 = vmatprep.mubr.f32.mxu0 0.0
        %2222 = vmatmul.mubr.f32.gmra.mrb[0].mxu0 %v2058
        %v2223 = vpop.f32.mrb[0].mxu0
        %v2224 = vadd.f32 %v2054, %v2223
        %v2225 = vpop.f32.mrb[0].mxu0
        %2226 = vmatprep.mubr.f32.mxu0 0.0
        %2227 = vmatmul.mubr.f32.gmra.mrb[0].mxu0 %v2061
        %v2228 = vpop.f32.mrb[0].mxu0
        %v2229 = vadd.f32 %v2054, %v2228
        %v2230 = vpop.f32.mrb[0].mxu0
        %2231 = vmatprep.mubr.f32.mxu0 0.0
        %2232 = vmatmul.mubr.f32.gmra.mrb[0].mxu0 %v2064
        %v2233 = vpop.f32.mrb[0].mxu0
        %v2234 = vadd.f32 %v2054, %v2233
        %v2235 = vpop.f32.mrb[0].mxu0
        %2236 = vmatprep.mubr.f32.mxu0 0.0
        %2237 = vmatmul.mubr.f32.gmra.mrb[0].mxu0 %v2067
        %v2238 = vpop.f32.mrb[0].mxu0
        %v2239 = vadd.f32 %v2054, %v2238
        %v2240 = vpop.f32.mrb[0].mxu0
        %2241 = vmatprep.mubr.f32.mxu0 0.0
        %2242 = vmatmul.mubr.f32.gmra.mrb[0].mxu0 %v2070
        %v2243 = vpop.f32.mrb[0].mxu0
        %v2244 = vadd.f32 %v2054, %v2243
        %v2245 = vpop.f32.mrb[0].mxu0
        %2246 = vmatprep.mubr.f32.mxu0 0.0
        %2247 = vmatmul.mubr.f32.gmra.mrb[0].mxu0 %v2073
        %v2248 = vpop.f32.mrb[0].mxu0
        %v2249 = vadd.f32 %v2054, %v2248
        %v2250 = vpop.f32.mrb[0].mxu0
        %2251 = vmatprep.mubr.f32.mxu0 0.0
        %2252 = vmatmul.mubr.f32.gmra.mrb[0].mxu0 %v2076
        %v2253 = vpop.f32.mrb[0].mxu0
        %v2254 = vadd.f32 %v2054, %v2253
        %v2255 = vpop.f32.mrb[0].mxu0
        %2256 = vmatprep.mubr.f32.mxu0 0.0
        %2257 = vmatmul.mubr.f32.gmra.mrb[0].mxu0 %v2079
        %v2258 = vpop.f32.mrb[0].mxu0
        %v2259 = vadd.f32 %v2054, %v2258
        %v2260 = vpop.f32.mrb[0].mxu0
        %2261 = vmatprep.mubr.f32.mxu0 0.0
        %2262 = vmatmul.mubr.f32.gmra.mrb[0].mxu0 %v2082
        %v2263 = vpop.f32.mrb[0].mxu0
        %v2264 = vadd.f32 %v2054, %v2263
        %v2265 = vpop.f32.mrb[0].mxu0
        %2266 = vmatprep.mubr.f32.mxu0 0.0
        %2267 = vmatmul.mubr.f32.gmra.mrb[0].mxu0 %v2085
        %v2268 = vpop.f32.mrb[0].mxu0
        %v2269 = vadd.f32 %v2054, %v2268
        %v2270 = vpop.f32.mrb[0].mxu0
        %2271 = vmatprep.mubr.f32.mxu0 0.0
        %2272 = vmatmul.mubr.f32.gmra.mrb[0].mxu0 %v2088
        %v2273 = vpop.f32.mrb[0].mxu0
        %v2274 = vadd.f32 %v2054, %v2273
        %v2275 = vpop.f32.mrb[0].mxu0
        %2276 = vmatprep.mubr.f32.mxu0 0.0
        %2277 = vmatmul.mubr.f32.gmra.mrb[0].mxu0 %v2091
        %v2278 = vpop.f32.mrb[0].mxu0
        %v2279 = vadd.f32 %v2054, %v2278
        %v2280 = vpop.f32.mrb[0].mxu0
        %2281 = vmatprep.mubr.f32.mxu0 0.0
        %2282 = vmatmul.mubr.f32.gmra.mrb[0].mxu0 %v2094
        %v2283 = vpop.f32.mrb[0].mxu0
        %v2284 = vadd.f32 %v2054, %v2283
        %v2285 = vpop.f32.mrb[0].mxu0
        %2286 = vmatprep.mubr.f32.mxu0 0.0
        %2287 = vmatmul.mubr.f32.gmra.mrb[0].mxu0 %v2097
        %v2288 = vpop.f32.mrb[0].mxu0
        %v2289 = vadd.f32 %v2054, %v2288
        %v2290 = vpop.f32.mrb[0].mxu0
        %2291 = vmatprep.mubr.f32.mxu0 0.0
        %2292 = vmatmul.mubr.f32.gmra.mrb[0].mxu0 %v2100
        %v2293 = vpop.f32.mrb[0].mxu0
        %v2294 = vadd.f32 %v2054, %v2293
        %v2295 = vpop.f32.mrb[0].mxu0
        %2296 = vmatprep.mubr.f32.mxu0 0.0
        %2297 = vmatmul.mubr.f32.gmra.mrb[0].mxu0 %v2103
        %v2298 = vpop.f32.mrb[0].mxu0
        %v2299 = vadd.f32 %v2054, %v2298
        %v2300 = vpop.f32.mrb[0].mxu0
        %2301 = vmatprep.mubr.f32.mxu0 0.0
        %2302 = vmatmul.mubr.f32.gmra.mrb[0].mxu0 %v2106
        %v2303 = vpop.f32.mrb[0].mxu0
        %v2304 = vadd.f32 %v2054, %v2303
        %v2305 = vpop.f32.mrb[0].mxu0
        %2306 = vmatprep.mubr.f32.mxu0 0.0
        %2307 = vmatmul.mubr.f32.gmra.mrb[0].mxu0 %v2109
        %v2308 = vpop.f32.mrb[0].mxu0
        %v2309 = vadd.f32 %v2054, %v2308
        %v2310 = vpop.f32.mrb[0].mxu0
        %2311 = vmatprep.mubr.f32.mxu0 0.0
        %2312 = vmatmul.mubr.f32.gmra.mrb[0].mxu0 %v2112
        %v2313 = vpop.f32.mrb[0].mxu0
        %v2314 = vadd.f32 %v2054, %v2313
        %v2315 = vpop.f32.mrb[0].mxu0
        %2316 = vmatprep.mubr.f32.mxu0 0.0
        %2317 = vmatmul.mubr.f32.gmra.mrb[0].mxu0 %v2115
        %v2318 = vpop.f32.mrb[0].mxu0
        %v2319 = vadd.f32 %v2054, %v2318
        %v2320 = vpop.f32.mrb[0].mxu0
        %2321 = vmatprep.mubr.f32.mxu0 0.0
        %2322 = vmatmul.mubr.f32.gmra.mrb[0].mxu0 %v2118
        %v2323 = vpop.f32.mrb[0].mxu0
        %v2324 = vadd.f32 %v2054, %v2323
        %v2325 = vpop.f32.mrb[0].mxu0
        %2326 = vmatprep.mubr.f32.mxu0 0.0
        %2327 = vmatmul.mubr.f32.gmra.mrb[0].mxu0 %v2121
        %v2328 = vpop.f32.mrb[0].mxu0
        %v2329 = vadd.f32 %v2054, %v2328
        %v2330 = vpop.f32.mrb[0].mxu0
        %2331 = vmatprep.mubr.f32.mxu0 0.0
        %2332 = vmatmul.mubr.f32.gmra.mrb[0].mxu0 %v2124
        %v2333 = vpop.f32.mrb[0].mxu0
        %v2334 = vadd.f32 %v2054, %v2333
        %v2335 = vpop.f32.mrb[0].mxu0
        %2336 = vmatprep.mubr.f32.mxu0 0.0
        %2337 = vmatmul.mubr.f32.gmra.mrb[0].mxu0 %v2127
        %v2338 = vpop.f32.mrb[0].mxu0
        %v2339 = vadd.f32 %v2054, %v2338
        %v2340 = vpop.f32.mrb[0].mxu0
        %2341 = vmatprep.mubr.f32.mxu0 0.0
        %2342 = vmatmul.mubr.f32.gmra.mrb[0].mxu0 %v2130
        %v2343 = vpop.f32.mrb[0].mxu0
        %v2344 = vadd.f32 %v2054, %v2343
        %v2345 = vpop.f32.mrb[0].mxu0
        %2346 = vmatprep.mubr.f32.mxu0 0.0
        %2347 = vmatmul.mubr.f32.gmra.mrb[0].mxu0 %v2133
        %v2348 = vpop.f32.mrb[0].mxu0
        %v2349 = vadd.f32 %v2054, %v2348
        %v2350 = vpop.f32.mrb[0].mxu0
        %2351 = vmatprep.mubr.f32.mxu0 0.0
        %2352 = vmatmul.mubr.f32.gmra.mrb[0].mxu0 %v2136
        %v2353 = vpop.f32.mrb[0].mxu0
        %v2354 = vadd.f32 %v2054, %v2353
        %v2355 = vpop.f32.mrb[0].mxu0
        %2356 = vmatprep.mubr.f32.mxu0 0.0
        %2357 = vmatmul.mubr.f32.gmra.mrb[0].mxu0 %v2139
        %v2358 = vpop.f32.mrb[0].mxu0
        %v2359 = vadd.f32 %v2054, %v2358
        %v2360 = vpop.f32.mrb[0].mxu0
        %2361 = vmatprep.mubr.f32.mxu0 0.0
        %2362 = vmatmul.mubr.f32.gmra.mrb[0].mxu0 %v2142
        %v2363 = vpop.f32.mrb[0].mxu0
        %v2364 = vadd.f32 %v2054, %v2363
        %v2365 = vpop.f32.mrb[0].mxu0
        %2366 = vmatprep.mubr.f32.mxu0 0.0
        %2367 = vmatmul.mubr.f32.gmra.mrb[0].mxu0 %v2145
        %v2368 = vpop.f32.mrb[0].mxu0
        %v2369 = vadd.f32 %v2054, %v2368
        %v2370 = vpop.f32.mrb[0].mxu0
        %2371 = vmatprep.mubr.f32.mxu0 0.0
        %2372 = vmatmul.mubr.f32.gmra.mrb[0].mxu0 %v2148
        %v2373 = vpop.f32.mrb[0].mxu0
        %v2374 = vadd.f32 %v2054, %v2373
        %v2375 = vpop.f32.mrb[0].mxu0
        %2376 = vmatprep.mubr.f32.mxu0 0.0
        %2377 = vmatmul.mubr.f32.gmra.mrb[0].mxu0 %v2151
        %v2378 = vpop.f32.mrb[0].mxu0
        %v2379 = vadd.f32 %v2054, %v2378
        %v2380 = vpop.f32.mrb[0].mxu0
        %2381 = vdwg.mxu0
        %v2382 = vmax.f32 %v2224, 0.0
        %v2383 = vmax.f32 %v2229, 0.0
        %v2384 = vmax.f32 %v2234, 0.0
        %v2385 = vmax.f32 %v2239, 0.0
        %v2386 = vmax.f32 %v2244, 0.0
        %v2387 = vmax.f32 %v2249, 0.0
        %v2388 = vmax.f32 %v2254, 0.0
        %v2389 = vmax.f32 %v2259, 0.0
        %v2390 = vmax.f32 %v2264, 0.0
        %v2391 = vmax.f32 %v2269, 0.0
        %v2392 = vmax.f32 %v2274, 0.0
        %v2393 = vmax.f32 %v2279, 0.0
        %v2394 = vmax.f32 %v2284, 0.0
        %v2395 = vmax.f32 %v2289, 0.0
        %v2396 = vmax.f32 %v2294, 0.0
        %v2397 = vmax.f32 %v2299, 0.0
        %v2398 = vmax.f32 %v2304, 0.0
        %v2399 = vmax.f32 %v2309, 0.0
        %v2400 = vmax.f32 %v2314, 0.0
        %v2401 = vmax.f32 %v2319, 0.0
        %v2402 = vmax.f32 %v2324, 0.0
        %v2403 = vmax.f32 %v2329, 0.0
        %v2404 = vmax.f32 %v2334, 0.0
        %v2405 = vmax.f32 %v2339, 0.0
        %v2406 = vmax.f32 %v2344, 0.0
        %v2407 = vmax.f32 %v2349, 0.0
        %v2408 = vmax.f32 %v2354, 0.0
        %v2409 = vmax.f32 %v2359, 0.0
        %v2410 = vmax.f32 %v2364, 0.0
        %v2411 = vmax.f32 %v2369, 0.0
        %v2412 = vmax.f32 %v2374, 0.0
        %v2413 = vmax.f32 %v2379, 0.0
        %2414 = vst.msk [vmem:[%s291 + $0x1] sm:$0xff] %vm292, %v2382
        %2415 = vst.msk [vmem:[%s291 + $0x9] sm:$0xff] %vm292, %v2383
        %2416 = vst.msk [vmem:[%s291 + $0x19] sm:$0xff] %vm292, %v2384
        %2417 = vst.msk [vmem:[%s291 + $0x21] sm:$0xff] %vm292, %v2385
        %2418 = vst.msk [vmem:[%s291 + $0x31] sm:$0xff] %vm292, %v2386
        %2419 = vst.msk [vmem:[%s291 + $0x39] sm:$0xff] %vm292, %v2387
        %2420 = vst.msk [vmem:[%s291 + $0x49] sm:$0xff] %vm292, %v2388
        %2421 = vst.msk [vmem:[%s291 + $0x51] sm:$0xff] %vm292, %v2389
        %2422 = vst.msk [vmem:[%s291 + $0x61] sm:$0xff] %vm292, %v2390
        %2423 = vst.msk [vmem:[%s291 + $0x69] sm:$0xff] %vm292, %v2391
        %2424 = vst.msk [vmem:[%s291 + $0x79] sm:$0xff] %vm292, %v2392
        %2425 = vst.msk [vmem:[%s291 + $0x81] sm:$0xff] %vm292, %v2393
        %2426 = vst.msk [vmem:[%s291 + $0x91] sm:$0xff] %vm292, %v2394
        %2427 = vst.msk [vmem:[%s291 + $0x99] sm:$0xff] %vm292, %v2395
        %2428 = vst.msk [vmem:[%s291 + $0xa9] sm:$0xff] %vm292, %v2396
        %2429 = vst.msk [vmem:[%s291 + $0xb1] sm:$0xff] %vm292, %v2397
        %2430 = vst.msk [vmem:[%s291 + $0xc1] sm:$0xff] %vm292, %v2398
        %2431 = vst.msk [vmem:[%s291 + $0xc9] sm:$0xff] %vm292, %v2399
        %2432 = vst.msk [vmem:[%s291 + $0xd9] sm:$0xff] %vm292, %v2400
        %2433 = vst.msk [vmem:[%s291 + $0xe1] sm:$0xff] %vm292, %v2401
        %2434 = vst.msk [vmem:[%s291 + $0xf1] sm:$0xff] %vm292, %v2402
        %2435 = vst.msk [vmem:[%s291 + $0xf9] sm:$0xff] %vm292, %v2403
        %2436 = vst.msk [vmem:[%s291 + $0x109] sm:$0xff] %vm292, %v2404
        %2437 = vst.msk [vmem:[%s291 + $0x111] sm:$0xff] %vm292, %v2405
        %2438 = vst.msk [vmem:[%s291 + $0x121] sm:$0xff] %vm292, %v2406
        %2439 = vst.msk [vmem:[%s291 + $0x129] sm:$0xff] %vm292, %v2407
        %2440 = vst.msk [vmem:[%s291 + $0x139] sm:$0xff] %vm292, %v2408
        %2441 = vst.msk [vmem:[%s291 + $0x141] sm:$0xff] %vm292, %v2409
        %2442 = vst.msk [vmem:[%s291 + $0x151] sm:$0xff] %vm292, %v2410
        %2443 = vst.msk [vmem:[%s291 + $0x159] sm:$0xff] %vm292, %v2411
        %2444 = vst.msk [vmem:[%s291 + $0x169] sm:$0xff] %vm292, %v2412
        %2445 = vst.msk [vmem:[%s291 + $0x171] sm:$0xff] %vm292, %v2413
        %2446 = vst.msk [vmem:[#allocation2 + $0x1] sm:$0xff] %vm292, %v2384
        %2447 = vst.msk [vmem:[#allocation2 + $0x9] sm:$0xff] %vm292, %v2385
        %2448 = vst.msk [vmem:[%s327 + $0x1] sm:$0xff] %vm292, %v2410
        %2449 = vst.msk [vmem:[%s327 + $0x9] sm:$0xff] %vm292, %v2411
        %v2450 = vld [vmem:[#allocation2 + $0x2] sm:$0x1]
        %v2451 = vld [vmem:[#allocation2 + $0x1a] sm:$0x1]
        %v2452 = vld [vmem:[#allocation2 + $0x32] sm:$0x1]
        %v2453 = vld [vmem:[#allocation2 + $0x4a] sm:$0x1]
        %v2454 = vld [vmem:[#allocation2 + $0x62] sm:$0x1]
        %v2455 = vld [vmem:[#allocation2 + $0x7a] sm:$0x1]
        %v2456 = vld [vmem:[#allocation2 + $0x92] sm:$0x1]
        %v2457 = vld [vmem:[#allocation2 + $0xaa] sm:$0x1]
        %v2458 = vld [vmem:[#allocation2 + $0xc2] sm:$0x1]
        %v2459 = vld [vmem:[#allocation2 + $0xda] sm:$0x1]
        %v2460 = vld [vmem:[#allocation2 + $0xf2] sm:$0x1]
        %v2461 = vld [vmem:[#allocation2 + $0x10a] sm:$0x1]
        %v2462 = vld [vmem:[#allocation2 + $0x122] sm:$0x1]
        %v2463 = vld [vmem:[#allocation2 + $0x13a] sm:$0x1]
        %v2464 = vld [vmem:[#allocation2 + $0x152] sm:$0x1]
        %v2465 = vld [vmem:[#allocation2 + $0x16a] sm:$0x1]
        %v2466 = vld [vmem:[#allocation2 + $0x182] sm:$0x1]
        %v2467 = vld [vmem:[#allocation2 + $0x19a] sm:$0x1]
        %2468 = vst.msk [vmem:[#allocation2] sm:$0x1] %vm348, %v2450
        %2469 = vst.msk [vmem:[#allocation2 + $0x18] sm:$0x1] %vm348, %v2451
        %2470 = vst.msk [vmem:[#allocation2 + $0x30] sm:$0x1] %vm348, %v2452
        %2471 = vst.msk [vmem:[#allocation2 + $0x48] sm:$0x1] %vm348, %v2453
        %2472 = vst.msk [vmem:[#allocation2 + $0x60] sm:$0x1] %vm348, %v2454
        %2473 = vst.msk [vmem:[#allocation2 + $0x78] sm:$0x1] %vm348, %v2455
        %2474 = vst.msk [vmem:[#allocation2 + $0x90] sm:$0x1] %vm348, %v2456
        %2475 = vst.msk [vmem:[#allocation2 + $0xa8] sm:$0x1] %vm348, %v2457
        %2476 = vst.msk [vmem:[#allocation2 + $0xc0] sm:$0x1] %vm348, %v2458
        %2477 = vst.msk [vmem:[#allocation2 + $0xd8] sm:$0x1] %vm348, %v2459
        %2478 = vst.msk [vmem:[#allocation2 + $0xf0] sm:$0x1] %vm348, %v2460
        %2479 = vst.msk [vmem:[#allocation2 + $0x108] sm:$0x1] %vm348, %v2461
        %2480 = vst.msk [vmem:[#allocation2 + $0x120] sm:$0x1] %vm348, %v2462
        %2481 = vst.msk [vmem:[#allocation2 + $0x138] sm:$0x1] %vm348, %v2463
        %2482 = vst.msk [vmem:[#allocation2 + $0x150] sm:$0x1] %vm348, %v2464
        %2483 = vst.msk [vmem:[#allocation2 + $0x168] sm:$0x1] %vm348, %v2465
        %2484 = vst.msk [vmem:[#allocation2 + $0x180] sm:$0x1] %vm348, %v2466
        %2485 = vst.msk [vmem:[#allocation2 + $0x198] sm:$0x1] %vm348, %v2467
        %v2486 = vld [vmem:[#allocation2 + $0xf] sm:$0x1]
        %v2487 = vld [vmem:[#allocation2 + $0x27] sm:$0x1]
        %v2488 = vld [vmem:[#allocation2 + $0x3f] sm:$0x1]
        %v2489 = vld [vmem:[#allocation2 + $0x57] sm:$0x1]
        %v2490 = vld [vmem:[#allocation2 + $0x6f] sm:$0x1]
        %v2491 = vld [vmem:[#allocation2 + $0x87] sm:$0x1]
        %v2492 = vld [vmem:[#allocation2 + $0x9f] sm:$0x1]
        %v2493 = vld [vmem:[#allocation2 + $0xb7] sm:$0x1]
        %v2494 = vld [vmem:[#allocation2 + $0xcf] sm:$0x1]
        %v2495 = vld [vmem:[#allocation2 + $0xe7] sm:$0x1]
        %v2496 = vld [vmem:[#allocation2 + $0xff] sm:$0x1]
        %v2497 = vld [vmem:[#allocation2 + $0x117] sm:$0x1]
        %v2498 = vld [vmem:[#allocation2 + $0x12f] sm:$0x1]
        %v2499 = vld [vmem:[#allocation2 + $0x147] sm:$0x1]
        %v2500 = vld [vmem:[#allocation2 + $0x15f] sm:$0x1]
        %v2501 = vld [vmem:[#allocation2 + $0x177] sm:$0x1]
        %v2502 = vld [vmem:[#allocation2 + $0x18f] sm:$0x1]
        %v2503 = vld [vmem:[#allocation2 + $0x1a7] sm:$0x1]
        %2504 = vst.msk [vmem:[#allocation2 + $0x11] sm:$0x1] %vm348, %v2486
        %2505 = vst.msk [vmem:[#allocation2 + $0x29] sm:$0x1] %vm348, %v2487
        %2506 = vst.msk [vmem:[#allocation2 + $0x41] sm:$0x1] %vm348, %v2488
        %2507 = vst.msk [vmem:[#allocation2 + $0x59] sm:$0x1] %vm348, %v2489
        %2508 = vst.msk [vmem:[#allocation2 + $0x71] sm:$0x1] %vm348, %v2490
        %2509 = vst.msk [vmem:[#allocation2 + $0x89] sm:$0x1] %vm348, %v2491
        %2510 = vst.msk [vmem:[#allocation2 + $0xa1] sm:$0x1] %vm348, %v2492
        %2511 = vst.msk [vmem:[#allocation2 + $0xb9] sm:$0x1] %vm348, %v2493
        %2512 = vst.msk [vmem:[#allocation2 + $0xd1] sm:$0x1] %vm348, %v2494
        %2513 = vst.msk [vmem:[#allocation2 + $0xe9] sm:$0x1] %vm348, %v2495
        %2514 = vst.msk [vmem:[#allocation2 + $0x101] sm:$0x1] %vm348, %v2496
        %2515 = vst.msk [vmem:[#allocation2 + $0x119] sm:$0x1] %vm348, %v2497
        %2516 = vst.msk [vmem:[#allocation2 + $0x131] sm:$0x1] %vm348, %v2498
        %2517 = vst.msk [vmem:[#allocation2 + $0x149] sm:$0x1] %vm348, %v2499
        %2518 = vst.msk [vmem:[#allocation2 + $0x161] sm:$0x1] %vm348, %v2500
        %2519 = vst.msk [vmem:[#allocation2 + $0x179] sm:$0x1] %vm348, %v2501
        %2520 = vst.msk [vmem:[#allocation2 + $0x191] sm:$0x1] %vm348, %v2502
        %2521 = vst.msk [vmem:[#allocation2 + $0x1a9] sm:$0x1] %vm348, %v2503
        %v2522 = vld [vmem:[#allocation2] sm:$0xff]
        %v2523 = vld [vmem:[#allocation2 + $0x8] sm:$0xff]
        %v2524 = vld [vmem:[#allocation2 + $0x18] sm:$0xff]
        %v2525 = vld [vmem:[#allocation2 + $0x20] sm:$0xff]
        %v2526 = vld [vmem:[#allocation2 + $0x30] sm:$0xff]
        %v2527 = vld [vmem:[#allocation2 + $0x38] sm:$0xff]
        %v2528 = vld [vmem:[#allocation2 + $0x48] sm:$0xff]
        %v2529 = vld [vmem:[#allocation2 + $0x50] sm:$0xff]
        %v2530 = vld [vmem:[#allocation2 + $0x60] sm:$0xff]
        %v2531 = vld [vmem:[#allocation2 + $0x68] sm:$0xff]
        %v2532 = vld [vmem:[#allocation2 + $0x78] sm:$0xff]
        %v2533 = vld [vmem:[#allocation2 + $0x80] sm:$0xff]
        %v2534 = vld [vmem:[#allocation2 + $0x90] sm:$0xff]
        %v2535 = vld [vmem:[#allocation2 + $0x98] sm:$0xff]
        %v2536 = vld [vmem:[#allocation2 + $0xa8] sm:$0xff]
        %v2537 = vld [vmem:[#allocation2 + $0xb0] sm:$0xff]
        %v2538 = vld [vmem:[#allocation2 + $0xc0] sm:$0xff]
        %v2539 = vld [vmem:[#allocation2 + $0xc8] sm:$0xff]
        %v2540 = vld [vmem:[#allocation2 + $0xd8] sm:$0xff]
        %v2541 = vld [vmem:[#allocation2 + $0xe0] sm:$0xff]
        %v2542 = vld [vmem:[#allocation2 + $0xf0] sm:$0xff]
        %v2543 = vld [vmem:[#allocation2 + $0xf8] sm:$0xff]
        %v2544 = vld [vmem:[#allocation2 + $0x108] sm:$0xff]
        %v2545 = vld [vmem:[#allocation2 + $0x110] sm:$0xff]
        %v2546 = vld [vmem:[#allocation2 + $0x120] sm:$0xff]
        %v2547 = vld [vmem:[#allocation2 + $0x128] sm:$0xff]
        %v2548 = vld [vmem:[#allocation2 + $0x138] sm:$0xff]
        %v2549 = vld [vmem:[#allocation2 + $0x140] sm:$0xff]
        %v2550 = vld [vmem:[#allocation2 + $0x150] sm:$0xff]
        %v2551 = vld [vmem:[#allocation2 + $0x158] sm:$0xff]
        %v2552 = vld [vmem:[#allocation2 + $0x168] sm:$0xff]
        %v2553 = vld [vmem:[#allocation2 + $0x170] sm:$0xff]
        %2554 = vst.msk [vmem:[#allocation3] sm:$0xff] %vm292, %v2522
        %2555 = vst.msk [vmem:[#allocation3 + $0x8] sm:$0xff] %vm292, %v2523
        %2556 = vst.msk [vmem:[#allocation3 + $0x10] sm:$0xff] %vm292, %v2524
        %2557 = vst.msk [vmem:[#allocation3 + $0x18] sm:$0xff] %vm292, %v2525
        %2558 = vst.msk [vmem:[#allocation3 + $0x20] sm:$0xff] %vm292, %v2526
        %2559 = vst.msk [vmem:[#allocation3 + $0x28] sm:$0xff] %vm292, %v2527
        %2560 = vst.msk [vmem:[#allocation3 + $0x30] sm:$0xff] %vm292, %v2528
        %2561 = vst.msk [vmem:[#allocation3 + $0x38] sm:$0xff] %vm292, %v2529
        %2562 = vst.msk [vmem:[#allocation3 + $0x40] sm:$0xff] %vm292, %v2530
        %2563 = vst.msk [vmem:[#allocation3 + $0x48] sm:$0xff] %vm292, %v2531
        %2564 = vst.msk [vmem:[#allocation3 + $0x50] sm:$0xff] %vm292, %v2532
        %2565 = vst.msk [vmem:[#allocation3 + $0x58] sm:$0xff] %vm292, %v2533
        %2566 = vst.msk [vmem:[#allocation3 + $0x60] sm:$0xff] %vm292, %v2534
        %2567 = vst.msk [vmem:[#allocation3 + $0x68] sm:$0xff] %vm292, %v2535
        %2568 = vst.msk [vmem:[#allocation3 + $0x70] sm:$0xff] %vm292, %v2536
        %2569 = vst.msk [vmem:[#allocation3 + $0x78] sm:$0xff] %vm292, %v2537
        %2570 = vst.msk [vmem:[#allocation3 + $0x80] sm:$0xff] %vm292, %v2538
        %2571 = vst.msk [vmem:[#allocation3 + $0x88] sm:$0xff] %vm292, %v2539
        %2572 = vst.msk [vmem:[#allocation3 + $0x90] sm:$0xff] %vm292, %v2540
        %2573 = vst.msk [vmem:[#allocation3 + $0x98] sm:$0xff] %vm292, %v2541
        %2574 = vst.msk [vmem:[#allocation3 + $0xa0] sm:$0xff] %vm292, %v2542
        %2575 = vst.msk [vmem:[#allocation3 + $0xa8] sm:$0xff] %vm292, %v2543
        %2576 = vst.msk [vmem:[#allocation3 + $0xb0] sm:$0xff] %vm292, %v2544
        %2577 = vst.msk [vmem:[#allocation3 + $0xb8] sm:$0xff] %vm292, %v2545
        %2578 = vst.msk [vmem:[#allocation3 + $0xc0] sm:$0xff] %vm292, %v2546
        %2579 = vst.msk [vmem:[#allocation3 + $0xc8] sm:$0xff] %vm292, %v2547
        %2580 = vst.msk [vmem:[#allocation3 + $0xd0] sm:$0xff] %vm292, %v2548
        %2581 = vst.msk [vmem:[#allocation3 + $0xd8] sm:$0xff] %vm292, %v2549
        %2582 = vst.msk [vmem:[#allocation3 + $0xe0] sm:$0xff] %vm292, %v2550
        %2583 = vst.msk [vmem:[#allocation3 + $0xe8] sm:$0xff] %vm292, %v2551
        %2584 = vst.msk [vmem:[#allocation3 + $0xf0] sm:$0xff] %vm292, %v2552
        %2585 = vst.msk [vmem:[#allocation3 + $0xf8] sm:$0xff] %vm292, %v2553
        %v2586 = vld [vmem:[#allocation2 + $0x1] sm:$0xff]
        %v2587 = vld [vmem:[#allocation2 + $0x9] sm:$0xff]
        %v2588 = vld [vmem:[#allocation2 + $0x19] sm:$0xff]
        %v2589 = vld [vmem:[#allocation2 + $0x21] sm:$0xff]
        %v2590 = vld [vmem:[#allocation2 + $0x31] sm:$0xff]
        %v2591 = vld [vmem:[#allocation2 + $0x39] sm:$0xff]
        %v2592 = vld [vmem:[#allocation2 + $0x49] sm:$0xff]
        %v2593 = vld [vmem:[#allocation2 + $0x51] sm:$0xff]
        %v2594 = vld [vmem:[#allocation2 + $0x61] sm:$0xff]
        %v2595 = vld [vmem:[#allocation2 + $0x69] sm:$0xff]
        %v2596 = vld [vmem:[#allocation2 + $0x79] sm:$0xff]
        %v2597 = vld [vmem:[#allocation2 + $0x81] sm:$0xff]
        %v2598 = vld [vmem:[#allocation2 + $0x91] sm:$0xff]
        %v2599 = vld [vmem:[#allocation2 + $0x99] sm:$0xff]
        %v2600 = vld [vmem:[#allocation2 + $0xa9] sm:$0xff]
        %v2601 = vld [vmem:[#allocation2 + $0xb1] sm:$0xff]
        %v2602 = vld [vmem:[#allocation2 + $0xc1] sm:$0xff]
        %v2603 = vld [vmem:[#allocation2 + $0xc9] sm:$0xff]
        %v2604 = vld [vmem:[#allocation2 + $0xd9] sm:$0xff]
        %v2605 = vld [vmem:[#allocation2 + $0xe1] sm:$0xff]
        %v2606 = vld [vmem:[#allocation2 + $0xf1] sm:$0xff]
        %v2607 = vld [vmem:[#allocation2 + $0xf9] sm:$0xff]
        %v2608 = vld [vmem:[#allocation2 + $0x109] sm:$0xff]
        %v2609 = vld [vmem:[#allocation2 + $0x111] sm:$0xff]
        %v2610 = vld [vmem:[#allocation2 + $0x121] sm:$0xff]
        %v2611 = vld [vmem:[#allocation2 + $0x129] sm:$0xff]
        %v2612 = vld [vmem:[#allocation2 + $0x139] sm:$0xff]
        %v2613 = vld [vmem:[#allocation2 + $0x141] sm:$0xff]
        %v2614 = vld [vmem:[#allocation2 + $0x151] sm:$0xff]
        %v2615 = vld [vmem:[#allocation2 + $0x159] sm:$0xff]
        %v2616 = vld [vmem:[#allocation2 + $0x169] sm:$0xff]
        %v2617 = vld [vmem:[#allocation2 + $0x171] sm:$0xff]
        %2650 = vrot.lane.b32.xlu0 %v2586, 4
        %v2651 = vpop.permute.xlu0 %2650
        %2652 = vrot.lane.b32.xlu0 %v2587, 4
        %v2653 = vpop.permute.xlu0 %2652
        %2654 = vrot.lane.b32.xlu0 %v2588, 4
        %v2655 = vpop.permute.xlu0 %2654
        %2656 = vrot.lane.b32.xlu0 %v2589, 4
        %v2657 = vpop.permute.xlu0 %2656
        %2658 = vrot.lane.b32.xlu0 %v2590, 4
        %v2659 = vpop.permute.xlu0 %2658
        %2660 = vrot.lane.b32.xlu0 %v2591, 4
        %v2661 = vpop.permute.xlu0 %2660
        %2662 = vrot.lane.b32.xlu0 %v2592, 4
        %v2663 = vpop.permute.xlu0 %2662
        %2664 = vrot.lane.b32.xlu0 %v2593, 4
        %v2665 = vpop.permute.xlu0 %2664
        %2666 = vrot.lane.b32.xlu0 %v2594, 4
        %v2667 = vpop.permute.xlu0 %2666
        %2668 = vrot.lane.b32.xlu0 %v2595, 4
        %v2669 = vpop.permute.xlu0 %2668
        %2670 = vrot.lane.b32.xlu0 %v2596, 4
        %v2671 = vpop.permute.xlu0 %2670
        %2672 = vrot.lane.b32.xlu0 %v2597, 4
        %v2673 = vpop.permute.xlu0 %2672
        %2674 = vrot.lane.b32.xlu0 %v2598, 4
        %v2675 = vpop.permute.xlu0 %2674
        %2676 = vrot.lane.b32.xlu0 %v2599, 4
        %v2677 = vpop.permute.xlu0 %2676
        %2678 = vrot.lane.b32.xlu0 %v2600, 4
        %v2679 = vpop.permute.xlu0 %2678
        %2680 = vrot.lane.b32.xlu0 %v2601, 4
        %v2681 = vpop.permute.xlu0 %2680
        %2682 = vrot.lane.b32.xlu0 %v2602, 4
        %v2683 = vpop.permute.xlu0 %2682
        %2684 = vrot.lane.b32.xlu0 %v2603, 4
        %v2685 = vpop.permute.xlu0 %2684
        %2686 = vrot.lane.b32.xlu0 %v2604, 4
        %v2687 = vpop.permute.xlu0 %2686
        %2688 = vrot.lane.b32.xlu0 %v2605, 4
        %v2689 = vpop.permute.xlu0 %2688
        %2690 = vrot.lane.b32.xlu0 %v2606, 4
        %v2691 = vpop.permute.xlu0 %2690
        %2692 = vrot.lane.b32.xlu0 %v2607, 4
        %v2693 = vpop.permute.xlu0 %2692
        %2694 = vrot.lane.b32.xlu0 %v2608, 4
        %v2695 = vpop.permute.xlu0 %2694
        %2696 = vrot.lane.b32.xlu0 %v2609, 4
        %v2697 = vpop.permute.xlu0 %2696
        %2698 = vrot.lane.b32.xlu0 %v2610, 4
        %v2699 = vpop.permute.xlu0 %2698
        %2700 = vrot.lane.b32.xlu0 %v2611, 4
        %v2701 = vpop.permute.xlu0 %2700
        %2702 = vrot.lane.b32.xlu0 %v2612, 4
        %v2703 = vpop.permute.xlu0 %2702
        %2704 = vrot.lane.b32.xlu0 %v2613, 4
        %v2705 = vpop.permute.xlu0 %2704
        %2706 = vrot.lane.b32.xlu0 %v2614, 4
        %v2707 = vpop.permute.xlu0 %2706
        %2708 = vrot.lane.b32.xlu0 %v2615, 4
        %v2709 = vpop.permute.xlu0 %2708
        %2710 = vrot.lane.b32.xlu0 %v2616, 4
        %v2711 = vpop.permute.xlu0 %2710
        %2712 = vrot.lane.b32.xlu0 %v2617, 4
        %v2713 = vpop.permute.xlu0 %2712
        %2746 = vst.msk [vmem:[#allocation3] sm:$0xff] %vm627, %v2651
        %2747 = vst.msk [vmem:[#allocation3 + $0x8] sm:$0xff] %vm627, %v2653
        %2748 = vst.msk [vmem:[#allocation3 + $0x10] sm:$0xff] %vm627, %v2655
        %2749 = vst.msk [vmem:[#allocation3 + $0x18] sm:$0xff] %vm627, %v2657
        %2750 = vst.msk [vmem:[#allocation3 + $0x20] sm:$0xff] %vm627, %v2659
        %2751 = vst.msk [vmem:[#allocation3 + $0x28] sm:$0xff] %vm627, %v2661
        %2752 = vst.msk [vmem:[#allocation3 + $0x30] sm:$0xff] %vm627, %v2663
        %2753 = vst.msk [vmem:[#allocation3 + $0x38] sm:$0xff] %vm627, %v2665
        %2754 = vst.msk [vmem:[#allocation3 + $0x40] sm:$0xff] %vm627, %v2667
        %2755 = vst.msk [vmem:[#allocation3 + $0x48] sm:$0xff] %vm627, %v2669
        %2756 = vst.msk [vmem:[#allocation3 + $0x50] sm:$0xff] %vm627, %v2671
        %2757 = vst.msk [vmem:[#allocation3 + $0x58] sm:$0xff] %vm627, %v2673
        %2758 = vst.msk [vmem:[#allocation3 + $0x60] sm:$0xff] %vm627, %v2675
        %2759 = vst.msk [vmem:[#allocation3 + $0x68] sm:$0xff] %vm627, %v2677
        %2760 = vst.msk [vmem:[#allocation3 + $0x70] sm:$0xff] %vm627, %v2679
        %2761 = vst.msk [vmem:[#allocation3 + $0x78] sm:$0xff] %vm627, %v2681
        %2762 = vst.msk [vmem:[#allocation3 + $0x80] sm:$0xff] %vm627, %v2683
        %2763 = vst.msk [vmem:[#allocation3 + $0x88] sm:$0xff] %vm627, %v2685
        %2764 = vst.msk [vmem:[#allocation3 + $0x90] sm:$0xff] %vm627, %v2687
        %2765 = vst.msk [vmem:[#allocation3 + $0x98] sm:$0xff] %vm627, %v2689
        %2766 = vst.msk [vmem:[#allocation3 + $0xa0] sm:$0xff] %vm627, %v2691
        %2767 = vst.msk [vmem:[#allocation3 + $0xa8] sm:$0xff] %vm627, %v2693
        %2768 = vst.msk [vmem:[#allocation3 + $0xb0] sm:$0xff] %vm627, %v2695
        %2769 = vst.msk [vmem:[#allocation3 + $0xb8] sm:$0xff] %vm627, %v2697
        %2770 = vst.msk [vmem:[#allocation3 + $0xc0] sm:$0xff] %vm627, %v2699
        %2771 = vst.msk [vmem:[#allocation3 + $0xc8] sm:$0xff] %vm627, %v2701
        %2772 = vst.msk [vmem:[#allocation3 + $0xd0] sm:$0xff] %vm627, %v2703
        %2773 = vst.msk [vmem:[#allocation3 + $0xd8] sm:$0xff] %vm627, %v2705
        %2774 = vst.msk [vmem:[#allocation3 + $0xe0] sm:$0xff] %vm627, %v2707
        %2775 = vst.msk [vmem:[#allocation3 + $0xe8] sm:$0xff] %vm627, %v2709
        %2776 = vst.msk [vmem:[#allocation3 + $0xf0] sm:$0xff] %vm627, %v2711
        %2777 = vst.msk [vmem:[#allocation3 + $0xf8] sm:$0xff] %vm627, %v2713
        %v2778 = vld [vmem:[#allocation2 + $0x2] sm:$0xff]
        %v2779 = vld [vmem:[#allocation2 + $0xa] sm:$0xff]
        %v2780 = vld [vmem:[#allocation2 + $0x1a] sm:$0xff]
        %v2781 = vld [vmem:[#allocation2 + $0x22] sm:$0xff]
        %v2782 = vld [vmem:[#allocation2 + $0x32] sm:$0xff]
        %v2783 = vld [vmem:[#allocation2 + $0x3a] sm:$0xff]
        %v2784 = vld [vmem:[#allocation2 + $0x4a] sm:$0xff]
        %v2785 = vld [vmem:[#allocation2 + $0x52] sm:$0xff]
        %v2786 = vld [vmem:[#allocation2 + $0x62] sm:$0xff]
        %v2787 = vld [vmem:[#allocation2 + $0x6a] sm:$0xff]
        %v2788 = vld [vmem:[#allocation2 + $0x7a] sm:$0xff]
        %v2789 = vld [vmem:[#allocation2 + $0x82] sm:$0xff]
        %v2790 = vld [vmem:[#allocation2 + $0x92] sm:$0xff]
        %v2791 = vld [vmem:[#allocation2 + $0x9a] sm:$0xff]
        %v2792 = vld [vmem:[#allocation2 + $0xaa] sm:$0xff]
        %v2793 = vld [vmem:[#allocation2 + $0xb2] sm:$0xff]
        %v2794 = vld [vmem:[#allocation2 + $0xc2] sm:$0xff]
        %v2795 = vld [vmem:[#allocation2 + $0xca] sm:$0xff]
        %v2796 = vld [vmem:[#allocation2 + $0xda] sm:$0xff]
        %v2797 = vld [vmem:[#allocation2 + $0xe2] sm:$0xff]
        %v2798 = vld [vmem:[#allocation2 + $0xf2] sm:$0xff]
        %v2799 = vld [vmem:[#allocation2 + $0xfa] sm:$0xff]
        %v2800 = vld [vmem:[#allocation2 + $0x10a] sm:$0xff]
        %v2801 = vld [vmem:[#allocation2 + $0x112] sm:$0xff]
        %v2802 = vld [vmem:[#allocation2 + $0x122] sm:$0xff]
        %v2803 = vld [vmem:[#allocation2 + $0x12a] sm:$0xff]
        %v2804 = vld [vmem:[#allocation2 + $0x13a] sm:$0xff]
        %v2805 = vld [vmem:[#allocation2 + $0x142] sm:$0xff]
        %v2806 = vld [vmem:[#allocation2 + $0x152] sm:$0xff]
        %v2807 = vld [vmem:[#allocation2 + $0x15a] sm:$0xff]
        %v2808 = vld [vmem:[#allocation2 + $0x16a] sm:$0xff]
        %v2809 = vld [vmem:[#allocation2 + $0x172] sm:$0xff]
        %2842 = vrot.lane.b32.xlu0 %v2778, 8
        %v2843 = vpop.permute.xlu0 %2842
        %2844 = vrot.lane.b32.xlu0 %v2779, 8
        %v2845 = vpop.permute.xlu0 %2844
        %2846 = vrot.lane.b32.xlu0 %v2780, 8
        %v2847 = vpop.permute.xlu0 %2846
        %2848 = vrot.lane.b32.xlu0 %v2781, 8
        %v2849 = vpop.permute.xlu0 %2848
        %2850 = vrot.lane.b32.xlu0 %v2782, 8
        %v2851 = vpop.permute.xlu0 %2850
        %2852 = vrot.lane.b32.xlu0 %v2783, 8
        %v2853 = vpop.permute.xlu0 %2852
        %2854 = vrot.lane.b32.xlu0 %v2784, 8
        %v2855 = vpop.permute.xlu0 %2854
        %2856 = vrot.lane.b32.xlu0 %v2785, 8
        %v2857 = vpop.permute.xlu0 %2856
        %2858 = vrot.lane.b32.xlu0 %v2786, 8
        %v2859 = vpop.permute.xlu0 %2858
        %2860 = vrot.lane.b32.xlu0 %v2787, 8
        %v2861 = vpop.permute.xlu0 %2860
        %2862 = vrot.lane.b32.xlu0 %v2788, 8
        %v2863 = vpop.permute.xlu0 %2862
        %2864 = vrot.lane.b32.xlu0 %v2789, 8
        %v2865 = vpop.permute.xlu0 %2864
        %2866 = vrot.lane.b32.xlu0 %v2790, 8
        %v2867 = vpop.permute.xlu0 %2866
        %2868 = vrot.lane.b32.xlu0 %v2791, 8
        %v2869 = vpop.permute.xlu0 %2868
        %2870 = vrot.lane.b32.xlu0 %v2792, 8
        %v2871 = vpop.permute.xlu0 %2870
        %2872 = vrot.lane.b32.xlu0 %v2793, 8
        %v2873 = vpop.permute.xlu0 %2872
        %2874 = vrot.lane.b32.xlu0 %v2794, 8
        %v2875 = vpop.permute.xlu0 %2874
        %2876 = vrot.lane.b32.xlu0 %v2795, 8
        %v2877 = vpop.permute.xlu0 %2876
        %2878 = vrot.lane.b32.xlu0 %v2796, 8
        %v2879 = vpop.permute.xlu0 %2878
        %2880 = vrot.lane.b32.xlu0 %v2797, 8
        %v2881 = vpop.permute.xlu0 %2880
        %2882 = vrot.lane.b32.xlu0 %v2798, 8
        %v2883 = vpop.permute.xlu0 %2882
        %2884 = vrot.lane.b32.xlu0 %v2799, 8
        %v2885 = vpop.permute.xlu0 %2884
        %2886 = vrot.lane.b32.xlu0 %v2800, 8
        %v2887 = vpop.permute.xlu0 %2886
        %2888 = vrot.lane.b32.xlu0 %v2801, 8
        %v2889 = vpop.permute.xlu0 %2888
        %2890 = vrot.lane.b32.xlu0 %v2802, 8
        %v2891 = vpop.permute.xlu0 %2890
        %2892 = vrot.lane.b32.xlu0 %v2803, 8
        %v2893 = vpop.permute.xlu0 %2892
        %2894 = vrot.lane.b32.xlu0 %v2804, 8
        %v2895 = vpop.permute.xlu0 %2894
        %2896 = vrot.lane.b32.xlu0 %v2805, 8
        %v2897 = vpop.permute.xlu0 %2896
        %2898 = vrot.lane.b32.xlu0 %v2806, 8
        %v2899 = vpop.permute.xlu0 %2898
        %2900 = vrot.lane.b32.xlu0 %v2807, 8
        %v2901 = vpop.permute.xlu0 %2900
        %2902 = vrot.lane.b32.xlu0 %v2808, 8
        %v2903 = vpop.permute.xlu0 %2902
        %2904 = vrot.lane.b32.xlu0 %v2809, 8
        %v2905 = vpop.permute.xlu0 %2904
        %2938 = vst.msk [vmem:[#allocation3] sm:$0xff] %vm820, %v2843
        %2939 = vst.msk [vmem:[#allocation3 + $0x8] sm:$0xff] %vm820, %v2845
        %2940 = vst.msk [vmem:[#allocation3 + $0x10] sm:$0xff] %vm820, %v2847
        %2941 = vst.msk [vmem:[#allocation3 + $0x18] sm:$0xff] %vm820, %v2849
        %2942 = vst.msk [vmem:[#allocation3 + $0x20] sm:$0xff] %vm820, %v2851
        %2943 = vst.msk [vmem:[#allocation3 + $0x28] sm:$0xff] %vm820, %v2853
        %2944 = vst.msk [vmem:[#allocation3 + $0x30] sm:$0xff] %vm820, %v2855
        %2945 = vst.msk [vmem:[#allocation3 + $0x38] sm:$0xff] %vm820, %v2857
        %2946 = vst.msk [vmem:[#allocation3 + $0x40] sm:$0xff] %vm820, %v2859
        %2947 = vst.msk [vmem:[#allocation3 + $0x48] sm:$0xff] %vm820, %v2861
        %2948 = vst.msk [vmem:[#allocation3 + $0x50] sm:$0xff] %vm820, %v2863
        %2949 = vst.msk [vmem:[#allocation3 + $0x58] sm:$0xff] %vm820, %v2865
        %2950 = vst.msk [vmem:[#allocation3 + $0x60] sm:$0xff] %vm820, %v2867
        %2951 = vst.msk [vmem:[#allocation3 + $0x68] sm:$0xff] %vm820, %v2869
        %2952 = vst.msk [vmem:[#allocation3 + $0x70] sm:$0xff] %vm820, %v2871
        %2953 = vst.msk [vmem:[#allocation3 + $0x78] sm:$0xff] %vm820, %v2873
        %2954 = vst.msk [vmem:[#allocation3 + $0x80] sm:$0xff] %vm820, %v2875
        %2955 = vst.msk [vmem:[#allocation3 + $0x88] sm:$0xff] %vm820, %v2877
        %2956 = vst.msk [vmem:[#allocation3 + $0x90] sm:$0xff] %vm820, %v2879
        %2957 = vst.msk [vmem:[#allocation3 + $0x98] sm:$0xff] %vm820, %v2881
        %2958 = vst.msk [vmem:[#allocation3 + $0xa0] sm:$0xff] %vm820, %v2883
        %2959 = vst.msk [vmem:[#allocation3 + $0xa8] sm:$0xff] %vm820, %v2885
        %2960 = vst.msk [vmem:[#allocation3 + $0xb0] sm:$0xff] %vm820, %v2887
        %2961 = vst.msk [vmem:[#allocation3 + $0xb8] sm:$0xff] %vm820, %v2889
        %2962 = vst.msk [vmem:[#allocation3 + $0xc0] sm:$0xff] %vm820, %v2891
        %2963 = vst.msk [vmem:[#allocation3 + $0xc8] sm:$0xff] %vm820, %v2893
        %2964 = vst.msk [vmem:[#allocation3 + $0xd0] sm:$0xff] %vm820, %v2895
        %2965 = vst.msk [vmem:[#allocation3 + $0xd8] sm:$0xff] %vm820, %v2897
        %2966 = vst.msk [vmem:[#allocation3 + $0xe0] sm:$0xff] %vm820, %v2899
        %2967 = vst.msk [vmem:[#allocation3 + $0xe8] sm:$0xff] %vm820, %v2901
        %2968 = vst.msk [vmem:[#allocation3 + $0xf0] sm:$0xff] %vm820, %v2903
        %2969 = vst.msk [vmem:[#allocation3 + $0xf8] sm:$0xff] %vm820, %v2905
        %v2970 = vld [vmem:[%s291] sm:$0xff]
        %v2971 = vld [vmem:[%s291 + $0x8] sm:$0xff]
        %v2972 = vld [vmem:[%s291 + $0x18] sm:$0xff]
        %v2973 = vld [vmem:[%s291 + $0x20] sm:$0xff]
        %v2974 = vld [vmem:[%s291 + $0x30] sm:$0xff]
        %v2975 = vld [vmem:[%s291 + $0x38] sm:$0xff]
        %v2976 = vld [vmem:[%s291 + $0x48] sm:$0xff]
        %v2977 = vld [vmem:[%s291 + $0x50] sm:$0xff]
        %v2978 = vld [vmem:[%s291 + $0x60] sm:$0xff]
        %v2979 = vld [vmem:[%s291 + $0x68] sm:$0xff]
        %v2980 = vld [vmem:[%s291 + $0x78] sm:$0xff]
        %v2981 = vld [vmem:[%s291 + $0x80] sm:$0xff]
        %v2982 = vld [vmem:[%s291 + $0x90] sm:$0xff]
        %v2983 = vld [vmem:[%s291 + $0x98] sm:$0xff]
        %v2984 = vld [vmem:[%s291 + $0xa8] sm:$0xff]
        %v2985 = vld [vmem:[%s291 + $0xb0] sm:$0xff]
        %v2986 = vld [vmem:[%s291 + $0xc0] sm:$0xff]
        %v2987 = vld [vmem:[%s291 + $0xc8] sm:$0xff]
        %v2988 = vld [vmem:[%s291 + $0xd8] sm:$0xff]
        %v2989 = vld [vmem:[%s291 + $0xe0] sm:$0xff]
        %v2990 = vld [vmem:[%s291 + $0xf0] sm:$0xff]
        %v2991 = vld [vmem:[%s291 + $0xf8] sm:$0xff]
        %v2992 = vld [vmem:[%s291 + $0x108] sm:$0xff]
        %v2993 = vld [vmem:[%s291 + $0x110] sm:$0xff]
        %v2994 = vld [vmem:[%s291 + $0x120] sm:$0xff]
        %v2995 = vld [vmem:[%s291 + $0x128] sm:$0xff]
        %v2996 = vld [vmem:[%s291 + $0x138] sm:$0xff]
        %v2997 = vld [vmem:[%s291 + $0x140] sm:$0xff]
        %v2998 = vld [vmem:[%s291 + $0x150] sm:$0xff]
        %v2999 = vld [vmem:[%s291 + $0x158] sm:$0xff]
        %v3000 = vld [vmem:[%s291 + $0x168] sm:$0xff]
        %v3001 = vld [vmem:[%s291 + $0x170] sm:$0xff]
        %3034 = vrot.lane.b32.xlu0 %v2970, 12
        %v3035 = vpop.permute.xlu0 %3034
        %3036 = vrot.lane.b32.xlu0 %v2971, 12
        %v3037 = vpop.permute.xlu0 %3036
        %3038 = vrot.lane.b32.xlu0 %v2972, 12
        %v3039 = vpop.permute.xlu0 %3038
        %3040 = vrot.lane.b32.xlu0 %v2973, 12
        %v3041 = vpop.permute.xlu0 %3040
        %3042 = vrot.lane.b32.xlu0 %v2974, 12
        %v3043 = vpop.permute.xlu0 %3042
        %3044 = vrot.lane.b32.xlu0 %v2975, 12
        %v3045 = vpop.permute.xlu0 %3044
        %3046 = vrot.lane.b32.xlu0 %v2976, 12
        %v3047 = vpop.permute.xlu0 %3046
        %3048 = vrot.lane.b32.xlu0 %v2977, 12
        %v3049 = vpop.permute.xlu0 %3048
        %3050 = vrot.lane.b32.xlu0 %v2978, 12
        %v3051 = vpop.permute.xlu0 %3050
        %3052 = vrot.lane.b32.xlu0 %v2979, 12
        %v3053 = vpop.permute.xlu0 %3052
        %3054 = vrot.lane.b32.xlu0 %v2980, 12
        %v3055 = vpop.permute.xlu0 %3054
        %3056 = vrot.lane.b32.xlu0 %v2981, 12
        %v3057 = vpop.permute.xlu0 %3056
        %3058 = vrot.lane.b32.xlu0 %v2982, 12
        %v3059 = vpop.permute.xlu0 %3058
        %3060 = vrot.lane.b32.xlu0 %v2983, 12
        %v3061 = vpop.permute.xlu0 %3060
        %3062 = vrot.lane.b32.xlu0 %v2984, 12
        %v3063 = vpop.permute.xlu0 %3062
        %3064 = vrot.lane.b32.xlu0 %v2985, 12
        %v3065 = vpop.permute.xlu0 %3064
        %3066 = vrot.lane.b32.xlu0 %v2986, 12
        %v3067 = vpop.permute.xlu0 %3066
        %3068 = vrot.lane.b32.xlu0 %v2987, 12
        %v3069 = vpop.permute.xlu0 %3068
        %3070 = vrot.lane.b32.xlu0 %v2988, 12
        %v3071 = vpop.permute.xlu0 %3070
        %3072 = vrot.lane.b32.xlu0 %v2989, 12
        %v3073 = vpop.permute.xlu0 %3072
        %3074 = vrot.lane.b32.xlu0 %v2990, 12
        %v3075 = vpop.permute.xlu0 %3074
        %3076 = vrot.lane.b32.xlu0 %v2991, 12
        %v3077 = vpop.permute.xlu0 %3076
        %3078 = vrot.lane.b32.xlu0 %v2992, 12
        %v3079 = vpop.permute.xlu0 %3078
        %3080 = vrot.lane.b32.xlu0 %v2993, 12
        %v3081 = vpop.permute.xlu0 %3080
        %3082 = vrot.lane.b32.xlu0 %v2994, 12
        %v3083 = vpop.permute.xlu0 %3082
        %3084 = vrot.lane.b32.xlu0 %v2995, 12
        %v3085 = vpop.permute.xlu0 %3084
        %3086 = vrot.lane.b32.xlu0 %v2996, 12
        %v3087 = vpop.permute.xlu0 %3086
        %3088 = vrot.lane.b32.xlu0 %v2997, 12
        %v3089 = vpop.permute.xlu0 %3088
        %3090 = vrot.lane.b32.xlu0 %v2998, 12
        %v3091 = vpop.permute.xlu0 %3090
        %3092 = vrot.lane.b32.xlu0 %v2999, 12
        %v3093 = vpop.permute.xlu0 %3092
        %3094 = vrot.lane.b32.xlu0 %v3000, 12
        %v3095 = vpop.permute.xlu0 %3094
        %3096 = vrot.lane.b32.xlu0 %v3001, 12
        %v3097 = vpop.permute.xlu0 %3096
        %3130 = vst.msk [vmem:[#allocation3] sm:$0xff] %vm1013, %v3035
        %3131 = vst.msk [vmem:[#allocation3 + $0x8] sm:$0xff] %vm1013, %v3037
        %3132 = vst.msk [vmem:[#allocation3 + $0x10] sm:$0xff] %vm1013, %v3039
        %3133 = vst.msk [vmem:[#allocation3 + $0x18] sm:$0xff] %vm1013, %v3041
        %3134 = vst.msk [vmem:[#allocation3 + $0x20] sm:$0xff] %vm1013, %v3043
        %3135 = vst.msk [vmem:[#allocation3 + $0x28] sm:$0xff] %vm1013, %v3045
        %3136 = vst.msk [vmem:[#allocation3 + $0x30] sm:$0xff] %vm1013, %v3047
        %3137 = vst.msk [vmem:[#allocation3 + $0x38] sm:$0xff] %vm1013, %v3049
        %3138 = vst.msk [vmem:[#allocation3 + $0x40] sm:$0xff] %vm1013, %v3051
        %3139 = vst.msk [vmem:[#allocation3 + $0x48] sm:$0xff] %vm1013, %v3053
        %3140 = vst.msk [vmem:[#allocation3 + $0x50] sm:$0xff] %vm1013, %v3055
        %3141 = vst.msk [vmem:[#allocation3 + $0x58] sm:$0xff] %vm1013, %v3057
        %3142 = vst.msk [vmem:[#allocation3 + $0x60] sm:$0xff] %vm1013, %v3059
        %3143 = vst.msk [vmem:[#allocation3 + $0x68] sm:$0xff] %vm1013, %v3061
        %3144 = vst.msk [vmem:[#allocation3 + $0x70] sm:$0xff] %vm1013, %v3063
        %3145 = vst.msk [vmem:[#allocation3 + $0x78] sm:$0xff] %vm1013, %v3065
        %3146 = vst.msk [vmem:[#allocation3 + $0x80] sm:$0xff] %vm1013, %v3067
        %3147 = vst.msk [vmem:[#allocation3 + $0x88] sm:$0xff] %vm1013, %v3069
        %3148 = vst.msk [vmem:[#allocation3 + $0x90] sm:$0xff] %vm1013, %v3071
        %3149 = vst.msk [vmem:[#allocation3 + $0x98] sm:$0xff] %vm1013, %v3073
        %3150 = vst.msk [vmem:[#allocation3 + $0xa0] sm:$0xff] %vm1013, %v3075
        %3151 = vst.msk [vmem:[#allocation3 + $0xa8] sm:$0xff] %vm1013, %v3077
        %3152 = vst.msk [vmem:[#allocation3 + $0xb0] sm:$0xff] %vm1013, %v3079
        %3153 = vst.msk [vmem:[#allocation3 + $0xb8] sm:$0xff] %vm1013, %v3081
        %3154 = vst.msk [vmem:[#allocation3 + $0xc0] sm:$0xff] %vm1013, %v3083
        %3155 = vst.msk [vmem:[#allocation3 + $0xc8] sm:$0xff] %vm1013, %v3085
        %3156 = vst.msk [vmem:[#allocation3 + $0xd0] sm:$0xff] %vm1013, %v3087
        %3157 = vst.msk [vmem:[#allocation3 + $0xd8] sm:$0xff] %vm1013, %v3089
        %3158 = vst.msk [vmem:[#allocation3 + $0xe0] sm:$0xff] %vm1013, %v3091
        %3159 = vst.msk [vmem:[#allocation3 + $0xe8] sm:$0xff] %vm1013, %v3093
        %3160 = vst.msk [vmem:[#allocation3 + $0xf0] sm:$0xff] %vm1013, %v3095
        %3161 = vst.msk [vmem:[#allocation3 + $0xf8] sm:$0xff] %vm1013, %v3097
        %v3162 = vld [vmem:[%s291 + $0x1] sm:$0xff]
        %v3163 = vld [vmem:[%s291 + $0x9] sm:$0xff]
        %v3164 = vld [vmem:[%s291 + $0x19] sm:$0xff]
        %v3165 = vld [vmem:[%s291 + $0x21] sm:$0xff]
        %v3166 = vld [vmem:[%s291 + $0x31] sm:$0xff]
        %v3167 = vld [vmem:[%s291 + $0x39] sm:$0xff]
        %v3168 = vld [vmem:[%s291 + $0x49] sm:$0xff]
        %v3169 = vld [vmem:[%s291 + $0x51] sm:$0xff]
        %v3170 = vld [vmem:[%s291 + $0x61] sm:$0xff]
        %v3171 = vld [vmem:[%s291 + $0x69] sm:$0xff]
        %v3172 = vld [vmem:[%s291 + $0x79] sm:$0xff]
        %v3173 = vld [vmem:[%s291 + $0x81] sm:$0xff]
        %v3174 = vld [vmem:[%s291 + $0x91] sm:$0xff]
        %v3175 = vld [vmem:[%s291 + $0x99] sm:$0xff]
        %v3176 = vld [vmem:[%s291 + $0xa9] sm:$0xff]
        %v3177 = vld [vmem:[%s291 + $0xb1] sm:$0xff]
        %v3178 = vld [vmem:[%s291 + $0xc1] sm:$0xff]
        %v3179 = vld [vmem:[%s291 + $0xc9] sm:$0xff]
        %v3180 = vld [vmem:[%s291 + $0xd9] sm:$0xff]
        %v3181 = vld [vmem:[%s291 + $0xe1] sm:$0xff]
        %v3182 = vld [vmem:[%s291 + $0xf1] sm:$0xff]
        %v3183 = vld [vmem:[%s291 + $0xf9] sm:$0xff]
        %v3184 = vld [vmem:[%s291 + $0x109] sm:$0xff]
        %v3185 = vld [vmem:[%s291 + $0x111] sm:$0xff]
        %v3186 = vld [vmem:[%s291 + $0x121] sm:$0xff]
        %v3187 = vld [vmem:[%s291 + $0x129] sm:$0xff]
        %v3188 = vld [vmem:[%s291 + $0x139] sm:$0xff]
        %v3189 = vld [vmem:[%s291 + $0x141] sm:$0xff]
        %v3190 = vld [vmem:[%s291 + $0x151] sm:$0xff]
        %v3191 = vld [vmem:[%s291 + $0x159] sm:$0xff]
        %v3192 = vld [vmem:[%s291 + $0x169] sm:$0xff]
        %v3193 = vld [vmem:[%s291 + $0x171] sm:$0xff]
        %3226 = vrot.lane.b32.xlu0 %v3162, 16
        %v3227 = vpop.permute.xlu0 %3226
        %3228 = vrot.lane.b32.xlu0 %v3163, 16
        %v3229 = vpop.permute.xlu0 %3228
        %3230 = vrot.lane.b32.xlu0 %v3164, 16
        %v3231 = vpop.permute.xlu0 %3230
        %3232 = vrot.lane.b32.xlu0 %v3165, 16
        %v3233 = vpop.permute.xlu0 %3232
        %3234 = vrot.lane.b32.xlu0 %v3166, 16
        %v3235 = vpop.permute.xlu0 %3234
        %3236 = vrot.lane.b32.xlu0 %v3167, 16
        %v3237 = vpop.permute.xlu0 %3236
        %3238 = vrot.lane.b32.xlu0 %v3168, 16
        %v3239 = vpop.permute.xlu0 %3238
        %3240 = vrot.lane.b32.xlu0 %v3169, 16
        %v3241 = vpop.permute.xlu0 %3240
        %3242 = vrot.lane.b32.xlu0 %v3170, 16
        %v3243 = vpop.permute.xlu0 %3242
        %3244 = vrot.lane.b32.xlu0 %v3171, 16
        %v3245 = vpop.permute.xlu0 %3244
        %3246 = vrot.lane.b32.xlu0 %v3172, 16
        %v3247 = vpop.permute.xlu0 %3246
        %3248 = vrot.lane.b32.xlu0 %v3173, 16
        %v3249 = vpop.permute.xlu0 %3248
        %3250 = vrot.lane.b32.xlu0 %v3174, 16
        %v3251 = vpop.permute.xlu0 %3250
        %3252 = vrot.lane.b32.xlu0 %v3175, 16
        %v3253 = vpop.permute.xlu0 %3252
        %3254 = vrot.lane.b32.xlu0 %v3176, 16
        %v3255 = vpop.permute.xlu0 %3254
        %3256 = vrot.lane.b32.xlu0 %v3177, 16
        %v3257 = vpop.permute.xlu0 %3256
        %3258 = vrot.lane.b32.xlu0 %v3178, 16
        %v3259 = vpop.permute.xlu0 %3258
        %3260 = vrot.lane.b32.xlu0 %v3179, 16
        %v3261 = vpop.permute.xlu0 %3260
        %3262 = vrot.lane.b32.xlu0 %v3180, 16
        %v3263 = vpop.permute.xlu0 %3262
        %3264 = vrot.lane.b32.xlu0 %v3181, 16
        %v3265 = vpop.permute.xlu0 %3264
        %3266 = vrot.lane.b32.xlu0 %v3182, 16
        %v3267 = vpop.permute.xlu0 %3266
        %3268 = vrot.lane.b32.xlu0 %v3183, 16
        %v3269 = vpop.permute.xlu0 %3268
        %3270 = vrot.lane.b32.xlu0 %v3184, 16
        %v3271 = vpop.permute.xlu0 %3270
        %3272 = vrot.lane.b32.xlu0 %v3185, 16
        %v3273 = vpop.permute.xlu0 %3272
        %3274 = vrot.lane.b32.xlu0 %v3186, 16
        %v3275 = vpop.permute.xlu0 %3274
        %3276 = vrot.lane.b32.xlu0 %v3187, 16
        %v3277 = vpop.permute.xlu0 %3276
        %3278 = vrot.lane.b32.xlu0 %v3188, 16
        %v3279 = vpop.permute.xlu0 %3278
        %3280 = vrot.lane.b32.xlu0 %v3189, 16
        %v3281 = vpop.permute.xlu0 %3280
        %3282 = vrot.lane.b32.xlu0 %v3190, 16
        %v3283 = vpop.permute.xlu0 %3282
        %3284 = vrot.lane.b32.xlu0 %v3191, 16
        %v3285 = vpop.permute.xlu0 %3284
        %3286 = vrot.lane.b32.xlu0 %v3192, 16
        %v3287 = vpop.permute.xlu0 %3286
        %3288 = vrot.lane.b32.xlu0 %v3193, 16
        %v3289 = vpop.permute.xlu0 %3288
        %3322 = vst.msk [vmem:[#allocation3] sm:$0xff] %vm1206, %v3227
        %3323 = vst.msk [vmem:[#allocation3 + $0x8] sm:$0xff] %vm1206, %v3229
        %3324 = vst.msk [vmem:[#allocation3 + $0x10] sm:$0xff] %vm1206, %v3231
        %3325 = vst.msk [vmem:[#allocation3 + $0x18] sm:$0xff] %vm1206, %v3233
        %3326 = vst.msk [vmem:[#allocation3 + $0x20] sm:$0xff] %vm1206, %v3235
        %3327 = vst.msk [vmem:[#allocation3 + $0x28] sm:$0xff] %vm1206, %v3237
        %3328 = vst.msk [vmem:[#allocation3 + $0x30] sm:$0xff] %vm1206, %v3239
        %3329 = vst.msk [vmem:[#allocation3 + $0x38] sm:$0xff] %vm1206, %v3241
        %3330 = vst.msk [vmem:[#allocation3 + $0x40] sm:$0xff] %vm1206, %v3243
        %3331 = vst.msk [vmem:[#allocation3 + $0x48] sm:$0xff] %vm1206, %v3245
        %3332 = vst.msk [vmem:[#allocation3 + $0x50] sm:$0xff] %vm1206, %v3247
        %3333 = vst.msk [vmem:[#allocation3 + $0x58] sm:$0xff] %vm1206, %v3249
        %3334 = vst.msk [vmem:[#allocation3 + $0x60] sm:$0xff] %vm1206, %v3251
        %3335 = vst.msk [vmem:[#allocation3 + $0x68] sm:$0xff] %vm1206, %v3253
        %3336 = vst.msk [vmem:[#allocation3 + $0x70] sm:$0xff] %vm1206, %v3255
        %3337 = vst.msk [vmem:[#allocation3 + $0x78] sm:$0xff] %vm1206, %v3257
        %3338 = vst.msk [vmem:[#allocation3 + $0x80] sm:$0xff] %vm1206, %v3259
        %3339 = vst.msk [vmem:[#allocation3 + $0x88] sm:$0xff] %vm1206, %v3261
        %3340 = vst.msk [vmem:[#allocation3 + $0x90] sm:$0xff] %vm1206, %v3263
        %3341 = vst.msk [vmem:[#allocation3 + $0x98] sm:$0xff] %vm1206, %v3265
        %3342 = vst.msk [vmem:[#allocation3 + $0xa0] sm:$0xff] %vm1206, %v3267
        %3343 = vst.msk [vmem:[#allocation3 + $0xa8] sm:$0xff] %vm1206, %v3269
        %3344 = vst.msk [vmem:[#allocation3 + $0xb0] sm:$0xff] %vm1206, %v3271
        %3345 = vst.msk [vmem:[#allocation3 + $0xb8] sm:$0xff] %vm1206, %v3273
        %3346 = vst.msk [vmem:[#allocation3 + $0xc0] sm:$0xff] %vm1206, %v3275
        %3347 = vst.msk [vmem:[#allocation3 + $0xc8] sm:$0xff] %vm1206, %v3277
        %3348 = vst.msk [vmem:[#allocation3 + $0xd0] sm:$0xff] %vm1206, %v3279
        %3349 = vst.msk [vmem:[#allocation3 + $0xd8] sm:$0xff] %vm1206, %v3281
        %3350 = vst.msk [vmem:[#allocation3 + $0xe0] sm:$0xff] %vm1206, %v3283
        %3351 = vst.msk [vmem:[#allocation3 + $0xe8] sm:$0xff] %vm1206, %v3285
        %3352 = vst.msk [vmem:[#allocation3 + $0xf0] sm:$0xff] %vm1206, %v3287
        %3353 = vst.msk [vmem:[#allocation3 + $0xf8] sm:$0xff] %vm1206, %v3289
        %v3354 = vld [vmem:[%s291 + $0x2] sm:$0xff]
        %v3355 = vld [vmem:[%s291 + $0xa] sm:$0xff]
        %v3356 = vld [vmem:[%s291 + $0x1a] sm:$0xff]
        %v3357 = vld [vmem:[%s291 + $0x22] sm:$0xff]
        %v3358 = vld [vmem:[%s291 + $0x32] sm:$0xff]
        %v3359 = vld [vmem:[%s291 + $0x3a] sm:$0xff]
        %v3360 = vld [vmem:[%s291 + $0x4a] sm:$0xff]
        %v3361 = vld [vmem:[%s291 + $0x52] sm:$0xff]
        %v3362 = vld [vmem:[%s291 + $0x62] sm:$0xff]
        %v3363 = vld [vmem:[%s291 + $0x6a] sm:$0xff]
        %v3364 = vld [vmem:[%s291 + $0x7a] sm:$0xff]
        %v3365 = vld [vmem:[%s291 + $0x82] sm:$0xff]
        %v3366 = vld [vmem:[%s291 + $0x92] sm:$0xff]
        %v3367 = vld [vmem:[%s291 + $0x9a] sm:$0xff]
        %v3368 = vld [vmem:[%s291 + $0xaa] sm:$0xff]
        %v3369 = vld [vmem:[%s291 + $0xb2] sm:$0xff]
        %v3370 = vld [vmem:[%s291 + $0xc2] sm:$0xff]
        %v3371 = vld [vmem:[%s291 + $0xca] sm:$0xff]
        %v3372 = vld [vmem:[%s291 + $0xda] sm:$0xff]
        %v3373 = vld [vmem:[%s291 + $0xe2] sm:$0xff]
        %v3374 = vld [vmem:[%s291 + $0xf2] sm:$0xff]
        %v3375 = vld [vmem:[%s291 + $0xfa] sm:$0xff]
        %v3376 = vld [vmem:[%s291 + $0x10a] sm:$0xff]
        %v3377 = vld [vmem:[%s291 + $0x112] sm:$0xff]
        %v3378 = vld [vmem:[%s291 + $0x122] sm:$0xff]
        %v3379 = vld [vmem:[%s291 + $0x12a] sm:$0xff]
        %v3380 = vld [vmem:[%s291 + $0x13a] sm:$0xff]
        %v3381 = vld [vmem:[%s291 + $0x142] sm:$0xff]
        %v3382 = vld [vmem:[%s291 + $0x152] sm:$0xff]
        %v3383 = vld [vmem:[%s291 + $0x15a] sm:$0xff]
        %v3384 = vld [vmem:[%s291 + $0x16a] sm:$0xff]
        %v3385 = vld [vmem:[%s291 + $0x172] sm:$0xff]
        %3418 = vrot.lane.b32.xlu0 %v3354, 20
        %v3419 = vpop.permute.xlu0 %3418
        %3420 = vrot.lane.b32.xlu0 %v3355, 20
        %v3421 = vpop.permute.xlu0 %3420
        %3422 = vrot.lane.b32.xlu0 %v3356, 20
        %v3423 = vpop.permute.xlu0 %3422
        %3424 = vrot.lane.b32.xlu0 %v3357, 20
        %v3425 = vpop.permute.xlu0 %3424
        %3426 = vrot.lane.b32.xlu0 %v3358, 20
        %v3427 = vpop.permute.xlu0 %3426
        %3428 = vrot.lane.b32.xlu0 %v3359, 20
        %v3429 = vpop.permute.xlu0 %3428
        %3430 = vrot.lane.b32.xlu0 %v3360, 20
        %v3431 = vpop.permute.xlu0 %3430
        %3432 = vrot.lane.b32.xlu0 %v3361, 20
        %v3433 = vpop.permute.xlu0 %3432
        %3434 = vrot.lane.b32.xlu0 %v3362, 20
        %v3435 = vpop.permute.xlu0 %3434
        %3436 = vrot.lane.b32.xlu0 %v3363, 20
        %v3437 = vpop.permute.xlu0 %3436
        %3438 = vrot.lane.b32.xlu0 %v3364, 20
        %v3439 = vpop.permute.xlu0 %3438
        %3440 = vrot.lane.b32.xlu0 %v3365, 20
        %v3441 = vpop.permute.xlu0 %3440
        %3442 = vrot.lane.b32.xlu0 %v3366, 20
        %v3443 = vpop.permute.xlu0 %3442
        %3444 = vrot.lane.b32.xlu0 %v3367, 20
        %v3445 = vpop.permute.xlu0 %3444
        %3446 = vrot.lane.b32.xlu0 %v3368, 20
        %v3447 = vpop.permute.xlu0 %3446
        %3448 = vrot.lane.b32.xlu0 %v3369, 20
        %v3449 = vpop.permute.xlu0 %3448
        %3450 = vrot.lane.b32.xlu0 %v3370, 20
        %v3451 = vpop.permute.xlu0 %3450
        %3452 = vrot.lane.b32.xlu0 %v3371, 20
        %v3453 = vpop.permute.xlu0 %3452
        %3454 = vrot.lane.b32.xlu0 %v3372, 20
        %v3455 = vpop.permute.xlu0 %3454
        %3456 = vrot.lane.b32.xlu0 %v3373, 20
        %v3457 = vpop.permute.xlu0 %3456
        %3458 = vrot.lane.b32.xlu0 %v3374, 20
        %v3459 = vpop.permute.xlu0 %3458
        %3460 = vrot.lane.b32.xlu0 %v3375, 20
        %v3461 = vpop.permute.xlu0 %3460
        %3462 = vrot.lane.b32.xlu0 %v3376, 20
        %v3463 = vpop.permute.xlu0 %3462
        %3464 = vrot.lane.b32.xlu0 %v3377, 20
        %v3465 = vpop.permute.xlu0 %3464
        %3466 = vrot.lane.b32.xlu0 %v3378, 20
        %v3467 = vpop.permute.xlu0 %3466
        %3468 = vrot.lane.b32.xlu0 %v3379, 20
        %v3469 = vpop.permute.xlu0 %3468
        %3470 = vrot.lane.b32.xlu0 %v3380, 20
        %v3471 = vpop.permute.xlu0 %3470
        %3472 = vrot.lane.b32.xlu0 %v3381, 20
        %v3473 = vpop.permute.xlu0 %3472
        %3474 = vrot.lane.b32.xlu0 %v3382, 20
        %v3475 = vpop.permute.xlu0 %3474
        %3476 = vrot.lane.b32.xlu0 %v3383, 20
        %v3477 = vpop.permute.xlu0 %3476
        %3478 = vrot.lane.b32.xlu0 %v3384, 20
        %v3479 = vpop.permute.xlu0 %3478
        %3480 = vrot.lane.b32.xlu0 %v3385, 20
        %v3481 = vpop.permute.xlu0 %3480
        %3514 = vst.msk [vmem:[#allocation3] sm:$0xff] %vm1399, %v3419
        %3515 = vst.msk [vmem:[#allocation3 + $0x8] sm:$0xff] %vm1399, %v3421
        %3516 = vst.msk [vmem:[#allocation3 + $0x10] sm:$0xff] %vm1399, %v3423
        %3517 = vst.msk [vmem:[#allocation3 + $0x18] sm:$0xff] %vm1399, %v3425
        %3518 = vst.msk [vmem:[#allocation3 + $0x20] sm:$0xff] %vm1399, %v3427
        %3519 = vst.msk [vmem:[#allocation3 + $0x28] sm:$0xff] %vm1399, %v3429
        %3520 = vst.msk [vmem:[#allocation3 + $0x30] sm:$0xff] %vm1399, %v3431
        %3521 = vst.msk [vmem:[#allocation3 + $0x38] sm:$0xff] %vm1399, %v3433
        %3522 = vst.msk [vmem:[#allocation3 + $0x40] sm:$0xff] %vm1399, %v3435
        %3523 = vst.msk [vmem:[#allocation3 + $0x48] sm:$0xff] %vm1399, %v3437
        %3524 = vst.msk [vmem:[#allocation3 + $0x50] sm:$0xff] %vm1399, %v3439
        %3525 = vst.msk [vmem:[#allocation3 + $0x58] sm:$0xff] %vm1399, %v3441
        %3526 = vst.msk [vmem:[#allocation3 + $0x60] sm:$0xff] %vm1399, %v3443
        %3527 = vst.msk [vmem:[#allocation3 + $0x68] sm:$0xff] %vm1399, %v3445
        %3528 = vst.msk [vmem:[#allocation3 + $0x70] sm:$0xff] %vm1399, %v3447
        %3529 = vst.msk [vmem:[#allocation3 + $0x78] sm:$0xff] %vm1399, %v3449
        %3530 = vst.msk [vmem:[#allocation3 + $0x80] sm:$0xff] %vm1399, %v3451
        %3531 = vst.msk [vmem:[#allocation3 + $0x88] sm:$0xff] %vm1399, %v3453
        %3532 = vst.msk [vmem:[#allocation3 + $0x90] sm:$0xff] %vm1399, %v3455
        %3533 = vst.msk [vmem:[#allocation3 + $0x98] sm:$0xff] %vm1399, %v3457
        %3534 = vst.msk [vmem:[#allocation3 + $0xa0] sm:$0xff] %vm1399, %v3459
        %3535 = vst.msk [vmem:[#allocation3 + $0xa8] sm:$0xff] %vm1399, %v3461
        %3536 = vst.msk [vmem:[#allocation3 + $0xb0] sm:$0xff] %vm1399, %v3463
        %3537 = vst.msk [vmem:[#allocation3 + $0xb8] sm:$0xff] %vm1399, %v3465
        %3538 = vst.msk [vmem:[#allocation3 + $0xc0] sm:$0xff] %vm1399, %v3467
        %3539 = vst.msk [vmem:[#allocation3 + $0xc8] sm:$0xff] %vm1399, %v3469
        %3540 = vst.msk [vmem:[#allocation3 + $0xd0] sm:$0xff] %vm1399, %v3471
        %3541 = vst.msk [vmem:[#allocation3 + $0xd8] sm:$0xff] %vm1399, %v3473
        %3542 = vst.msk [vmem:[#allocation3 + $0xe0] sm:$0xff] %vm1399, %v3475
        %3543 = vst.msk [vmem:[#allocation3 + $0xe8] sm:$0xff] %vm1399, %v3477
        %3544 = vst.msk [vmem:[#allocation3 + $0xf0] sm:$0xff] %vm1399, %v3479
        %3545 = vst.msk [vmem:[#allocation3 + $0xf8] sm:$0xff] %vm1399, %v3481
        %v3546 = vld [vmem:[%s1432] sm:$0xff]
        %v3547 = vld [vmem:[%s1432 + $0x8] sm:$0xff]
        %v3548 = vld [vmem:[%s1432 + $0x18] sm:$0xff]
        %v3549 = vld [vmem:[%s1432 + $0x20] sm:$0xff]
        %v3550 = vld [vmem:[%s1432 + $0x30] sm:$0xff]
        %v3551 = vld [vmem:[%s1432 + $0x38] sm:$0xff]
        %v3552 = vld [vmem:[%s1432 + $0x48] sm:$0xff]
        %v3553 = vld [vmem:[%s1432 + $0x50] sm:$0xff]
        %v3554 = vld [vmem:[%s1432 + $0x60] sm:$0xff]
        %v3555 = vld [vmem:[%s1432 + $0x68] sm:$0xff]
        %v3556 = vld [vmem:[%s1432 + $0x78] sm:$0xff]
        %v3557 = vld [vmem:[%s1432 + $0x80] sm:$0xff]
        %v3558 = vld [vmem:[%s1432 + $0x90] sm:$0xff]
        %v3559 = vld [vmem:[%s1432 + $0x98] sm:$0xff]
        %v3560 = vld [vmem:[%s1432 + $0xa8] sm:$0xff]
        %v3561 = vld [vmem:[%s1432 + $0xb0] sm:$0xff]
        %v3562 = vld [vmem:[%s1432 + $0xc0] sm:$0xff]
        %v3563 = vld [vmem:[%s1432 + $0xc8] sm:$0xff]
        %v3564 = vld [vmem:[%s1432 + $0xd8] sm:$0xff]
        %v3565 = vld [vmem:[%s1432 + $0xe0] sm:$0xff]
        %v3566 = vld [vmem:[%s1432 + $0xf0] sm:$0xff]
        %v3567 = vld [vmem:[%s1432 + $0xf8] sm:$0xff]
        %v3568 = vld [vmem:[%s1432 + $0x108] sm:$0xff]
        %v3569 = vld [vmem:[%s1432 + $0x110] sm:$0xff]
        %v3570 = vld [vmem:[%s1432 + $0x120] sm:$0xff]
        %v3571 = vld [vmem:[%s1432 + $0x128] sm:$0xff]
        %v3572 = vld [vmem:[%s1432 + $0x138] sm:$0xff]
        %v3573 = vld [vmem:[%s1432 + $0x140] sm:$0xff]
        %v3574 = vld [vmem:[%s1432 + $0x150] sm:$0xff]
        %v3575 = vld [vmem:[%s1432 + $0x158] sm:$0xff]
        %v3576 = vld [vmem:[%s1432 + $0x168] sm:$0xff]
        %v3577 = vld [vmem:[%s1432 + $0x170] sm:$0xff]
        %3610 = vrot.lane.b32.xlu0 %v3546, 24
        %v3611 = vpop.permute.xlu0 %3610
        %3612 = vrot.lane.b32.xlu0 %v3547, 24
        %v3613 = vpop.permute.xlu0 %3612
        %3614 = vrot.lane.b32.xlu0 %v3548, 24
        %v3615 = vpop.permute.xlu0 %3614
        %3616 = vrot.lane.b32.xlu0 %v3549, 24
        %v3617 = vpop.permute.xlu0 %3616
        %3618 = vrot.lane.b32.xlu0 %v3550, 24
        %v3619 = vpop.permute.xlu0 %3618
        %3620 = vrot.lane.b32.xlu0 %v3551, 24
        %v3621 = vpop.permute.xlu0 %3620
        %3622 = vrot.lane.b32.xlu0 %v3552, 24
        %v3623 = vpop.permute.xlu0 %3622
        %3624 = vrot.lane.b32.xlu0 %v3553, 24
        %v3625 = vpop.permute.xlu0 %3624
        %3626 = vrot.lane.b32.xlu0 %v3554, 24
        %v3627 = vpop.permute.xlu0 %3626
        %3628 = vrot.lane.b32.xlu0 %v3555, 24
        %v3629 = vpop.permute.xlu0 %3628
        %3630 = vrot.lane.b32.xlu0 %v3556, 24
        %v3631 = vpop.permute.xlu0 %3630
        %3632 = vrot.lane.b32.xlu0 %v3557, 24
        %v3633 = vpop.permute.xlu0 %3632
        %3634 = vrot.lane.b32.xlu0 %v3558, 24
        %v3635 = vpop.permute.xlu0 %3634
        %3636 = vrot.lane.b32.xlu0 %v3559, 24
        %v3637 = vpop.permute.xlu0 %3636
        %3638 = vrot.lane.b32.xlu0 %v3560, 24
        %v3639 = vpop.permute.xlu0 %3638
        %3640 = vrot.lane.b32.xlu0 %v3561, 24
        %v3641 = vpop.permute.xlu0 %3640
        %3642 = vrot.lane.b32.xlu0 %v3562, 24
        %v3643 = vpop.permute.xlu0 %3642
        %3644 = vrot.lane.b32.xlu0 %v3563, 24
        %v3645 = vpop.permute.xlu0 %3644
        %3646 = vrot.lane.b32.xlu0 %v3564, 24
        %v3647 = vpop.permute.xlu0 %3646
        %3648 = vrot.lane.b32.xlu0 %v3565, 24
        %v3649 = vpop.permute.xlu0 %3648
        %3650 = vrot.lane.b32.xlu0 %v3566, 24
        %v3651 = vpop.permute.xlu0 %3650
        %3652 = vrot.lane.b32.xlu0 %v3567, 24
        %v3653 = vpop.permute.xlu0 %3652
        %3654 = vrot.lane.b32.xlu0 %v3568, 24
        %v3655 = vpop.permute.xlu0 %3654
        %3656 = vrot.lane.b32.xlu0 %v3569, 24
        %v3657 = vpop.permute.xlu0 %3656
        %3658 = vrot.lane.b32.xlu0 %v3570, 24
        %v3659 = vpop.permute.xlu0 %3658
        %3660 = vrot.lane.b32.xlu0 %v3571, 24
        %v3661 = vpop.permute.xlu0 %3660
        %3662 = vrot.lane.b32.xlu0 %v3572, 24
        %v3663 = vpop.permute.xlu0 %3662
        %3664 = vrot.lane.b32.xlu0 %v3573, 24
        %v3665 = vpop.permute.xlu0 %3664
        %3666 = vrot.lane.b32.xlu0 %v3574, 24
        %v3667 = vpop.permute.xlu0 %3666
        %3668 = vrot.lane.b32.xlu0 %v3575, 24
        %v3669 = vpop.permute.xlu0 %3668
        %3670 = vrot.lane.b32.xlu0 %v3576, 24
        %v3671 = vpop.permute.xlu0 %3670
        %3672 = vrot.lane.b32.xlu0 %v3577, 24
        %v3673 = vpop.permute.xlu0 %3672
        %3706 = vst.msk [vmem:[#allocation3] sm:$0xff] %vm1593, %v3611
        %3707 = vst.msk [vmem:[#allocation3 + $0x8] sm:$0xff] %vm1593, %v3613
        %3708 = vst.msk [vmem:[#allocation3 + $0x10] sm:$0xff] %vm1593, %v3615
        %3709 = vst.msk [vmem:[#allocation3 + $0x18] sm:$0xff] %vm1593, %v3617
        %3710 = vst.msk [vmem:[#allocation3 + $0x20] sm:$0xff] %vm1593, %v3619
        %3711 = vst.msk [vmem:[#allocation3 + $0x28] sm:$0xff] %vm1593, %v3621
        %3712 = vst.msk [vmem:[#allocation3 + $0x30] sm:$0xff] %vm1593, %v3623
        %3713 = vst.msk [vmem:[#allocation3 + $0x38] sm:$0xff] %vm1593, %v3625
        %3714 = vst.msk [vmem:[#allocation3 + $0x40] sm:$0xff] %vm1593, %v3627
        %3715 = vst.msk [vmem:[#allocation3 + $0x48] sm:$0xff] %vm1593, %v3629
        %3716 = vst.msk [vmem:[#allocation3 + $0x50] sm:$0xff] %vm1593, %v3631
        %3717 = vst.msk [vmem:[#allocation3 + $0x58] sm:$0xff] %vm1593, %v3633
        %3718 = vst.msk [vmem:[#allocation3 + $0x60] sm:$0xff] %vm1593, %v3635
        %3719 = vst.msk [vmem:[#allocation3 + $0x68] sm:$0xff] %vm1593, %v3637
        %3720 = vst.msk [vmem:[#allocation3 + $0x70] sm:$0xff] %vm1593, %v3639
        %3721 = vst.msk [vmem:[#allocation3 + $0x78] sm:$0xff] %vm1593, %v3641
        %3722 = vst.msk [vmem:[#allocation3 + $0x80] sm:$0xff] %vm1593, %v3643
        %3723 = vst.msk [vmem:[#allocation3 + $0x88] sm:$0xff] %vm1593, %v3645
        %3724 = vst.msk [vmem:[#allocation3 + $0x90] sm:$0xff] %vm1593, %v3647
        %3725 = vst.msk [vmem:[#allocation3 + $0x98] sm:$0xff] %vm1593, %v3649
        %3726 = vst.msk [vmem:[#allocation3 + $0xa0] sm:$0xff] %vm1593, %v3651
        %3727 = vst.msk [vmem:[#allocation3 + $0xa8] sm:$0xff] %vm1593, %v3653
        %3728 = vst.msk [vmem:[#allocation3 + $0xb0] sm:$0xff] %vm1593, %v3655
        %3729 = vst.msk [vmem:[#allocation3 + $0xb8] sm:$0xff] %vm1593, %v3657
        %3730 = vst.msk [vmem:[#allocation3 + $0xc0] sm:$0xff] %vm1593, %v3659
        %3731 = vst.msk [vmem:[#allocation3 + $0xc8] sm:$0xff] %vm1593, %v3661
        %3732 = vst.msk [vmem:[#allocation3 + $0xd0] sm:$0xff] %vm1593, %v3663
        %3733 = vst.msk [vmem:[#allocation3 + $0xd8] sm:$0xff] %vm1593, %v3665
        %3734 = vst.msk [vmem:[#allocation3 + $0xe0] sm:$0xff] %vm1593, %v3667
        %3735 = vst.msk [vmem:[#allocation3 + $0xe8] sm:$0xff] %vm1593, %v3669
        %3736 = vst.msk [vmem:[#allocation3 + $0xf0] sm:$0xff] %vm1593, %v3671
        %3737 = vst.msk [vmem:[#allocation3 + $0xf8] sm:$0xff] %vm1593, %v3673
        %v3738 = vld [vmem:[%s1432 + $0x1] sm:$0xff]
        %v3739 = vld [vmem:[%s1432 + $0x9] sm:$0xff]
        %v3740 = vld [vmem:[%s1432 + $0x19] sm:$0xff]
        %v3741 = vld [vmem:[%s1432 + $0x21] sm:$0xff]
        %v3742 = vld [vmem:[%s1432 + $0x31] sm:$0xff]
        %v3743 = vld [vmem:[%s1432 + $0x39] sm:$0xff]
        %v3744 = vld [vmem:[%s1432 + $0x49] sm:$0xff]
        %v3745 = vld [vmem:[%s1432 + $0x51] sm:$0xff]
        %v3746 = vld [vmem:[%s1432 + $0x61] sm:$0xff]
        %v3747 = vld [vmem:[%s1432 + $0x69] sm:$0xff]
        %v3748 = vld [vmem:[%s1432 + $0x79] sm:$0xff]
        %v3749 = vld [vmem:[%s1432 + $0x81] sm:$0xff]
        %v3750 = vld [vmem:[%s1432 + $0x91] sm:$0xff]
        %v3751 = vld [vmem:[%s1432 + $0x99] sm:$0xff]
        %v3752 = vld [vmem:[%s1432 + $0xa9] sm:$0xff]
        %v3753 = vld [vmem:[%s1432 + $0xb1] sm:$0xff]
        %v3754 = vld [vmem:[%s1432 + $0xc1] sm:$0xff]
        %v3755 = vld [vmem:[%s1432 + $0xc9] sm:$0xff]
        %v3756 = vld [vmem:[%s1432 + $0xd9] sm:$0xff]
        %v3757 = vld [vmem:[%s1432 + $0xe1] sm:$0xff]
        %v3758 = vld [vmem:[%s1432 + $0xf1] sm:$0xff]
        %v3759 = vld [vmem:[%s1432 + $0xf9] sm:$0xff]
        %v3760 = vld [vmem:[%s1432 + $0x109] sm:$0xff]
        %v3761 = vld [vmem:[%s1432 + $0x111] sm:$0xff]
        %v3762 = vld [vmem:[%s1432 + $0x121] sm:$0xff]
        %v3763 = vld [vmem:[%s1432 + $0x129] sm:$0xff]
        %v3764 = vld [vmem:[%s1432 + $0x139] sm:$0xff]
        %v3765 = vld [vmem:[%s1432 + $0x141] sm:$0xff]
        %v3766 = vld [vmem:[%s1432 + $0x151] sm:$0xff]
        %v3767 = vld [vmem:[%s1432 + $0x159] sm:$0xff]
        %v3768 = vld [vmem:[%s1432 + $0x169] sm:$0xff]
        %v3769 = vld [vmem:[%s1432 + $0x171] sm:$0xff]
        %3802 = vrot.lane.b32.xlu0 %v3738, 28
        %v3803 = vpop.permute.xlu0 %3802
        %3804 = vrot.lane.b32.xlu0 %v3739, 28
        %v3805 = vpop.permute.xlu0 %3804
        %3806 = vrot.lane.b32.xlu0 %v3740, 28
        %v3807 = vpop.permute.xlu0 %3806
        %3808 = vrot.lane.b32.xlu0 %v3741, 28
        %v3809 = vpop.permute.xlu0 %3808
        %3810 = vrot.lane.b32.xlu0 %v3742, 28
        %v3811 = vpop.permute.xlu0 %3810
        %3812 = vrot.lane.b32.xlu0 %v3743, 28
        %v3813 = vpop.permute.xlu0 %3812
        %3814 = vrot.lane.b32.xlu0 %v3744, 28
        %v3815 = vpop.permute.xlu0 %3814
        %3816 = vrot.lane.b32.xlu0 %v3745, 28
        %v3817 = vpop.permute.xlu0 %3816
        %3818 = vrot.lane.b32.xlu0 %v3746, 28
        %v3819 = vpop.permute.xlu0 %3818
        %3820 = vrot.lane.b32.xlu0 %v3747, 28
        %v3821 = vpop.permute.xlu0 %3820
        %3822 = vrot.lane.b32.xlu0 %v3748, 28
        %v3823 = vpop.permute.xlu0 %3822
        %3824 = vrot.lane.b32.xlu0 %v3749, 28
        %v3825 = vpop.permute.xlu0 %3824
        %3826 = vrot.lane.b32.xlu0 %v3750, 28
        %v3827 = vpop.permute.xlu0 %3826
        %3828 = vrot.lane.b32.xlu0 %v3751, 28
        %v3829 = vpop.permute.xlu0 %3828
        %3830 = vrot.lane.b32.xlu0 %v3752, 28
        %v3831 = vpop.permute.xlu0 %3830
        %3832 = vrot.lane.b32.xlu0 %v3753, 28
        %v3833 = vpop.permute.xlu0 %3832
        %3834 = vrot.lane.b32.xlu0 %v3754, 28
        %v3835 = vpop.permute.xlu0 %3834
        %3836 = vrot.lane.b32.xlu0 %v3755, 28
        %v3837 = vpop.permute.xlu0 %3836
        %3838 = vrot.lane.b32.xlu0 %v3756, 28
        %v3839 = vpop.permute.xlu0 %3838
        %3840 = vrot.lane.b32.xlu0 %v3757, 28
        %v3841 = vpop.permute.xlu0 %3840
        %3842 = vrot.lane.b32.xlu0 %v3758, 28
        %v3843 = vpop.permute.xlu0 %3842
        %3844 = vrot.lane.b32.xlu0 %v3759, 28
        %v3845 = vpop.permute.xlu0 %3844
        %3846 = vrot.lane.b32.xlu0 %v3760, 28
        %v3847 = vpop.permute.xlu0 %3846
        %3848 = vrot.lane.b32.xlu0 %v3761, 28
        %v3849 = vpop.permute.xlu0 %3848
        %3850 = vrot.lane.b32.xlu0 %v3762, 28
        %v3851 = vpop.permute.xlu0 %3850
        %3852 = vrot.lane.b32.xlu0 %v3763, 28
        %v3853 = vpop.permute.xlu0 %3852
        %3854 = vrot.lane.b32.xlu0 %v3764, 28
        %v3855 = vpop.permute.xlu0 %3854
        %3856 = vrot.lane.b32.xlu0 %v3765, 28
        %v3857 = vpop.permute.xlu0 %3856
        %3858 = vrot.lane.b32.xlu0 %v3766, 28
        %v3859 = vpop.permute.xlu0 %3858
        %3860 = vrot.lane.b32.xlu0 %v3767, 28
        %v3861 = vpop.permute.xlu0 %3860
        %3862 = vrot.lane.b32.xlu0 %v3768, 28
        %v3863 = vpop.permute.xlu0 %3862
        %3864 = vrot.lane.b32.xlu0 %v3769, 28
        %v3865 = vpop.permute.xlu0 %3864
        %3898 = vst.msk [vmem:[#allocation3] sm:$0xff] %vm1786, %v3803
        %3899 = vst.msk [vmem:[#allocation3 + $0x8] sm:$0xff] %vm1786, %v3805
        %3900 = vst.msk [vmem:[#allocation3 + $0x10] sm:$0xff] %vm1786, %v3807
        %3901 = vst.msk [vmem:[#allocation3 + $0x18] sm:$0xff] %vm1786, %v3809
        %3902 = vst.msk [vmem:[#allocation3 + $0x20] sm:$0xff] %vm1786, %v3811
        %3903 = vst.msk [vmem:[#allocation3 + $0x28] sm:$0xff] %vm1786, %v3813
        %3904 = vst.msk [vmem:[#allocation3 + $0x30] sm:$0xff] %vm1786, %v3815
        %3905 = vst.msk [vmem:[#allocation3 + $0x38] sm:$0xff] %vm1786, %v3817
        %3906 = vst.msk [vmem:[#allocation3 + $0x40] sm:$0xff] %vm1786, %v3819
        %3907 = vst.msk [vmem:[#allocation3 + $0x48] sm:$0xff] %vm1786, %v3821
        %3908 = vst.msk [vmem:[#allocation3 + $0x50] sm:$0xff] %vm1786, %v3823
        %3909 = vst.msk [vmem:[#allocation3 + $0x58] sm:$0xff] %vm1786, %v3825
        %3910 = vst.msk [vmem:[#allocation3 + $0x60] sm:$0xff] %vm1786, %v3827
        %3911 = vst.msk [vmem:[#allocation3 + $0x68] sm:$0xff] %vm1786, %v3829
        %3912 = vst.msk [vmem:[#allocation3 + $0x70] sm:$0xff] %vm1786, %v3831
        %3913 = vst.msk [vmem:[#allocation3 + $0x78] sm:$0xff] %vm1786, %v3833
        %3914 = vst.msk [vmem:[#allocation3 + $0x80] sm:$0xff] %vm1786, %v3835
        %3915 = vst.msk [vmem:[#allocation3 + $0x88] sm:$0xff] %vm1786, %v3837
        %3916 = vst.msk [vmem:[#allocation3 + $0x90] sm:$0xff] %vm1786, %v3839
        %3917 = vst.msk [vmem:[#allocation3 + $0x98] sm:$0xff] %vm1786, %v3841
        %3918 = vst.msk [vmem:[#allocation3 + $0xa0] sm:$0xff] %vm1786, %v3843
        %3919 = vst.msk [vmem:[#allocation3 + $0xa8] sm:$0xff] %vm1786, %v3845
        %3920 = vst.msk [vmem:[#allocation3 + $0xb0] sm:$0xff] %vm1786, %v3847
        %3921 = vst.msk [vmem:[#allocation3 + $0xb8] sm:$0xff] %vm1786, %v3849
        %3922 = vst.msk [vmem:[#allocation3 + $0xc0] sm:$0xff] %vm1786, %v3851
        %3923 = vst.msk [vmem:[#allocation3 + $0xc8] sm:$0xff] %vm1786, %v3853
        %3924 = vst.msk [vmem:[#allocation3 + $0xd0] sm:$0xff] %vm1786, %v3855
        %3925 = vst.msk [vmem:[#allocation3 + $0xd8] sm:$0xff] %vm1786, %v3857
        %3926 = vst.msk [vmem:[#allocation3 + $0xe0] sm:$0xff] %vm1786, %v3859
        %3927 = vst.msk [vmem:[#allocation3 + $0xe8] sm:$0xff] %vm1786, %v3861
        %3928 = vst.msk [vmem:[#allocation3 + $0xf0] sm:$0xff] %vm1786, %v3863
        %3929 = vst.msk [vmem:[#allocation3 + $0xf8] sm:$0xff] %vm1786, %v3865
        %v3930 = vld [vmem:[%s1432 + $0x2] sm:$0xff]
        %v3931 = vld [vmem:[%s1432 + $0xa] sm:$0xff]
        %v3932 = vld [vmem:[%s1432 + $0x1a] sm:$0xff]
        %v3933 = vld [vmem:[%s1432 + $0x22] sm:$0xff]
        %v3934 = vld [vmem:[%s1432 + $0x32] sm:$0xff]
        %v3935 = vld [vmem:[%s1432 + $0x3a] sm:$0xff]
        %v3936 = vld [vmem:[%s1432 + $0x4a] sm:$0xff]
        %v3937 = vld [vmem:[%s1432 + $0x52] sm:$0xff]
        %v3938 = vld [vmem:[%s1432 + $0x62] sm:$0xff]
        %v3939 = vld [vmem:[%s1432 + $0x6a] sm:$0xff]
        %v3940 = vld [vmem:[%s1432 + $0x7a] sm:$0xff]
        %v3941 = vld [vmem:[%s1432 + $0x82] sm:$0xff]
        %v3942 = vld [vmem:[%s1432 + $0x92] sm:$0xff]
        %v3943 = vld [vmem:[%s1432 + $0x9a] sm:$0xff]
        %v3944 = vld [vmem:[%s1432 + $0xaa] sm:$0xff]
        %v3945 = vld [vmem:[%s1432 + $0xb2] sm:$0xff]
        %v3946 = vld [vmem:[%s1432 + $0xc2] sm:$0xff]
        %v3947 = vld [vmem:[%s1432 + $0xca] sm:$0xff]
        %v3948 = vld [vmem:[%s1432 + $0xda] sm:$0xff]
        %v3949 = vld [vmem:[%s1432 + $0xe2] sm:$0xff]
        %v3950 = vld [vmem:[%s1432 + $0xf2] sm:$0xff]
        %v3951 = vld [vmem:[%s1432 + $0xfa] sm:$0xff]
        %v3952 = vld [vmem:[%s1432 + $0x10a] sm:$0xff]
        %v3953 = vld [vmem:[%s1432 + $0x112] sm:$0xff]
        %v3954 = vld [vmem:[%s1432 + $0x122] sm:$0xff]
        %v3955 = vld [vmem:[%s1432 + $0x12a] sm:$0xff]
        %v3956 = vld [vmem:[%s1432 + $0x13a] sm:$0xff]
        %v3957 = vld [vmem:[%s1432 + $0x142] sm:$0xff]
        %v3958 = vld [vmem:[%s1432 + $0x152] sm:$0xff]
        %v3959 = vld [vmem:[%s1432 + $0x15a] sm:$0xff]
        %v3960 = vld [vmem:[%s1432 + $0x16a] sm:$0xff]
        %v3961 = vld [vmem:[%s1432 + $0x172] sm:$0xff]
        %3994 = vrot.lane.b32.xlu0 %v3930, 32
        %v3995 = vpop.permute.xlu0 %3994
        %3996 = vrot.lane.b32.xlu0 %v3931, 32
        %v3997 = vpop.permute.xlu0 %3996
        %3998 = vrot.lane.b32.xlu0 %v3932, 32
        %v3999 = vpop.permute.xlu0 %3998
        %4000 = vrot.lane.b32.xlu0 %v3933, 32
        %v4001 = vpop.permute.xlu0 %4000
        %4002 = vrot.lane.b32.xlu0 %v3934, 32
        %v4003 = vpop.permute.xlu0 %4002
        %4004 = vrot.lane.b32.xlu0 %v3935, 32
        %v4005 = vpop.permute.xlu0 %4004
        %4006 = vrot.lane.b32.xlu0 %v3936, 32
        %v4007 = vpop.permute.xlu0 %4006
        %4008 = vrot.lane.b32.xlu0 %v3937, 32
        %v4009 = vpop.permute.xlu0 %4008
        %4010 = vrot.lane.b32.xlu0 %v3938, 32
        %v4011 = vpop.permute.xlu0 %4010
        %4012 = vrot.lane.b32.xlu0 %v3939, 32
        %v4013 = vpop.permute.xlu0 %4012
        %4014 = vrot.lane.b32.xlu0 %v3940, 32
        %v4015 = vpop.permute.xlu0 %4014
        %4016 = vrot.lane.b32.xlu0 %v3941, 32
        %v4017 = vpop.permute.xlu0 %4016
        %4018 = vrot.lane.b32.xlu0 %v3942, 32
        %v4019 = vpop.permute.xlu0 %4018
        %4020 = vrot.lane.b32.xlu0 %v3943, 32
        %v4021 = vpop.permute.xlu0 %4020
        %4022 = vrot.lane.b32.xlu0 %v3944, 32
        %v4023 = vpop.permute.xlu0 %4022
        %4024 = vrot.lane.b32.xlu0 %v3945, 32
        %v4025 = vpop.permute.xlu0 %4024
        %4026 = vrot.lane.b32.xlu0 %v3946, 32
        %v4027 = vpop.permute.xlu0 %4026
        %4028 = vrot.lane.b32.xlu0 %v3947, 32
        %v4029 = vpop.permute.xlu0 %4028
        %4030 = vrot.lane.b32.xlu0 %v3948, 32
        %v4031 = vpop.permute.xlu0 %4030
        %4032 = vrot.lane.b32.xlu0 %v3949, 32
        %v4033 = vpop.permute.xlu0 %4032
        %4034 = vrot.lane.b32.xlu0 %v3950, 32
        %v4035 = vpop.permute.xlu0 %4034
        %4036 = vrot.lane.b32.xlu0 %v3951, 32
        %v4037 = vpop.permute.xlu0 %4036
        %4038 = vrot.lane.b32.xlu0 %v3952, 32
        %v4039 = vpop.permute.xlu0 %4038
        %4040 = vrot.lane.b32.xlu0 %v3953, 32
        %v4041 = vpop.permute.xlu0 %4040
        %4042 = vrot.lane.b32.xlu0 %v3954, 32
        %v4043 = vpop.permute.xlu0 %4042
        %4044 = vrot.lane.b32.xlu0 %v3955, 32
        %v4045 = vpop.permute.xlu0 %4044
        %4046 = vrot.lane.b32.xlu0 %v3956, 32
        %v4047 = vpop.permute.xlu0 %4046
        %4048 = vrot.lane.b32.xlu0 %v3957, 32
        %v4049 = vpop.permute.xlu0 %4048
        %4050 = vrot.lane.b32.xlu0 %v3958, 32
        %v4051 = vpop.permute.xlu0 %4050
        %4052 = vrot.lane.b32.xlu0 %v3959, 32
        %v4053 = vpop.permute.xlu0 %4052
        %4054 = vrot.lane.b32.xlu0 %v3960, 32
        %v4055 = vpop.permute.xlu0 %4054
        %4056 = vrot.lane.b32.xlu0 %v3961, 32
        %v4057 = vpop.permute.xlu0 %4056
        %4090 = vst.msk [vmem:[#allocation3] sm:$0xff] %vm1979, %v3995
        %4091 = vst.msk [vmem:[#allocation3 + $0x8] sm:$0xff] %vm1979, %v3997
        %4092 = vst.msk [vmem:[#allocation3 + $0x10] sm:$0xff] %vm1979, %v3999
        %4093 = vst.msk [vmem:[#allocation3 + $0x18] sm:$0xff] %vm1979, %v4001
        %4094 = vst.msk [vmem:[#allocation3 + $0x20] sm:$0xff] %vm1979, %v4003
        %4095 = vst.msk [vmem:[#allocation3 + $0x28] sm:$0xff] %vm1979, %v4005
        %4096 = vst.msk [vmem:[#allocation3 + $0x30] sm:$0xff] %vm1979, %v4007
        %4097 = vst.msk [vmem:[#allocation3 + $0x38] sm:$0xff] %vm1979, %v4009
        %4098 = vst.msk [vmem:[#allocation3 + $0x40] sm:$0xff] %vm1979, %v4011
        %4099 = vst.msk [vmem:[#allocation3 + $0x48] sm:$0xff] %vm1979, %v4013
        %4100 = vst.msk [vmem:[#allocation3 + $0x50] sm:$0xff] %vm1979, %v4015
        %4101 = vst.msk [vmem:[#allocation3 + $0x58] sm:$0xff] %vm1979, %v4017
        %4102 = vst.msk [vmem:[#allocation3 + $0x60] sm:$0xff] %vm1979, %v4019
        %4103 = vst.msk [vmem:[#allocation3 + $0x68] sm:$0xff] %vm1979, %v4021
        %4104 = vst.msk [vmem:[#allocation3 + $0x70] sm:$0xff] %vm1979, %v4023
        %4105 = vst.msk [vmem:[#allocation3 + $0x78] sm:$0xff] %vm1979, %v4025
        %4106 = vst.msk [vmem:[#allocation3 + $0x80] sm:$0xff] %vm1979, %v4027
        %4107 = vst.msk [vmem:[#allocation3 + $0x88] sm:$0xff] %vm1979, %v4029
        %4108 = vst.msk [vmem:[#allocation3 + $0x90] sm:$0xff] %vm1979, %v4031
        %4109 = vst.msk [vmem:[#allocation3 + $0x98] sm:$0xff] %vm1979, %v4033
        %4110 = vst.msk [vmem:[#allocation3 + $0xa0] sm:$0xff] %vm1979, %v4035
        %4111 = vst.msk [vmem:[#allocation3 + $0xa8] sm:$0xff] %vm1979, %v4037
        %4112 = vst.msk [vmem:[#allocation3 + $0xb0] sm:$0xff] %vm1979, %v4039
        %4113 = vst.msk [vmem:[#allocation3 + $0xb8] sm:$0xff] %vm1979, %v4041
        %4114 = vst.msk [vmem:[#allocation3 + $0xc0] sm:$0xff] %vm1979, %v4043
        %4115 = vst.msk [vmem:[#allocation3 + $0xc8] sm:$0xff] %vm1979, %v4045
        %4116 = vst.msk [vmem:[#allocation3 + $0xd0] sm:$0xff] %vm1979, %v4047
        %4117 = vst.msk [vmem:[#allocation3 + $0xd8] sm:$0xff] %vm1979, %v4049
        %4118 = vst.msk [vmem:[#allocation3 + $0xe0] sm:$0xff] %vm1979, %v4051
        %4119 = vst.msk [vmem:[#allocation3 + $0xe8] sm:$0xff] %vm1979, %v4053
        %4120 = vst.msk [vmem:[#allocation3 + $0xf0] sm:$0xff] %vm1979, %v4055
        %4121 = vst.msk [vmem:[#allocation3 + $0xf8] sm:$0xff] %vm1979, %v4057
        %v4122 = vld [vmem:[#allocation3] sm:$0xff]
        %v4123 = vld [vmem:[#allocation3 + $0x8] sm:$0xff]
        %v4124 = vld [vmem:[#allocation3 + $0x10] sm:$0xff]
        %v4125 = vld [vmem:[#allocation3 + $0x18] sm:$0xff]
        %v4126 = vld [vmem:[#allocation3 + $0x20] sm:$0xff]
        %v4127 = vld [vmem:[#allocation3 + $0x28] sm:$0xff]
        %v4128 = vld [vmem:[#allocation3 + $0x30] sm:$0xff]
        %v4129 = vld [vmem:[#allocation3 + $0x38] sm:$0xff]
        %v4130 = vld [vmem:[#allocation3 + $0x40] sm:$0xff]
        %v4131 = vld [vmem:[#allocation3 + $0x48] sm:$0xff]
        %v4132 = vld [vmem:[#allocation3 + $0x50] sm:$0xff]
        %v4133 = vld [vmem:[#allocation3 + $0x58] sm:$0xff]
        %v4134 = vld [vmem:[#allocation3 + $0x60] sm:$0xff]
        %v4135 = vld [vmem:[#allocation3 + $0x68] sm:$0xff]
        %v4136 = vld [vmem:[#allocation3 + $0x70] sm:$0xff]
        %v4137 = vld [vmem:[#allocation3 + $0x78] sm:$0xff]
        %v4138 = vld [vmem:[#allocation3 + $0x80] sm:$0xff]
        %v4139 = vld [vmem:[#allocation3 + $0x88] sm:$0xff]
        %v4140 = vld [vmem:[#allocation3 + $0x90] sm:$0xff]
        %v4141 = vld [vmem:[#allocation3 + $0x98] sm:$0xff]
        %v4142 = vld [vmem:[#allocation3 + $0xa0] sm:$0xff]
        %v4143 = vld [vmem:[#allocation3 + $0xa8] sm:$0xff]
        %v4144 = vld [vmem:[#allocation3 + $0xb0] sm:$0xff]
        %v4145 = vld [vmem:[#allocation3 + $0xb8] sm:$0xff]
        %v4146 = vld [vmem:[#allocation3 + $0xc0] sm:$0xff]
        %v4147 = vld [vmem:[#allocation3 + $0xc8] sm:$0xff]
        %v4148 = vld [vmem:[#allocation3 + $0xd0] sm:$0xff]
        %v4149 = vld [vmem:[#allocation3 + $0xd8] sm:$0xff]
        %v4150 = vld [vmem:[#allocation3 + $0xe0] sm:$0xff]
        %v4151 = vld [vmem:[#allocation3 + $0xe8] sm:$0xff]
        %v4152 = vld [vmem:[#allocation3 + $0xf0] sm:$0xff]
        %v4153 = vld [vmem:[#allocation3 + $0xf8] sm:$0xff]
        %v4154 = vld [vmem:[%s3] sm:$0xff]
        %v4155 = vld [vmem:[%s3 + $0x8] sm:$0xff]
        %v4156 = vld [vmem:[%s3 + $0x10] sm:$0xff]
        %v4157 = vld [vmem:[%s3 + $0x18] sm:$0xff]
        %v4158 = vld [vmem:[%s3 + $0x20] sm:$0xf]
        %v4159 = vld [vmem:[%s4] sm:$0x1]
        %v4161 = vlaneseq
        %v4162 = vshrl.u32 %v4161, 7
        %v4163 = vsub.s32 0, %v4162
        %v4164 = vrot.slane %v4159, %v4163
        %v4167 = vsel %vm2056, %v4122, 0
        %v4170 = vsel %vm2056, %v4123, 0
        %v4173 = vsel %vm2056, %v4124, 0
        %v4176 = vsel %vm2056, %v4125, 0
        %v4179 = vsel %vm2056, %v4126, 0
        %v4182 = vsel %vm2056, %v4127, 0
        %v4185 = vsel %vm2056, %v4128, 0
        %v4188 = vsel %vm2056, %v4129, 0
        %v4191 = vsel %vm2056, %v4130, 0
        %v4194 = vsel %vm2056, %v4131, 0
        %v4197 = vsel %vm2056, %v4132, 0
        %v4200 = vsel %vm2056, %v4133, 0
        %v4203 = vsel %vm2056, %v4134, 0
        %v4206 = vsel %vm2056, %v4135, 0
        %v4209 = vsel %vm2056, %v4136, 0
        %v4212 = vsel %vm2056, %v4137, 0
        %v4215 = vsel %vm2056, %v4138, 0
        %v4218 = vsel %vm2056, %v4139, 0
        %v4221 = vsel %vm2056, %v4140, 0
        %v4224 = vsel %vm2056, %v4141, 0
        %v4227 = vsel %vm2056, %v4142, 0
        %v4230 = vsel %vm2056, %v4143, 0
        %v4233 = vsel %vm2056, %v4144, 0
        %v4236 = vsel %vm2056, %v4145, 0
        %v4239 = vsel %vm2056, %v4146, 0
        %v4242 = vsel %vm2056, %v4147, 0
        %v4245 = vsel %vm2056, %v4148, 0
        %v4248 = vsel %vm2056, %v4149, 0
        %v4251 = vsel %vm2056, %v4150, 0
        %v4254 = vsel %vm2056, %v4151, 0
        %v4257 = vsel %vm2056, %v4152, 0
        %v4260 = vsel %vm2056, %v4153, 0
        %v4263 = vsel %vm2153, %v4158, 0
        %4265 = vmatprep.subr.mxu0 0.0
        %4266 = vmatpush1.msra.mxu0 %v4154
        %4267 = vmatprep.subr.mxu0 0.0
        %4268 = vmatpush1.msra.mxu0 %v4155
        %4269 = vmatprep.subr.mxu0 0.0
        %4270 = vmatpush1.msra.mxu0 %v4156
        %4271 = vmatprep.subr.mxu0 0.0
        %4272 = vmatpush1.msra.mxu0 %v4157
        %4273 = vmatprep.subr.mxu0 0.0
        %4274 = vmatpush1.msra.mxu0 %v4263
        %4275 = vmatprep.subr.mxu0 0.0
        %4276 = vmatpush1.msra.mxu0 0.0
        %4277 = vmatprep.subr.mxu0 0.0
        %4278 = vmatpush1.msra.mxu0 0.0
        %4279 = vmatprep.subr.mxu0 0.0
        %4280 = vmatpush1.msra.mxu0 0.0
        %4281 = vmatprep.subr.mxu0 0.0
        %4282 = vmatpush1.msra.mxu0 0.0
        %4283 = vmatprep.subr.mxu0 0.0
        %4284 = vmatpush1.msra.mxu0 0.0
        %4285 = vmatprep.subr.mxu0 0.0
        %4286 = vmatpush1.msra.mxu0 0.0
        %4287 = vmatprep.subr.mxu0 0.0
        %4288 = vmatpush1.msra.mxu0 0.0
        %4289 = vmatprep.subr.mxu0 0.0
        %4290 = vmatpush1.msra.mxu0 0.0
        %4291 = vmatprep.subr.mxu0 0.0
        %4292 = vmatpush1.msra.mxu0 0.0
        %4293 = vmatprep.subr.mxu0 0.0
        %4294 = vmatpush1.msra.mxu0 0.0
        %4295 = vmatprep.subr.mxu0 0.0
        %4296 = vmatpush1.msra.mxu0 0.0
        %4297 = vmatprep.subr.mxu0 0.0
        %4298 = vmatpush1.msra.mxu0 0.0
        %4299 = vmatprep.subr.mxu0 0.0
        %4300 = vmatpush1.msra.mxu0 0.0
        %4301 = vmatprep.subr.mxu0 0.0
        %4302 = vmatpush1.msra.mxu0 0.0
        %4303 = vmatprep.subr.mxu0 0.0
        %4304 = vmatpush1.msra.mxu0 0.0
        %4305 = vmatprep.subr.mxu0 0.0
        %4306 = vmatpush1.msra.mxu0 0.0
        %4307 = vmatprep.subr.mxu0 0.0
        %4308 = vmatpush1.msra.mxu0 0.0
        %4309 = vmatprep.subr.mxu0 0.0
        %4310 = vmatpush1.msra.mxu0 0.0
        %4311 = vmatprep.subr.mxu0 0.0
        %4312 = vmatpush1.msra.mxu0 0.0
        %4313 = vmatprep.subr.mxu0 0.0
        %4314 = vmatpush1.msra.mxu0 0.0
        %4315 = vmatprep.subr.mxu0 0.0
        %4316 = vmatpush1.msra.mxu0 0.0
        %4317 = vmatprep.subr.mxu0 0.0
        %4318 = vmatpush1.msra.mxu0 0.0
        %4319 = vmatprep.subr.mxu0 0.0
        %4320 = vmatpush1.msra.mxu0 0.0
        %4321 = vmatprep.subr.mxu0 0.0
        %4322 = vmatpush1.msra.mxu0 0.0
        %4323 = vmatprep.subr.mxu0 0.0
        %4324 = vmatpush1.msra.mxu0 0.0
        %4325 = vmatprep.subr.mxu0 0.0
        %4326 = vmatpush1.msra.mxu0 0.0
        %4327 = vmatprep.subr.mxu0 0.0
        %4328 = vmatpush1.msra.mxu0 0.0
        %4329 = vmatprep.mubr.f32.mxu0 0.0
        %4330 = vmatmul.mubr.f32.gmra.mrb[0].mxu0 %v4167
        %v4331 = vpop.f32.mrb[0].mxu0
        %v4332 = vadd.f32 %v4164, %v4331
        %v4333 = vpop.f32.mrb[0].mxu0
        %4334 = vmatprep.mubr.f32.mxu0 0.0
        %4335 = vmatmul.mubr.f32.gmra.mrb[0].mxu0 %v4170
        %v4336 = vpop.f32.mrb[0].mxu0
        %v4337 = vadd.f32 %v4164, %v4336
        %v4338 = vpop.f32.mrb[0].mxu0
        %4339 = vmatprep.mubr.f32.mxu0 0.0
        %4340 = vmatmul.mubr.f32.gmra.mrb[0].mxu0 %v4173
        %v4341 = vpop.f32.mrb[0].mxu0
        %v4342 = vadd.f32 %v4164, %v4341
        %v4343 = vpop.f32.mrb[0].mxu0
        %4344 = vmatprep.mubr.f32.mxu0 0.0
        %4345 = vmatmul.mubr.f32.gmra.mrb[0].mxu0 %v4176
        %v4346 = vpop.f32.mrb[0].mxu0
        %v4347 = vadd.f32 %v4164, %v4346
        %v4348 = vpop.f32.mrb[0].mxu0
        %4349 = vmatprep.mubr.f32.mxu0 0.0
        %4350 = vmatmul.mubr.f32.gmra.mrb[0].mxu0 %v4179
        %v4351 = vpop.f32.mrb[0].mxu0
        %v4352 = vadd.f32 %v4164, %v4351
        %v4353 = vpop.f32.mrb[0].mxu0
        %4354 = vmatprep.mubr.f32.mxu0 0.0
        %4355 = vmatmul.mubr.f32.gmra.mrb[0].mxu0 %v4182
        %v4356 = vpop.f32.mrb[0].mxu0
        %v4357 = vadd.f32 %v4164, %v4356
        %v4358 = vpop.f32.mrb[0].mxu0
        %4359 = vmatprep.mubr.f32.mxu0 0.0
        %4360 = vmatmul.mubr.f32.gmra.mrb[0].mxu0 %v4185
        %v4361 = vpop.f32.mrb[0].mxu0
        %v4362 = vadd.f32 %v4164, %v4361
        %v4363 = vpop.f32.mrb[0].mxu0
        %4364 = vmatprep.mubr.f32.mxu0 0.0
        %4365 = vmatmul.mubr.f32.gmra.mrb[0].mxu0 %v4188
        %v4366 = vpop.f32.mrb[0].mxu0
        %v4367 = vadd.f32 %v4164, %v4366
        %v4368 = vpop.f32.mrb[0].mxu0
        %4369 = vmatprep.mubr.f32.mxu0 0.0
        %4370 = vmatmul.mubr.f32.gmra.mrb[0].mxu0 %v4191
        %v4371 = vpop.f32.mrb[0].mxu0
        %v4372 = vadd.f32 %v4164, %v4371
        %v4373 = vpop.f32.mrb[0].mxu0
        %4374 = vmatprep.mubr.f32.mxu0 0.0
        %4375 = vmatmul.mubr.f32.gmra.mrb[0].mxu0 %v4194
        %v4376 = vpop.f32.mrb[0].mxu0
        %v4377 = vadd.f32 %v4164, %v4376
        %v4378 = vpop.f32.mrb[0].mxu0
        %4379 = vmatprep.mubr.f32.mxu0 0.0
        %4380 = vmatmul.mubr.f32.gmra.mrb[0].mxu0 %v4197
        %v4381 = vpop.f32.mrb[0].mxu0
        %v4382 = vadd.f32 %v4164, %v4381
        %v4383 = vpop.f32.mrb[0].mxu0
        %4384 = vmatprep.mubr.f32.mxu0 0.0
        %4385 = vmatmul.mubr.f32.gmra.mrb[0].mxu0 %v4200
        %v4386 = vpop.f32.mrb[0].mxu0
        %v4387 = vadd.f32 %v4164, %v4386
        %v4388 = vpop.f32.mrb[0].mxu0
        %4389 = vmatprep.mubr.f32.mxu0 0.0
        %4390 = vmatmul.mubr.f32.gmra.mrb[0].mxu0 %v4203
        %v4391 = vpop.f32.mrb[0].mxu0
        %v4392 = vadd.f32 %v4164, %v4391
        %v4393 = vpop.f32.mrb[0].mxu0
        %4394 = vmatprep.mubr.f32.mxu0 0.0
        %4395 = vmatmul.mubr.f32.gmra.mrb[0].mxu0 %v4206
        %v4396 = vpop.f32.mrb[0].mxu0
        %v4397 = vadd.f32 %v4164, %v4396
        %v4398 = vpop.f32.mrb[0].mxu0
        %4399 = vmatprep.mubr.f32.mxu0 0.0
        %4400 = vmatmul.mubr.f32.gmra.mrb[0].mxu0 %v4209
        %v4401 = vpop.f32.mrb[0].mxu0
        %v4402 = vadd.f32 %v4164, %v4401
        %v4403 = vpop.f32.mrb[0].mxu0
        %4404 = vmatprep.mubr.f32.mxu0 0.0
        %4405 = vmatmul.mubr.f32.gmra.mrb[0].mxu0 %v4212
        %v4406 = vpop.f32.mrb[0].mxu0
        %v4407 = vadd.f32 %v4164, %v4406
        %v4408 = vpop.f32.mrb[0].mxu0
        %4409 = vmatprep.mubr.f32.mxu0 0.0
        %4410 = vmatmul.mubr.f32.gmra.mrb[0].mxu0 %v4215
        %v4411 = vpop.f32.mrb[0].mxu0
        %v4412 = vadd.f32 %v4164, %v4411
        %v4413 = vpop.f32.mrb[0].mxu0
        %4414 = vmatprep.mubr.f32.mxu0 0.0
        %4415 = vmatmul.mubr.f32.gmra.mrb[0].mxu0 %v4218
        %v4416 = vpop.f32.mrb[0].mxu0
        %v4417 = vadd.f32 %v4164, %v4416
        %v4418 = vpop.f32.mrb[0].mxu0
        %4419 = vmatprep.mubr.f32.mxu0 0.0
        %4420 = vmatmul.mubr.f32.gmra.mrb[0].mxu0 %v4221
        %v4421 = vpop.f32.mrb[0].mxu0
        %v4422 = vadd.f32 %v4164, %v4421
        %v4423 = vpop.f32.mrb[0].mxu0
        %4424 = vmatprep.mubr.f32.mxu0 0.0
        %4425 = vmatmul.mubr.f32.gmra.mrb[0].mxu0 %v4224
        %v4426 = vpop.f32.mrb[0].mxu0
        %v4427 = vadd.f32 %v4164, %v4426
        %v4428 = vpop.f32.mrb[0].mxu0
        %4429 = vmatprep.mubr.f32.mxu0 0.0
        %4430 = vmatmul.mubr.f32.gmra.mrb[0].mxu0 %v4227
        %v4431 = vpop.f32.mrb[0].mxu0
        %v4432 = vadd.f32 %v4164, %v4431
        %v4433 = vpop.f32.mrb[0].mxu0
        %4434 = vmatprep.mubr.f32.mxu0 0.0
        %4435 = vmatmul.mubr.f32.gmra.mrb[0].mxu0 %v4230
        %v4436 = vpop.f32.mrb[0].mxu0
        %v4437 = vadd.f32 %v4164, %v4436
        %v4438 = vpop.f32.mrb[0].mxu0
        %4439 = vmatprep.mubr.f32.mxu0 0.0
        %4440 = vmatmul.mubr.f32.gmra.mrb[0].mxu0 %v4233
        %v4441 = vpop.f32.mrb[0].mxu0
        %v4442 = vadd.f32 %v4164, %v4441
        %v4443 = vpop.f32.mrb[0].mxu0
        %4444 = vmatprep.mubr.f32.mxu0 0.0
        %4445 = vmatmul.mubr.f32.gmra.mrb[0].mxu0 %v4236
        %v4446 = vpop.f32.mrb[0].mxu0
        %v4447 = vadd.f32 %v4164, %v4446
        %v4448 = vpop.f32.mrb[0].mxu0
        %4449 = vmatprep.mubr.f32.mxu0 0.0
        %4450 = vmatmul.mubr.f32.gmra.mrb[0].mxu0 %v4239
        %v4451 = vpop.f32.mrb[0].mxu0
        %v4452 = vadd.f32 %v4164, %v4451
        %v4453 = vpop.f32.mrb[0].mxu0
        %4454 = vmatprep.mubr.f32.mxu0 0.0
        %4455 = vmatmul.mubr.f32.gmra.mrb[0].mxu0 %v4242
        %v4456 = vpop.f32.mrb[0].mxu0
        %v4457 = vadd.f32 %v4164, %v4456
        %v4458 = vpop.f32.mrb[0].mxu0
        %4459 = vmatprep.mubr.f32.mxu0 0.0
        %4460 = vmatmul.mubr.f32.gmra.mrb[0].mxu0 %v4245
        %v4461 = vpop.f32.mrb[0].mxu0
        %v4462 = vadd.f32 %v4164, %v4461
        %v4463 = vpop.f32.mrb[0].mxu0
        %4464 = vmatprep.mubr.f32.mxu0 0.0
        %4465 = vmatmul.mubr.f32.gmra.mrb[0].mxu0 %v4248
        %v4466 = vpop.f32.mrb[0].mxu0
        %v4467 = vadd.f32 %v4164, %v4466
        %v4468 = vpop.f32.mrb[0].mxu0
        %4469 = vmatprep.mubr.f32.mxu0 0.0
        %4470 = vmatmul.mubr.f32.gmra.mrb[0].mxu0 %v4251
        %v4471 = vpop.f32.mrb[0].mxu0
        %v4472 = vadd.f32 %v4164, %v4471
        %v4473 = vpop.f32.mrb[0].mxu0
        %4474 = vmatprep.mubr.f32.mxu0 0.0
        %4475 = vmatmul.mubr.f32.gmra.mrb[0].mxu0 %v4254
        %v4476 = vpop.f32.mrb[0].mxu0
        %v4477 = vadd.f32 %v4164, %v4476
        %v4478 = vpop.f32.mrb[0].mxu0
        %4479 = vmatprep.mubr.f32.mxu0 0.0
        %4480 = vmatmul.mubr.f32.gmra.mrb[0].mxu0 %v4257
        %v4481 = vpop.f32.mrb[0].mxu0
        %v4482 = vadd.f32 %v4164, %v4481
        %v4483 = vpop.f32.mrb[0].mxu0
        %4484 = vmatprep.mubr.f32.mxu0 0.0
        %4485 = vmatmul.mubr.f32.gmra.mrb[0].mxu0 %v4260
        %v4486 = vpop.f32.mrb[0].mxu0
        %v4487 = vadd.f32 %v4164, %v4486
        %v4488 = vpop.f32.mrb[0].mxu0
        %4489 = vdwg.mxu0
        %4490 = vxpose.xlu0.b32.start [1/16] %v4332, 128
        %4491 = vxpose.xlu0.b32.cont [2/16] %v4337, 128
        %4492 = vxpose.xlu0.b32.cont [3/16] %v4342, 128
        %4493 = vxpose.xlu0.b32.cont [4/16] %v4347, 128
        %4494 = vxpose.xlu0.b32.cont [5/16] %v4352, 128
        %4495 = vxpose.xlu0.b32.cont [6/16] %v4357, 128
        %4496 = vxpose.xlu0.b32.cont [7/16] %v4362, 128
        %4497 = vxpose.xlu0.b32.cont [8/16] %v4367, 128
        %4498 = vxpose.xlu0.b32.cont [9/16] %v4372, 128
        %4499 = vxpose.xlu0.b32.cont [10/16] %v4377, 128
        %4500 = vxpose.xlu0.b32.cont [11/16] %v4382, 128
        %4501 = vxpose.xlu0.b32.cont [12/16] %v4387, 128
        %4502 = vxpose.xlu0.b32.cont [13/16] %v4392, 128
        %4503 = vxpose.xlu0.b32.cont [14/16] %v4397, 128
        %4504 = vxpose.xlu0.b32.cont [15/16] %v4402, 128
        %4505 = vxpose.xlu0.b32.end [16/16] %v4407, 128
        %v4506 = vpop.trf.xlu0
        %v4507 = vpop.trf.xlu0
        %v4508 = vpop.trf.xlu0
        %v4509 = vpop.trf.xlu0
        %v4510 = vpop.trf.xlu0
        %v4511 = vpop.trf.xlu0
        %v4512 = vpop.trf.xlu0
        %v4513 = vpop.trf.xlu0
        %v4514 = vpop.trf.xlu0
        %v4515 = vpop.trf.xlu0
        %v4516 = vpop.trf.xlu0
        %v4517 = vpop.trf.xlu0
        %v4518 = vpop.trf.xlu0
        %v4519 = vpop.trf.xlu0
        %v4520 = vpop.trf.xlu0
        %v4521 = vpop.trf.xlu0
        %4522 = vxpose.xlu0.b32.start [1/16] %v4412, 128
        %4523 = vxpose.xlu0.b32.cont [2/16] %v4417, 128
        %4524 = vxpose.xlu0.b32.cont [3/16] %v4422, 128
        %4525 = vxpose.xlu0.b32.cont [4/16] %v4427, 128
        %4526 = vxpose.xlu0.b32.cont [5/16] %v4432, 128
        %4527 = vxpose.xlu0.b32.cont [6/16] %v4437, 128
        %4528 = vxpose.xlu0.b32.cont [7/16] %v4442, 128
        %4529 = vxpose.xlu0.b32.cont [8/16] %v4447, 128
        %4530 = vxpose.xlu0.b32.cont [9/16] %v4452, 128
        %4531 = vxpose.xlu0.b32.cont [10/16] %v4457, 128
        %4532 = vxpose.xlu0.b32.cont [11/16] %v4462, 128
        %4533 = vxpose.xlu0.b32.cont [12/16] %v4467, 128
        %4534 = vxpose.xlu0.b32.cont [13/16] %v4472, 128
        %4535 = vxpose.xlu0.b32.cont [14/16] %v4477, 128
        %4536 = vxpose.xlu0.b32.cont [15/16] %v4482, 128
        %4537 = vxpose.xlu0.b32.end [16/16] %v4487, 128
        %v4538 = vpop.trf.xlu0
        %v4539 = vpop.trf.xlu0
        %v4540 = vpop.trf.xlu0
        %v4541 = vpop.trf.xlu0
        %v4542 = vpop.trf.xlu0
        %v4543 = vpop.trf.xlu0
        %v4544 = vpop.trf.xlu0
        %v4545 = vpop.trf.xlu0
        %v4546 = vpop.trf.xlu0
        %v4547 = vpop.trf.xlu0
        %v4548 = vpop.trf.xlu0
        %v4549 = vpop.trf.xlu0
        %v4550 = vpop.trf.xlu0
        %v4551 = vpop.trf.xlu0
        %v4552 = vpop.trf.xlu0
        %v4553 = vpop.trf.xlu0
        %v4556 = vcombine.low %v4506, %v4538
        %v4558 = vadd.f32 %v223, %v4556
        %4559 = vst [vmem:[%s217] sm:$0xff] %v4558
        %s4560 = sand.u32 %s137, 1
        %s4561 = scalar_lea.sflag [#allocation5], %s4560
        %s4562 = sand.u32 %s137, 1
        %s4563 = smul.addr %s4562, 8
        %s4564 = scalar_lea.vmem [#allocation4], %s4563
        // Predicated region
        $region41: #{tpu_custom_call.1} parent=39 // pred_check
          %p4565 = pneg %p147
        $region42: #{tpu_custom_call.1} parent=39 // pred_check_branch
          %4567 = sbr.rel (%p4565) target = $region44
        $region43: #{tpu_custom_call.1} parent=39 // pred_region
          %s4569 = ssub.s32 128, 128
          %4570 = vsyncadd %s4561, %s4569
          %s4571 = smul.addr %s19, 2
          %s4572 = smul.addr %s4571, 64
          %s4573 = scalar_lea.hbm %s5, %s4572
          %s4575 = sshll.u32 %s4564, 4
          %s4576 = int_to_ptr.vmem [resolvable:$true] %s4575
          %4578 = dma.vmem_to_hbm [thread:$0]  %s4576, 128, %s4573, %s4561
        $region44: #{tpu_custom_call.1} parent=39 // pred_fallthru
          _
      $region40: #{tpu_custom_call.1} parent=5 // pred_fallthru
        _
      %p4579 = scmp.le.s32.totalorder 2, %s14
      // Predicated region
      $region45: #{tpu_custom_call.1} parent=5 // pred_check
        %p4580 = pneg %p4579
      $region46: #{tpu_custom_call.1} parent=5 // pred_check_branch
        %4582 = sbr.rel (%p4580) target = $region48
      $region47: #{tpu_custom_call.1} parent=5 // pred_region
        %s4583 = ssub.s32 %s14, 2
        // Predicated region
        $region49: #{tpu_custom_call.1} parent=47 // pred_check
          %p4584 = pneg %p153
        $region50: #{tpu_custom_call.1} parent=47 // pred_check_branch
          %4586 = sbr.rel (%p4584) target = $region52
        $region51: #{tpu_custom_call.1} parent=47 // pred_region
          %s4587 = sand.u32 %s138, 1
          %s4588 = scalar_lea.sflag [#allocation5], %s4587
          %s4589 = sand.u32 %s138, 1
          %s4590 = smul.addr %s4589, 8
          %s4591 = scalar_lea.vmem [#allocation4], %s4590
          %4592 = dma.done %s4588, 128
        $region52: #{tpu_custom_call.1} parent=47 // pred_fallthru
          _
      $region48: #{tpu_custom_call.1} parent=5 // pred_fallthru
        _
    $region6: #{tpu_custom_call.1} parent=1 // loop_footer
      %s18 = sadd.s32 1, %s14
    $region7: #{tpu_custom_call.1} parent=1 // loop_footer_branch
      %13 = sbr.rel target = $region3
    $region8: #{tpu_custom_call.1} parent=1 // loop_exit
      _
    %4593 = vsyncpa [#allocation5], 1
    %s4594 = scalar_lea.sflag [#allocation5], 1
    %4595 = vsyncpa %s4594, 1

</llo_original>
